<compile_context>
chip_gen: v7x
topology: tpu7x:2x2x1
jax: 0.10.0
libtpu: 0.0.40
codegen_flags: <defaults>
</compile_context>

<pallas_src>
import jax
import jax.numpy as jnp
from jax.experimental import pallas as pl
from jax.experimental.pallas import tpu as pltpu


def _round_up(x, m):
    return ((x + m - 1) // m) * m


_CHANNELS = (3, 32, 64, 128)
_TAPS = [(dh, dw) for dh in range(3) for dw in range(3)]
_POOLS = [(0, 0), (0, 1), (1, 0), (1, 1)]
_FC1, _FC2 = 256, 128


def _stage_cfgs(input_size):
    h, w = input_size
    cfgs = []
    for i in range(3):
        assert h % 2 == 0 and w % 2 == 0, "spatial dims must stay even per stage"
        cin, cout = _CHANNELS[i], _CHANNELS[i + 1]
        ho, wo = h // 2, w // 2
        wo_r = _round_up(wo, 8)          # keep in-kernel reshapes 8-sublane aligned
        cfgs.append(dict(h=h, w=w, cin=cin, cout=cout, ho=ho, wo=wo, wo_r=wo_r,
                         m=ho * wo_r, hp=h + 2, wp=2 * wo_r + 2))
        h, w = ho, wo
    return cfgs, (h, w)


def build_forward(batch, input_size, num_classes):
    """Returns forward(x_nchw, prepped_params) -> (batch, num_classes)."""
    n = batch
    cfgs, (hf, wf) = _stage_cfgs(input_size)
    c1, c2, c3 = cfgs
    cf = c3["cout"]
    out_pad = _round_up(max(num_classes, 1), 128)    # lane-dense logits store
    k1 = _round_up(9 * c1["cin"], 32)                # 27 -> 32 patch columns
    m1 = c1["m"]

    def kernel(pat, w1, b1, w2, b2, w3, b3,
               fw1, fb1, fw2, fb2, fw3, fb3, out, xq2, xq3):

        def pool_max(z, m):
            # 2x2/2 max-pool == elementwise max over the 4 stacked row chunks.
            return jnp.maximum(jnp.maximum(z[0:m], z[m:2 * m]),
                               jnp.maximum(z[2 * m:3 * m], z[3 * m:4 * m]))

        def conv_stage(xq, w_ref, b_ref, cfg):
            # Tap-accumulated conv3x3 + bias + ReLU + 2x2 max-pool.  The four
            # pool phases are stacked on the matmul M dim; no im2col scratch.
            ho, wo_r, cin, m = cfg["ho"], cfg["wo_r"], cfg["cin"], cfg["m"]
            acc = None
            for t, (dh, dw) in enumerate(_TAPS):
                blocks = []
                for (ph, pw) in _POOLS:
                    blk = xq[pl.ds(ph + dh, ho, stride=2),
                             pl.ds(pw + dw, wo_r, stride=2), :]
                    blocks.append(blk.reshape(m, cin))
                lhs = jnp.concatenate(blocks, axis=0).astype(jnp.bfloat16)
                d = jnp.dot(lhs, w_ref[t], preferred_element_type=jnp.float32)
                acc = d if acc is None else acc + d
            z = jnp.maximum(acc + b_ref[...], 0.0)
            return pool_max(z, m)                     # (m, cout) f32

        # ---- stage 1: conv1 as ONE stacked matmul over pre-built patches ----
        lhs1 = pat[...].reshape(4 * m1, k1)           # bf16, rows (pool, i, j)
        z1 = jnp.dot(lhs1, w1[...], preferred_element_type=jnp.float32)
        z1 = jnp.maximum(z1 + b1[...], 0.0)
        p1 = pool_max(z1, m1)                         # (m1, 32)

        # ---- stage 2: one bulk zero + one bulk interior store, then conv ----
        xq2[...] = jnp.zeros_like(xq2)
        xq2[1:1 + c2["h"], 1:1 + c2["w"], :] = (
            p1.reshape(c1["ho"], c1["wo_r"], c1["cout"])[:, :c1["wo"], :])
        p2 = conv_stage(xq2, w2, b2, c2)              # (m2, 64)

        # ---- stage 3 ----
        xq3[...] = jnp.zeros_like(xq3)
        xq3[1:1 + c3["h"], 1:1 + c3["w"], :] = (
            p2.reshape(c2["ho"], c2["wo_r"], c2["cout"])[:, :c2["wo"], :])
        p3 = conv_stage(xq3, w3, b3, c3)              # (m3, 128)

        # ---- MLP: fc1 folded over valid spatial positions (padded wo_r rows
        # are never consumed), then fc2 / fc3; bf16 operands, f32 accumulate.
        h1 = None
        for i in range(hf):
            for j in range(wf):
                r = i * c3["wo_r"] + j
                d = jnp.dot(p3[r:r + 1, :].astype(jnp.bfloat16),
                            fw1[i * wf + j],
                            preferred_element_type=jnp.float32)
                h1 = d if h1 is None else h1 + d
        h1 = jnp.maximum(h1 + fb1[...], 0.0)
        h2 = jnp.dot(h1.astype(jnp.bfloat16), fw2[...],
                     preferred_element_type=jnp.float32)
        h2 = jnp.maximum(h2 + fb2[...], 0.0)
        logits = jnp.dot(h2.astype(jnp.bfloat16), fw3[...],
                         preferred_element_type=jnp.float32) + fb3[...]
        out[...] = logits[None, :, :]

    def full_spec(shape):
        nd = len(shape)

        def idx(b):
            return (0,) * nd

        return pl.BlockSpec(shape, idx)   # weights stay VMEM-resident

    in_specs = [
        pl.BlockSpec((1, 4 * m1, k1), lambda b: (b, 0, 0)),        # patches
        full_spec((k1, c1["cout"])), full_spec((1, c1["cout"])),   # conv1
        full_spec((9, c2["cin"], c2["cout"])), full_spec((1, c2["cout"])),
        full_spec((9, c3["cin"], c3["cout"])), full_spec((1, c3["cout"])),
        full_spec((hf * wf, cf, _FC1)), full_spec((1, _FC1)),      # fc1
        full_spec((_FC1, _FC2)), full_spec((1, _FC2)),             # fc2
        full_spec((_FC2, out_pad)), full_spec((1, out_pad)),       # fc3
    ]

    fused = pl.pallas_call(
        kernel,
        grid=(n,),
        out_shape=jax.ShapeDtypeStruct((n, 1, out_pad), jnp.float32),
        in_specs=in_specs,
        out_specs=pl.BlockSpec((1, 1, out_pad), lambda b: (b, 0, 0)),
        scratch_shapes=[
            pltpu.VMEM((c2["hp"], c2["wp"], c2["cin"]), jnp.float32),
            pltpu.VMEM((c3["hp"], c3["wp"], c3["cin"]), jnp.float32),
        ],
        compiler_params=pltpu.CompilerParams(
            dimension_semantics=("parallel",)),
    )

    h0, w0 = input_size
    ho1, wo_r1 = c1["ho"], c1["wo_r"]
    wpad0 = 2 * wo_r1 + 2

    def forward(x_nchw, prepped):
        (w1, b1, w2, b2, w3, b3, fw1, fb1, fw2, fb2, fw3, fb3) = prepped
        # Stage-1 im2col is done here by XLA: cin=3 would waste 125/128 lanes
        # and force narrow masked column stores if gathered in-kernel.
        x = jnp.transpose(x_nchw, (0, 2, 3, 1)).astype(jnp.float32)      # NHWC
        xp = jnp.pad(x, ((0, 0), (1, 1), (1, wpad0 - w0 - 1), (0, 0)))
        taps = [xp[:, dh:dh + 2 * ho1, dw:dw + 2 * wo_r1, :]
                for (dh, dw) in _TAPS]
        patm = jnp.concatenate(taps, axis=-1)           # (n, 2ho, 2wo_r, 27)
        phases = [patm[:, ph::2, pw::2, :] for (ph, pw) in _POOLS]
        pat = jnp.stack(phases, axis=1).reshape(n, 4 * m1, 9 * c1["cin"])
        pat = jnp.pad(pat, ((0, 0), (0, 0), (0, k1 - 9 * c1["cin"])))
        pat = pat.astype(jnp.bfloat16)
        o = fused(pat, w1, b1, w2, b2, w3, b3,
                  fw1, fb1, fw2, fb2, fw3, fb3)
        return o[:, 0, :num_classes]

    return forward


def prepare_params(params, input_size, num_classes):
    """One-time layout transforms of torch-layout parameters (outside forward)."""
    cfgs, (hf, wf) = _stage_cfgs(input_size)
    cf = cfgs[-1]["cout"]
    out_pad = _round_up(max(num_classes, 1), 128)
    k1 = _round_up(9 * cfgs[0]["cin"], 32)

    prepped = []
    for si, (w, b) in enumerate(params["convs"]):
        cout, cin, kh, kw = w.shape
        wt = jnp.transpose(w, (2, 3, 1, 0))             # (kh, kw, cin, cout)
        if si == 0:
            # conv1: single stacked matmul over the pre-built patch matrix;
            # flatten (tap, cin) onto rows and zero-pad 27 -> k1.
            wm = wt.reshape(kh * kw * cin, cout)
            wm = jnp.pad(wm, ((0, k1 - kh * kw * cin), (0, 0)))
            prepped.append(wm.astype(jnp.bfloat16))
        else:
            # conv2/3: per-tap weights for the tap-accumulation loop.
            prepped.append(wt.reshape(kh * kw, cin, cout).astype(jnp.bfloat16))
        prepped.append(b.reshape(1, cout).astype(jnp.float32))

    (w1, b1), (w2, b2), (w3, b3) = params["fc1"], params["fc2"], params["fc3"]
    # fc1 split per spatial position; folds torch's NCHW flatten (c*H*W+i*W+j).
    fw1 = jnp.transpose(w1.reshape(w1.shape[0], cf, hf, wf), (2, 3, 1, 0))
    fw1 = fw1.reshape(hf * wf, cf, w1.shape[0]).astype(jnp.bfloat16)
    fb1 = b1.reshape(1, -1).astype(jnp.float32)
    fw2 = w2.T.astype(jnp.bfloat16)
    fb2 = b2.reshape(1, -1).astype(jnp.float32)
    fw3 = jnp.zeros((w3.shape[1], out_pad), jnp.float32)
    fw3 = fw3.at[:, :num_classes].set(w3.T).astype(jnp.bfloat16)
    fb3 = jnp.zeros((1, out_pad), jnp.float32)
    fb3 = fb3.at[:, :num_classes].set(b3.reshape(1, -1))
    prepped += [fw1, fb1, fw2, fb2, fw3, fb3]
    return tuple(prepped)


def init_params(key, input_size, num_classes):
    h, w = input_size
    for _ in range(3):      # three conv(pad=1,k=3,s=1) + pool(2,2) stages
        h, w = h // 2, w // 2
    flat_dim = 128 * h * w

    shapes = {
        "conv1_w": (32, 3, 3, 3),    "conv1_b": (32,),
        "conv2_w": (64, 32, 3, 3),   "conv2_b": (64,),
        "conv3_w": (128, 64, 3, 3),  "conv3_b": (128,),
        "fc1_w": (256, flat_dim),    "fc1_b": (256,),
        "fc2_w": (128, 256),         "fc2_b": (128,),
        "fc3_w": (num_classes, 128), "fc3_b": (num_classes,),
    }
    keys = jax.random.split(key, len(shapes))
    vals = {name: 0.05 * jax.random.normal(k, shp, dtype=jnp.float32)
            for (name, shp), k in zip(shapes.items(), keys)}
    return {
        "convs": [(vals["conv1_w"], vals["conv1_b"]),
                  (vals["conv2_w"], vals["conv2_b"]),
                  (vals["conv3_w"], vals["conv3_b"])],
        "fc1": (vals["fc1_w"], vals["fc1_b"]),
        "fc2": (vals["fc2_w"], vals["fc2_b"]),
        "fc3": (vals["fc3_w"], vals["fc3_b"]),
    }


def reference_forward(x_nchw, params):
    """Pure-JAX reference mirroring the PyTorch module (sanity check)."""
    x = x_nchw.astype(jnp.float32)
    for (w, b) in params["convs"]:
        x = jax.lax.conv_general_dilated(
            x, w, window_strides=(1, 1), padding=((1, 1), (1, 1)),
            dimension_numbers=("NCHW", "OIHW", "NCHW"))
        x = jax.nn.relu(x + b.reshape(1, -1, 1, 1))
        x = jax.lax.reduce_window(x, -jnp.inf, jax.lax.max,
                                  (1, 1, 2, 2), (1, 1, 2, 2), "VALID")
    x = x.reshape(x.shape[0], -1)
    (w1, b1), (w2, b2), (w3, b3) = params["fc1"], params["fc2"], params["fc3"]
    x = jax.nn.relu(x @ w1.T + b1)
    x = jax.nn.relu(x @ w2.T + b2)
    return x @ w3.T + b3


if __name__ == "__main__":
    input_size = (16, 16)
    num_classes = 10
    batch = 2

    key = jax.random.PRNGKey(0)
    k_x, k_p = jax.random.split(key)
    x = jax.random.normal(k_x, (batch, 3, *input_size), dtype=jnp.float32)
    params = init_params(k_p, input_size, num_classes)
    prepped = prepare_params(params, input_size, num_classes)

    forward = jax.jit(build_forward(batch, input_size, num_classes))
    out = forward(x, prepped)
    jax.block_until_ready(out)
    assert out.shape == (batch, num_classes), out.shape

    # Sanity check against a pure-JAX reference (bf16 MXU operands -> loose tol).
    ref = reference_forward(x, params)
    max_err = float(jnp.max(jnp.abs(out - ref)))
    assert max_err < 2e-2, f"kernel/reference mismatch: max_err={max_err}"

    print("KERNEL_OK")
</pallas_src>

<mosaic_0001>
module attributes {stable_mosaic.version = 11 : i64} {
  func.func @kernel(%arg0: i32, %arg1: memref<1x256x32xbf16, #tpu.memory_space<vmem>>, %arg2: memref<32x32xbf16, #tpu.memory_space<vmem>>, %arg3: memref<1x32xf32, #tpu.memory_space<vmem>>, %arg4: memref<9x32x64xbf16, #tpu.memory_space<vmem>>, %arg5: memref<1x64xf32, #tpu.memory_space<vmem>>, %arg6: memref<9x64x128xbf16, #tpu.memory_space<vmem>>, %arg7: memref<1x128xf32, #tpu.memory_space<vmem>>, %arg8: memref<4x128x256xbf16, #tpu.memory_space<vmem>>, %arg9: memref<1x256xf32, #tpu.memory_space<vmem>>, %arg10: memref<256x128xbf16, #tpu.memory_space<vmem>>, %arg11: memref<1x128xf32, #tpu.memory_space<vmem>>, %arg12: memref<128x128xbf16, #tpu.memory_space<vmem>>, %arg13: memref<1x128xf32, #tpu.memory_space<vmem>>, %arg14: memref<1x1x128xf32, #tpu.memory_space<vmem>>, %arg15: memref<10x18x32xf32, #tpu.memory_space<vmem>>, %arg16: memref<6x18x64xf32, #tpu.memory_space<vmem>>) attributes {dimension_semantics = [#tpu.dimension_semantics<parallel>], iteration_bounds = array<i64: 2>, scalar_prefetch = 0 : i64, scratch_operands = 2 : i64, tpu.core_type = #tpu.core_type<tc>, window_params = [{transform_indices = @transform_0, window_bounds = array<i64: 1, 256, 32>}, {pipeline_mode = #tpu.pipeline_mode<synchronous>, transform_indices = @transform_1, window_bounds = array<i64: 32, 32>}, {pipeline_mode = #tpu.pipeline_mode<synchronous>, transform_indices = @transform_2, window_bounds = array<i64: 1, 32>}, {pipeline_mode = #tpu.pipeline_mode<synchronous>, transform_indices = @transform_3, window_bounds = array<i64: 9, 32, 64>}, {pipeline_mode = #tpu.pipeline_mode<synchronous>, transform_indices = @transform_4, window_bounds = array<i64: 1, 64>}, {pipeline_mode = #tpu.pipeline_mode<synchronous>, transform_indices = @transform_5, window_bounds = array<i64: 9, 64, 128>}, {pipeline_mode = #tpu.pipeline_mode<synchronous>, transform_indices = @transform_6, window_bounds = array<i64: 1, 128>}, {pipeline_mode = #tpu.pipeline_mode<synchronous>, transform_indices = @transform_7, window_bounds = array<i64: 4, 128, 256>}, {pipeline_mode = #tpu.pipeline_mode<synchronous>, transform_indices = @transform_8, window_bounds = array<i64: 1, 256>}, {pipeline_mode = #tpu.pipeline_mode<synchronous>, transform_indices = @transform_9, window_bounds = array<i64: 256, 128>}, {pipeline_mode = #tpu.pipeline_mode<synchronous>, transform_indices = @transform_10, window_bounds = array<i64: 1, 128>}, {pipeline_mode = #tpu.pipeline_mode<synchronous>, transform_indices = @transform_11, window_bounds = array<i64: 128, 128>}, {pipeline_mode = #tpu.pipeline_mode<synchronous>, transform_indices = @transform_12, window_bounds = array<i64: 1, 128>}, {transform_indices = @transform_13, window_bounds = array<i64: 1, 1, 128>}]} {
    %c0 = arith.constant 0 : index
    %c0_0 = arith.constant 0 : index
    %c0_1 = arith.constant 0 : index
    %0 = vector.load %arg1[%c0, %c0_0, %c0_1] : memref<1x256x32xbf16, #tpu.memory_space<vmem>>, vector<1x256x32xbf16>
    %1 = vector.shape_cast %0 : vector<1x256x32xbf16> to vector<256x32xbf16>
    %c0_2 = arith.constant 0 : index
    %c0_3 = arith.constant 0 : index
    %2 = vector.load %arg2[%c0_2, %c0_3] : memref<32x32xbf16, #tpu.memory_space<vmem>>, vector<32x32xbf16>
    %cst = arith.constant dense<0.000000e+00> : vector<256x32xf32>
    %3 = tpu.matmul %1, %2, %cst {dimension_numbers = #tpu.dot_dimension_numbers<[1], [0], [0], [1], [0, 0, 1, 1], [], []>} : vector<256x32xbf16>, vector<32x32xbf16>, vector<256x32xf32> -> vector<256x32xf32>
    %c0_4 = arith.constant 0 : index
    %c0_5 = arith.constant 0 : index
    %4 = vector.load %arg3[%c0_4, %c0_5] : memref<1x32xf32, #tpu.memory_space<vmem>>, vector<1x32xf32>
    %5 = vector.broadcast %4 : vector<1x32xf32> to vector<256x32xf32>
    %6 = arith.addf %3, %5 : vector<256x32xf32>
    %cst_6 = arith.constant 0.000000e+00 : f32
    %7 = vector.broadcast %cst_6 : f32 to vector<256x32xf32>
    %8 = arith.maximumf %6, %7 : vector<256x32xf32>
    %9 = vector.extract_strided_slice %8 {offsets = [0, 0], sizes = [64, 32], strides = [1, 1]} : vector<256x32xf32> to vector<64x32xf32>
    %10 = vector.extract_strided_slice %8 {offsets = [64, 0], sizes = [64, 32], strides = [1, 1]} : vector<256x32xf32> to vector<64x32xf32>
    %11 = arith.maximumf %9, %10 : vector<64x32xf32>
    %12 = vector.extract_strided_slice %8 {offsets = [128, 0], sizes = [64, 32], strides = [1, 1]} : vector<256x32xf32> to vector<64x32xf32>
    %13 = vector.extract_strided_slice %8 {offsets = [192, 0], sizes = [64, 32], strides = [1, 1]} : vector<256x32xf32> to vector<64x32xf32>
    %14 = arith.maximumf %12, %13 : vector<64x32xf32>
    %15 = arith.maximumf %11, %14 : vector<64x32xf32>
    %cst_7 = arith.constant 0.000000e+00 : f32
    %16 = vector.broadcast %cst_7 : f32 to vector<10x18x32xf32>
    %c0_8 = arith.constant 0 : index
    %c0_9 = arith.constant 0 : index
    %c0_10 = arith.constant 0 : index
    %17 = vector.load %arg15[%c0_8, %c0_9, %c0_10] : memref<10x18x32xf32, #tpu.memory_space<vmem>>, vector<10x18x32xf32>
    tpu.vector_store %arg15[%c0_8, %c0_9, %c0_10], %16 {strides = array<i32>} : memref<10x18x32xf32, #tpu.memory_space<vmem>>, vector<10x18x32xf32>,
    %18 = vector.shape_cast %15 : vector<64x32xf32> to vector<8x8x32xf32>
    %c1 = arith.constant 1 : index
    %c1_11 = arith.constant 1 : index
    %c0_12 = arith.constant 0 : index
    %19 = vector.load %arg15[%c1, %c1_11, %c0_12] : memref<10x18x32xf32, #tpu.memory_space<vmem>>, vector<8x8x32xf32>
    tpu.vector_store %arg15[%c1, %c1_11, %c0_12], %18 {strides = array<i32>} : memref<10x18x32xf32, #tpu.memory_space<vmem>>, vector<8x8x32xf32>,
    %c0_13 = arith.constant 0 : index
    %c0_14 = arith.constant 0 : index
    %c0_15 = arith.constant 0 : index
    %20 = tpu.strided_load %arg15[%c0_13, %c0_14, %c0_15] {strides = array<i32: 2, 2, 1>} : memref<10x18x32xf32, #tpu.memory_space<vmem>>, vector<4x8x32xf32>
    %21 = vector.shape_cast %20 : vector<4x8x32xf32> to vector<32x32xf32>
    %c0_16 = arith.constant 0 : index
    %c1_17 = arith.constant 1 : index
    %c0_18 = arith.constant 0 : index
    %22 = tpu.strided_load %arg15[%c0_16, %c1_17, %c0_18] {strides = array<i32: 2, 2, 1>} : memref<10x18x32xf32, #tpu.memory_space<vmem>>, vector<4x8x32xf32>
    %23 = vector.shape_cast %22 : vector<4x8x32xf32> to vector<32x32xf32>
    %c1_19 = arith.constant 1 : index
    %c0_20 = arith.constant 0 : index
    %c0_21 = arith.constant 0 : index
    %24 = tpu.strided_load %arg15[%c1_19, %c0_20, %c0_21] {strides = array<i32: 2, 2, 1>} : memref<10x18x32xf32, #tpu.memory_space<vmem>>, vector<4x8x32xf32>
    %25 = vector.shape_cast %24 : vector<4x8x32xf32> to vector<32x32xf32>
    %c1_22 = arith.constant 1 : index
    %c1_23 = arith.constant 1 : index
    %c0_24 = arith.constant 0 : index
    %26 = tpu.strided_load %arg15[%c1_22, %c1_23, %c0_24] {strides = array<i32: 2, 2, 1>} : memref<10x18x32xf32, #tpu.memory_space<vmem>>, vector<4x8x32xf32>
    %27 = vector.shape_cast %26 : vector<4x8x32xf32> to vector<32x32xf32>
    %28 = tpu.concatenate %21, %23, %25, %27 in 0 : vector<32x32xf32>, vector<32x32xf32>, vector<32x32xf32>, vector<32x32xf32> -> vector<128x32xf32>
    %29 = arith.truncf %28 : vector<128x32xf32> to vector<128x32xbf16>
    %c0_25 = arith.constant 0 : index
    %c0_26 = arith.constant 0 : index
    %c0_27 = arith.constant 0 : index
    %30 = vector.load %arg4[%c0_25, %c0_26, %c0_27] : memref<9x32x64xbf16, #tpu.memory_space<vmem>>, vector<1x32x64xbf16>
    %31 = vector.shape_cast %30 : vector<1x32x64xbf16> to vector<32x64xbf16>
    %cst_28 = arith.constant dense<0.000000e+00> : vector<128x64xf32>
    %32 = tpu.matmul %29, %31, %cst_28 {dimension_numbers = #tpu.dot_dimension_numbers<[1], [0], [0], [1], [0, 0, 1, 1], [], []>} : vector<128x32xbf16>, vector<32x64xbf16>, vector<128x64xf32> -> vector<128x64xf32>
    %c0_29 = arith.constant 0 : index
    %c1_30 = arith.constant 1 : index
    %c0_31 = arith.constant 0 : index
    %33 = tpu.strided_load %arg15[%c0_29, %c1_30, %c0_31] {strides = array<i32: 2, 2, 1>} : memref<10x18x32xf32, #tpu.memory_space<vmem>>, vector<4x8x32xf32>
    %34 = vector.shape_cast %33 : vector<4x8x32xf32> to vector<32x32xf32>
    %c0_32 = arith.constant 0 : index
    %c2 = arith.constant 2 : index
    %c0_33 = arith.constant 0 : index
    %35 = tpu.strided_load %arg15[%c0_32, %c2, %c0_33] {strides = array<i32: 2, 2, 1>} : memref<10x18x32xf32, #tpu.memory_space<vmem>>, vector<4x8x32xf32>
    %36 = vector.shape_cast %35 : vector<4x8x32xf32> to vector<32x32xf32>
    %c1_34 = arith.constant 1 : index
    %c1_35 = arith.constant 1 : index
    %c0_36 = arith.constant 0 : index
    %37 = tpu.strided_load %arg15[%c1_34, %c1_35, %c0_36] {strides = array<i32: 2, 2, 1>} : memref<10x18x32xf32, #tpu.memory_space<vmem>>, vector<4x8x32xf32>
    %38 = vector.shape_cast %37 : vector<4x8x32xf32> to vector<32x32xf32>
    %c1_37 = arith.constant 1 : index
    %c2_38 = arith.constant 2 : index
    %c0_39 = arith.constant 0 : index
    %39 = tpu.strided_load %arg15[%c1_37, %c2_38, %c0_39] {strides = array<i32: 2, 2, 1>} : memref<10x18x32xf32, #tpu.memory_space<vmem>>, vector<4x8x32xf32>
    %40 = vector.shape_cast %39 : vector<4x8x32xf32> to vector<32x32xf32>
    %41 = tpu.concatenate %34, %36, %38, %40 in 0 : vector<32x32xf32>, vector<32x32xf32>, vector<32x32xf32>, vector<32x32xf32> -> vector<128x32xf32>
    %42 = arith.truncf %41 : vector<128x32xf32> to vector<128x32xbf16>
    %c1_40 = arith.constant 1 : index
    %c0_41 = arith.constant 0 : index
    %c0_42 = arith.constant 0 : index
    %43 = vector.load %arg4[%c1_40, %c0_41, %c0_42] : memref<9x32x64xbf16, #tpu.memory_space<vmem>>, vector<1x32x64xbf16>
    %44 = vector.shape_cast %43 : vector<1x32x64xbf16> to vector<32x64xbf16>
    %cst_43 = arith.constant dense<0.000000e+00> : vector<128x64xf32>
    %45 = tpu.matmul %42, %44, %cst_43 {dimension_numbers = #tpu.dot_dimension_numbers<[1], [0], [0], [1], [0, 0, 1, 1], [], []>} : vector<128x32xbf16>, vector<32x64xbf16>, vector<128x64xf32> -> vector<128x64xf32>
    %46 = arith.addf %32, %45 : vector<128x64xf32>
    %c0_44 = arith.constant 0 : index
    %c2_45 = arith.constant 2 : index
    %c0_46 = arith.constant 0 : index
    %47 = tpu.strided_load %arg15[%c0_44, %c2_45, %c0_46] {strides = array<i32: 2, 2, 1>} : memref<10x18x32xf32, #tpu.memory_space<vmem>>, vector<4x8x32xf32>
    %48 = vector.shape_cast %47 : vector<4x8x32xf32> to vector<32x32xf32>
    %c0_47 = arith.constant 0 : index
    %c3 = arith.constant 3 : index
    %c0_48 = arith.constant 0 : index
    %49 = tpu.strided_load %arg15[%c0_47, %c3, %c0_48] {strides = array<i32: 2, 2, 1>} : memref<10x18x32xf32, #tpu.memory_space<vmem>>, vector<4x8x32xf32>
    %50 = vector.shape_cast %49 : vector<4x8x32xf32> to vector<32x32xf32>
    %c1_49 = arith.constant 1 : index
    %c2_50 = arith.constant 2 : index
    %c0_51 = arith.constant 0 : index
    %51 = tpu.strided_load %arg15[%c1_49, %c2_50, %c0_51] {strides = array<i32: 2, 2, 1>} : memref<10x18x32xf32, #tpu.memory_space<vmem>>, vector<4x8x32xf32>
    %52 = vector.shape_cast %51 : vector<4x8x32xf32> to vector<32x32xf32>
    %c1_52 = arith.constant 1 : index
    %c3_53 = arith.constant 3 : index
    %c0_54 = arith.constant 0 : index
    %53 = tpu.strided_load %arg15[%c1_52, %c3_53, %c0_54] {strides = array<i32: 2, 2, 1>} : memref<10x18x32xf32, #tpu.memory_space<vmem>>, vector<4x8x32xf32>
    %54 = vector.shape_cast %53 : vector<4x8x32xf32> to vector<32x32xf32>
    %55 = tpu.concatenate %48, %50, %52, %54 in 0 : vector<32x32xf32>, vector<32x32xf32>, vector<32x32xf32>, vector<32x32xf32> -> vector<128x32xf32>
    %56 = arith.truncf %55 : vector<128x32xf32> to vector<128x32xbf16>
    %c2_55 = arith.constant 2 : index
    %c0_56 = arith.constant 0 : index
    %c0_57 = arith.constant 0 : index
    %57 = vector.load %arg4[%c2_55, %c0_56, %c0_57] : memref<9x32x64xbf16, #tpu.memory_space<vmem>>, vector<1x32x64xbf16>
    %58 = vector.shape_cast %57 : vector<1x32x64xbf16> to vector<32x64xbf16>
    %cst_58 = arith.constant dense<0.000000e+00> : vector<128x64xf32>
    %59 = tpu.matmul %56, %58, %cst_58 {dimension_numbers = #tpu.dot_dimension_numbers<[1], [0], [0], [1], [0, 0, 1, 1], [], []>} : vector<128x32xbf16>, vector<32x64xbf16>, vector<128x64xf32> -> vector<128x64xf32>
    %60 = arith.addf %46, %59 : vector<128x64xf32>
    %c1_59 = arith.constant 1 : index
    %c0_60 = arith.constant 0 : index
    %c0_61 = arith.constant 0 : index
    %61 = tpu.strided_load %arg15[%c1_59, %c0_60, %c0_61] {strides = array<i32: 2, 2, 1>} : memref<10x18x32xf32, #tpu.memory_space<vmem>>, vector<4x8x32xf32>
    %62 = vector.shape_cast %61 : vector<4x8x32xf32> to vector<32x32xf32>
    %c1_62 = arith.constant 1 : index
    %c1_63 = arith.constant 1 : index
    %c0_64 = arith.constant 0 : index
    %63 = tpu.strided_load %arg15[%c1_62, %c1_63, %c0_64] {strides = array<i32: 2, 2, 1>} : memref<10x18x32xf32, #tpu.memory_space<vmem>>, vector<4x8x32xf32>
    %64 = vector.shape_cast %63 : vector<4x8x32xf32> to vector<32x32xf32>
    %c2_65 = arith.constant 2 : index
    %c0_66 = arith.constant 0 : index
    %c0_67 = arith.constant 0 : index
    %65 = tpu.strided_load %arg15[%c2_65, %c0_66, %c0_67] {strides = array<i32: 2, 2, 1>} : memref<10x18x32xf32, #tpu.memory_space<vmem>>, vector<4x8x32xf32>
    %66 = vector.shape_cast %65 : vector<4x8x32xf32> to vector<32x32xf32>
    %c2_68 = arith.constant 2 : index
    %c1_69 = arith.constant 1 : index
    %c0_70 = arith.constant 0 : index
    %67 = tpu.strided_load %arg15[%c2_68, %c1_69, %c0_70] {strides = array<i32: 2, 2, 1>} : memref<10x18x32xf32, #tpu.memory_space<vmem>>, vector<4x8x32xf32>
    %68 = vector.shape_cast %67 : vector<4x8x32xf32> to vector<32x32xf32>
    %69 = tpu.concatenate %62, %64, %66, %68 in 0 : vector<32x32xf32>, vector<32x32xf32>, vector<32x32xf32>, vector<32x32xf32> -> vector<128x32xf32>
    %70 = arith.truncf %69 : vector<128x32xf32> to vector<128x32xbf16>
    %c3_71 = arith.constant 3 : index
    %c0_72 = arith.constant 0 : index
    %c0_73 = arith.constant 0 : index
    %71 = vector.load %arg4[%c3_71, %c0_72, %c0_73] : memref<9x32x64xbf16, #tpu.memory_space<vmem>>, vector<1x32x64xbf16>
    %72 = vector.shape_cast %71 : vector<1x32x64xbf16> to vector<32x64xbf16>
    %cst_74 = arith.constant dense<0.000000e+00> : vector<128x64xf32>
    %73 = tpu.matmul %70, %72, %cst_74 {dimension_numbers = #tpu.dot_dimension_numbers<[1], [0], [0], [1], [0, 0, 1, 1], [], []>} : vector<128x32xbf16>, vector<32x64xbf16>, vector<128x64xf32> -> vector<128x64xf32>
    %74 = arith.addf %60, %73 : vector<128x64xf32>
    %c1_75 = arith.constant 1 : index
    %c1_76 = arith.constant 1 : index
    %c0_77 = arith.constant 0 : index
    %75 = tpu.strided_load %arg15[%c1_75, %c1_76, %c0_77] {strides = array<i32: 2, 2, 1>} : memref<10x18x32xf32, #tpu.memory_space<vmem>>, vector<4x8x32xf32>
    %76 = vector.shape_cast %75 : vector<4x8x32xf32> to vector<32x32xf32>
    %c1_78 = arith.constant 1 : index
    %c2_79 = arith.constant 2 : index
    %c0_80 = arith.constant 0 : index
    %77 = tpu.strided_load %arg15[%c1_78, %c2_79, %c0_80] {strides = array<i32: 2, 2, 1>} : memref<10x18x32xf32, #tpu.memory_space<vmem>>, vector<4x8x32xf32>
    %78 = vector.shape_cast %77 : vector<4x8x32xf32> to vector<32x32xf32>
    %c2_81 = arith.constant 2 : index
    %c1_82 = arith.constant 1 : index
    %c0_83 = arith.constant 0 : index
    %79 = tpu.strided_load %arg15[%c2_81, %c1_82, %c0_83] {strides = array<i32: 2, 2, 1>} : memref<10x18x32xf32, #tpu.memory_space<vmem>>, vector<4x8x32xf32>
    %80 = vector.shape_cast %79 : vector<4x8x32xf32> to vector<32x32xf32>
    %c2_84 = arith.constant 2 : index
    %c2_85 = arith.constant 2 : index
    %c0_86 = arith.constant 0 : index
    %81 = tpu.strided_load %arg15[%c2_84, %c2_85, %c0_86] {strides = array<i32: 2, 2, 1>} : memref<10x18x32xf32, #tpu.memory_space<vmem>>, vector<4x8x32xf32>
    %82 = vector.shape_cast %81 : vector<4x8x32xf32> to vector<32x32xf32>
    %83 = tpu.concatenate %76, %78, %80, %82 in 0 : vector<32x32xf32>, vector<32x32xf32>, vector<32x32xf32>, vector<32x32xf32> -> vector<128x32xf32>
    %84 = arith.truncf %83 : vector<128x32xf32> to vector<128x32xbf16>
    %c4 = arith.constant 4 : index
    %c0_87 = arith.constant 0 : index
    %c0_88 = arith.constant 0 : index
    %85 = vector.load %arg4[%c4, %c0_87, %c0_88] : memref<9x32x64xbf16, #tpu.memory_space<vmem>>, vector<1x32x64xbf16>
    %86 = vector.shape_cast %85 : vector<1x32x64xbf16> to vector<32x64xbf16>
    %cst_89 = arith.constant dense<0.000000e+00> : vector<128x64xf32>
    %87 = tpu.matmul %84, %86, %cst_89 {dimension_numbers = #tpu.dot_dimension_numbers<[1], [0], [0], [1], [0, 0, 1, 1], [], []>} : vector<128x32xbf16>, vector<32x64xbf16>, vector<128x64xf32> -> vector<128x64xf32>
    %88 = arith.addf %74, %87 : vector<128x64xf32>
    %c1_90 = arith.constant 1 : index
    %c2_91 = arith.constant 2 : index
    %c0_92 = arith.constant 0 : index
    %89 = tpu.strided_load %arg15[%c1_90, %c2_91, %c0_92] {strides = array<i32: 2, 2, 1>} : memref<10x18x32xf32, #tpu.memory_space<vmem>>, vector<4x8x32xf32>
    %90 = vector.shape_cast %89 : vector<4x8x32xf32> to vector<32x32xf32>
    %c1_93 = arith.constant 1 : index
    %c3_94 = arith.constant 3 : index
    %c0_95 = arith.constant 0 : index
    %91 = tpu.strided_load %arg15[%c1_93, %c3_94, %c0_95] {strides = array<i32: 2, 2, 1>} : memref<10x18x32xf32, #tpu.memory_space<vmem>>, vector<4x8x32xf32>
    %92 = vector.shape_cast %91 : vector<4x8x32xf32> to vector<32x32xf32>
    %c2_96 = arith.constant 2 : index
    %c2_97 = arith.constant 2 : index
    %c0_98 = arith.constant 0 : index
    %93 = tpu.strided_load %arg15[%c2_96, %c2_97, %c0_98] {strides = array<i32: 2, 2, 1>} : memref<10x18x32xf32, #tpu.memory_space<vmem>>, vector<4x8x32xf32>
    %94 = vector.shape_cast %93 : vector<4x8x32xf32> to vector<32x32xf32>
    %c2_99 = arith.constant 2 : index
    %c3_100 = arith.constant 3 : index
    %c0_101 = arith.constant 0 : index
    %95 = tpu.strided_load %arg15[%c2_99, %c3_100, %c0_101] {strides = array<i32: 2, 2, 1>} : memref<10x18x32xf32, #tpu.memory_space<vmem>>, vector<4x8x32xf32>
    %96 = vector.shape_cast %95 : vector<4x8x32xf32> to vector<32x32xf32>
    %97 = tpu.concatenate %90, %92, %94, %96 in 0 : vector<32x32xf32>, vector<32x32xf32>, vector<32x32xf32>, vector<32x32xf32> -> vector<128x32xf32>
    %98 = arith.truncf %97 : vector<128x32xf32> to vector<128x32xbf16>
    %c5 = arith.constant 5 : index
    %c0_102 = arith.constant 0 : index
    %c0_103 = arith.constant 0 : index
    %99 = vector.load %arg4[%c5, %c0_102, %c0_103] : memref<9x32x64xbf16, #tpu.memory_space<vmem>>, vector<1x32x64xbf16>
    %100 = vector.shape_cast %99 : vector<1x32x64xbf16> to vector<32x64xbf16>
    %cst_104 = arith.constant dense<0.000000e+00> : vector<128x64xf32>
    %101 = tpu.matmul %98, %100, %cst_104 {dimension_numbers = #tpu.dot_dimension_numbers<[1], [0], [0], [1], [0, 0, 1, 1], [], []>} : vector<128x32xbf16>, vector<32x64xbf16>, vector<128x64xf32> -> vector<128x64xf32>
    %102 = arith.addf %88, %101 : vector<128x64xf32>
    %c2_105 = arith.constant 2 : index
    %c0_106 = arith.constant 0 : index
    %c0_107 = arith.constant 0 : index
    %103 = tpu.strided_load %arg15[%c2_105, %c0_106, %c0_107] {strides = array<i32: 2, 2, 1>} : memref<10x18x32xf32, #tpu.memory_space<vmem>>, vector<4x8x32xf32>
    %104 = vector.shape_cast %103 : vector<4x8x32xf32> to vector<32x32xf32>
    %c2_108 = arith.constant 2 : index
    %c1_109 = arith.constant 1 : index
    %c0_110 = arith.constant 0 : index
    %105 = tpu.strided_load %arg15[%c2_108, %c1_109, %c0_110] {strides = array<i32: 2, 2, 1>} : memref<10x18x32xf32, #tpu.memory_space<vmem>>, vector<4x8x32xf32>
    %106 = vector.shape_cast %105 : vector<4x8x32xf32> to vector<32x32xf32>
    %c3_111 = arith.constant 3 : index
    %c0_112 = arith.constant 0 : index
    %c0_113 = arith.constant 0 : index
    %107 = tpu.strided_load %arg15[%c3_111, %c0_112, %c0_113] {strides = array<i32: 2, 2, 1>} : memref<10x18x32xf32, #tpu.memory_space<vmem>>, vector<4x8x32xf32>
    %108 = vector.shape_cast %107 : vector<4x8x32xf32> to vector<32x32xf32>
    %c3_114 = arith.constant 3 : index
    %c1_115 = arith.constant 1 : index
    %c0_116 = arith.constant 0 : index
    %109 = tpu.strided_load %arg15[%c3_114, %c1_115, %c0_116] {strides = array<i32: 2, 2, 1>} : memref<10x18x32xf32, #tpu.memory_space<vmem>>, vector<4x8x32xf32>
    %110 = vector.shape_cast %109 : vector<4x8x32xf32> to vector<32x32xf32>
    %111 = tpu.concatenate %104, %106, %108, %110 in 0 : vector<32x32xf32>, vector<32x32xf32>, vector<32x32xf32>, vector<32x32xf32> -> vector<128x32xf32>
    %112 = arith.truncf %111 : vector<128x32xf32> to vector<128x32xbf16>
    %c6 = arith.constant 6 : index
    %c0_117 = arith.constant 0 : index
    %c0_118 = arith.constant 0 : index
    %113 = vector.load %arg4[%c6, %c0_117, %c0_118] : memref<9x32x64xbf16, #tpu.memory_space<vmem>>, vector<1x32x64xbf16>
    %114 = vector.shape_cast %113 : vector<1x32x64xbf16> to vector<32x64xbf16>
    %cst_119 = arith.constant dense<0.000000e+00> : vector<128x64xf32>
    %115 = tpu.matmul %112, %114, %cst_119 {dimension_numbers = #tpu.dot_dimension_numbers<[1], [0], [0], [1], [0, 0, 1, 1], [], []>} : vector<128x32xbf16>, vector<32x64xbf16>, vector<128x64xf32> -> vector<128x64xf32>
    %116 = arith.addf %102, %115 : vector<128x64xf32>
    %c2_120 = arith.constant 2 : index
    %c1_121 = arith.constant 1 : index
    %c0_122 = arith.constant 0 : index
    %117 = tpu.strided_load %arg15[%c2_120, %c1_121, %c0_122] {strides = array<i32: 2, 2, 1>} : memref<10x18x32xf32, #tpu.memory_space<vmem>>, vector<4x8x32xf32>
    %118 = vector.shape_cast %117 : vector<4x8x32xf32> to vector<32x32xf32>
    %c2_123 = arith.constant 2 : index
    %c2_124 = arith.constant 2 : index
    %c0_125 = arith.constant 0 : index
    %119 = tpu.strided_load %arg15[%c2_123, %c2_124, %c0_125] {strides = array<i32: 2, 2, 1>} : memref<10x18x32xf32, #tpu.memory_space<vmem>>, vector<4x8x32xf32>
    %120 = vector.shape_cast %119 : vector<4x8x32xf32> to vector<32x32xf32>
    %c3_126 = arith.constant 3 : index
    %c1_127 = arith.constant 1 : index
    %c0_128 = arith.constant 0 : index
    %121 = tpu.strided_load %arg15[%c3_126, %c1_127, %c0_128] {strides = array<i32: 2, 2, 1>} : memref<10x18x32xf32, #tpu.memory_space<vmem>>, vector<4x8x32xf32>
    %122 = vector.shape_cast %121 : vector<4x8x32xf32> to vector<32x32xf32>
    %c3_129 = arith.constant 3 : index
    %c2_130 = arith.constant 2 : index
    %c0_131 = arith.constant 0 : index
    %123 = tpu.strided_load %arg15[%c3_129, %c2_130, %c0_131] {strides = array<i32: 2, 2, 1>} : memref<10x18x32xf32, #tpu.memory_space<vmem>>, vector<4x8x32xf32>
    %124 = vector.shape_cast %123 : vector<4x8x32xf32> to vector<32x32xf32>
    %125 = tpu.concatenate %118, %120, %122, %124 in 0 : vector<32x32xf32>, vector<32x32xf32>, vector<32x32xf32>, vector<32x32xf32> -> vector<128x32xf32>
    %126 = arith.truncf %125 : vector<128x32xf32> to vector<128x32xbf16>
    %c7 = arith.constant 7 : index
    %c0_132 = arith.constant 0 : index
    %c0_133 = arith.constant 0 : index
    %127 = vector.load %arg4[%c7, %c0_132, %c0_133] : memref<9x32x64xbf16, #tpu.memory_space<vmem>>, vector<1x32x64xbf16>
    %128 = vector.shape_cast %127 : vector<1x32x64xbf16> to vector<32x64xbf16>
    %cst_134 = arith.constant dense<0.000000e+00> : vector<128x64xf32>
    %129 = tpu.matmul %126, %128, %cst_134 {dimension_numbers = #tpu.dot_dimension_numbers<[1], [0], [0], [1], [0, 0, 1, 1], [], []>} : vector<128x32xbf16>, vector<32x64xbf16>, vector<128x64xf32> -> vector<128x64xf32>
    %130 = arith.addf %116, %129 : vector<128x64xf32>
    %c2_135 = arith.constant 2 : index
    %c2_136 = arith.constant 2 : index
    %c0_137 = arith.constant 0 : index
    %131 = tpu.strided_load %arg15[%c2_135, %c2_136, %c0_137] {strides = array<i32: 2, 2, 1>} : memref<10x18x32xf32, #tpu.memory_space<vmem>>, vector<4x8x32xf32>
    %132 = vector.shape_cast %131 : vector<4x8x32xf32> to vector<32x32xf32>
    %c2_138 = arith.constant 2 : index
    %c3_139 = arith.constant 3 : index
    %c0_140 = arith.constant 0 : index
    %133 = tpu.strided_load %arg15[%c2_138, %c3_139, %c0_140] {strides = array<i32: 2, 2, 1>} : memref<10x18x32xf32, #tpu.memory_space<vmem>>, vector<4x8x32xf32>
    %134 = vector.shape_cast %133 : vector<4x8x32xf32> to vector<32x32xf32>
    %c3_141 = arith.constant 3 : index
    %c2_142 = arith.constant 2 : index
    %c0_143 = arith.constant 0 : index
    %135 = tpu.strided_load %arg15[%c3_141, %c2_142, %c0_143] {strides = array<i32: 2, 2, 1>} : memref<10x18x32xf32, #tpu.memory_space<vmem>>, vector<4x8x32xf32>
    %136 = vector.shape_cast %135 : vector<4x8x32xf32> to vector<32x32xf32>
    %c3_144 = arith.constant 3 : index
    %c3_145 = arith.constant 3 : index
    %c0_146 = arith.constant 0 : index
    %137 = tpu.strided_load %arg15[%c3_144, %c3_145, %c0_146] {strides = array<i32: 2, 2, 1>} : memref<10x18x32xf32, #tpu.memory_space<vmem>>, vector<4x8x32xf32>
    %138 = vector.shape_cast %137 : vector<4x8x32xf32> to vector<32x32xf32>
    %139 = tpu.concatenate %132, %134, %136, %138 in 0 : vector<32x32xf32>, vector<32x32xf32>, vector<32x32xf32>, vector<32x32xf32> -> vector<128x32xf32>
    %140 = arith.truncf %139 : vector<128x32xf32> to vector<128x32xbf16>
    %c8 = arith.constant 8 : index
    %c0_147 = arith.constant 0 : index
    %c0_148 = arith.constant 0 : index
    %141 = vector.load %arg4[%c8, %c0_147, %c0_148] : memref<9x32x64xbf16, #tpu.memory_space<vmem>>, vector<1x32x64xbf16>
    %142 = vector.shape_cast %141 : vector<1x32x64xbf16> to vector<32x64xbf16>
    %cst_149 = arith.constant dense<0.000000e+00> : vector<128x64xf32>
    %143 = tpu.matmul %140, %142, %cst_149 {dimension_numbers = #tpu.dot_dimension_numbers<[1], [0], [0], [1], [0, 0, 1, 1], [], []>} : vector<128x32xbf16>, vector<32x64xbf16>, vector<128x64xf32> -> vector<128x64xf32>
    %144 = arith.addf %130, %143 : vector<128x64xf32>
    %c0_150 = arith.constant 0 : index
    %c0_151 = arith.constant 0 : index
    %145 = vector.load %arg5[%c0_150, %c0_151] : memref<1x64xf32, #tpu.memory_space<vmem>>, vector<1x64xf32>
    %146 = vector.broadcast %145 : vector<1x64xf32> to vector<128x64xf32>
    %147 = arith.addf %144, %146 : vector<128x64xf32>
    %cst_152 = arith.constant 0.000000e+00 : f32
    %148 = vector.broadcast %cst_152 : f32 to vector<128x64xf32>
    %149 = arith.maximumf %147, %148 : vector<128x64xf32>
    %150 = vector.extract_strided_slice %149 {offsets = [0, 0], sizes = [32, 64], strides = [1, 1]} : vector<128x64xf32> to vector<32x64xf32>
    %151 = vector.extract_strided_slice %149 {offsets = [32, 0], sizes = [32, 64], strides = [1, 1]} : vector<128x64xf32> to vector<32x64xf32>
    %152 = arith.maximumf %150, %151 : vector<32x64xf32>
    %153 = vector.extract_strided_slice %149 {offsets = [64, 0], sizes = [32, 64], strides = [1, 1]} : vector<128x64xf32> to vector<32x64xf32>
    %154 = vector.extract_strided_slice %149 {offsets = [96, 0], sizes = [32, 64], strides = [1, 1]} : vector<128x64xf32> to vector<32x64xf32>
    %155 = arith.maximumf %153, %154 : vector<32x64xf32>
    %156 = arith.maximumf %152, %155 : vector<32x64xf32>
    %cst_153 = arith.constant 0.000000e+00 : f32
    %157 = vector.broadcast %cst_153 : f32 to vector<6x18x64xf32>
    %c0_154 = arith.constant 0 : index
    %c0_155 = arith.constant 0 : index
    %c0_156 = arith.constant 0 : index
    %158 = vector.load %arg16[%c0_154, %c0_155, %c0_156] : memref<6x18x64xf32, #tpu.memory_space<vmem>>, vector<6x18x64xf32>
    tpu.vector_store %arg16[%c0_154, %c0_155, %c0_156], %157 {strides = array<i32>} : memref<6x18x64xf32, #tpu.memory_space<vmem>>, vector<6x18x64xf32>,
    %159 = vector.shape_cast %156 : vector<32x64xf32> to vector<4x8x64xf32>
    %160 = vector.extract_strided_slice %159 {offsets = [0, 0, 0], sizes = [4, 4, 64], strides = [1, 1, 1]} : vector<4x8x64xf32> to vector<4x4x64xf32>
    %c1_157 = arith.constant 1 : index
    %c1_158 = arith.constant 1 : index
    %c0_159 = arith.constant 0 : index
    %161 = vector.load %arg16[%c1_157, %c1_158, %c0_159] : memref<6x18x64xf32, #tpu.memory_space<vmem>>, vector<4x4x64xf32>
    tpu.vector_store %arg16[%c1_157, %c1_158, %c0_159], %160 {strides = array<i32>} : memref<6x18x64xf32, #tpu.memory_space<vmem>>, vector<4x4x64xf32>,
    %c0_160 = arith.constant 0 : index
    %c0_161 = arith.constant 0 : index
    %c0_162 = arith.constant 0 : index
    %162 = tpu.strided_load %arg16[%c0_160, %c0_161, %c0_162] {strides = array<i32: 2, 2, 1>} : memref<6x18x64xf32, #tpu.memory_space<vmem>>, vector<2x8x64xf32>
    %163 = vector.shape_cast %162 : vector<2x8x64xf32> to vector<16x64xf32>
    %c0_163 = arith.constant 0 : index
    %c1_164 = arith.constant 1 : index
    %c0_165 = arith.constant 0 : index
    %164 = tpu.strided_load %arg16[%c0_163, %c1_164, %c0_165] {strides = array<i32: 2, 2, 1>} : memref<6x18x64xf32, #tpu.memory_space<vmem>>, vector<2x8x64xf32>
    %165 = vector.shape_cast %164 : vector<2x8x64xf32> to vector<16x64xf32>
    %c1_166 = arith.constant 1 : index
    %c0_167 = arith.constant 0 : index
    %c0_168 = arith.constant 0 : index
    %166 = tpu.strided_load %arg16[%c1_166, %c0_167, %c0_168] {strides = array<i32: 2, 2, 1>} : memref<6x18x64xf32, #tpu.memory_space<vmem>>, vector<2x8x64xf32>
    %167 = vector.shape_cast %166 : vector<2x8x64xf32> to vector<16x64xf32>
    %c1_169 = arith.constant 1 : index
    %c1_170 = arith.constant 1 : index
    %c0_171 = arith.constant 0 : index
    %168 = tpu.strided_load %arg16[%c1_169, %c1_170, %c0_171] {strides = array<i32: 2, 2, 1>} : memref<6x18x64xf32, #tpu.memory_space<vmem>>, vector<2x8x64xf32>
    %169 = vector.shape_cast %168 : vector<2x8x64xf32> to vector<16x64xf32>
    %170 = tpu.concatenate %163, %165, %167, %169 in 0 : vector<16x64xf32>, vector<16x64xf32>, vector<16x64xf32>, vector<16x64xf32> -> vector<64x64xf32>
    %171 = arith.truncf %170 : vector<64x64xf32> to vector<64x64xbf16>
    %c0_172 = arith.constant 0 : index
    %c0_173 = arith.constant 0 : index
    %c0_174 = arith.constant 0 : index
    %172 = vector.load %arg6[%c0_172, %c0_173, %c0_174] : memref<9x64x128xbf16, #tpu.memory_space<vmem>>, vector<1x64x128xbf16>
    %173 = vector.shape_cast %172 : vector<1x64x128xbf16> to vector<64x128xbf16>
    %cst_175 = arith.constant dense<0.000000e+00> : vector<64x128xf32>
    %174 = tpu.matmul %171, %173, %cst_175 {dimension_numbers = #tpu.dot_dimension_numbers<[1], [0], [0], [1], [0, 0, 1, 1], [], []>} : vector<64x64xbf16>, vector<64x128xbf16>, vector<64x128xf32> -> vector<64x128xf32>
    %c0_176 = arith.constant 0 : index
    %c1_177 = arith.constant 1 : index
    %c0_178 = arith.constant 0 : index
    %175 = tpu.strided_load %arg16[%c0_176, %c1_177, %c0_178] {strides = array<i32: 2, 2, 1>} : memref<6x18x64xf32, #tpu.memory_space<vmem>>, vector<2x8x64xf32>
    %176 = vector.shape_cast %175 : vector<2x8x64xf32> to vector<16x64xf32>
    %c0_179 = arith.constant 0 : index
    %c2_180 = arith.constant 2 : index
    %c0_181 = arith.constant 0 : index
    %177 = tpu.strided_load %arg16[%c0_179, %c2_180, %c0_181] {strides = array<i32: 2, 2, 1>} : memref<6x18x64xf32, #tpu.memory_space<vmem>>, vector<2x8x64xf32>
    %178 = vector.shape_cast %177 : vector<2x8x64xf32> to vector<16x64xf32>
    %c1_182 = arith.constant 1 : index
    %c1_183 = arith.constant 1 : index
    %c0_184 = arith.constant 0 : index
    %179 = tpu.strided_load %arg16[%c1_182, %c1_183, %c0_184] {strides = array<i32: 2, 2, 1>} : memref<6x18x64xf32, #tpu.memory_space<vmem>>, vector<2x8x64xf32>
    %180 = vector.shape_cast %179 : vector<2x8x64xf32> to vector<16x64xf32>
    %c1_185 = arith.constant 1 : index
    %c2_186 = arith.constant 2 : index
    %c0_187 = arith.constant 0 : index
    %181 = tpu.strided_load %arg16[%c1_185, %c2_186, %c0_187] {strides = array<i32: 2, 2, 1>} : memref<6x18x64xf32, #tpu.memory_space<vmem>>, vector<2x8x64xf32>
    %182 = vector.shape_cast %181 : vector<2x8x64xf32> to vector<16x64xf32>
    %183 = tpu.concatenate %176, %178, %180, %182 in 0 : vector<16x64xf32>, vector<16x64xf32>, vector<16x64xf32>, vector<16x64xf32> -> vector<64x64xf32>
    %184 = arith.truncf %183 : vector<64x64xf32> to vector<64x64xbf16>
    %c1_188 = arith.constant 1 : index
    %c0_189 = arith.constant 0 : index
    %c0_190 = arith.constant 0 : index
    %185 = vector.load %arg6[%c1_188, %c0_189, %c0_190] : memref<9x64x128xbf16, #tpu.memory_space<vmem>>, vector<1x64x128xbf16>
    %186 = vector.shape_cast %185 : vector<1x64x128xbf16> to vector<64x128xbf16>
    %cst_191 = arith.constant dense<0.000000e+00> : vector<64x128xf32>
    %187 = tpu.matmul %184, %186, %cst_191 {dimension_numbers = #tpu.dot_dimension_numbers<[1], [0], [0], [1], [0, 0, 1, 1], [], []>} : vector<64x64xbf16>, vector<64x128xbf16>, vector<64x128xf32> -> vector<64x128xf32>
    %188 = arith.addf %174, %187 : vector<64x128xf32>
    %c0_192 = arith.constant 0 : index
    %c2_193 = arith.constant 2 : index
    %c0_194 = arith.constant 0 : index
    %189 = tpu.strided_load %arg16[%c0_192, %c2_193, %c0_194] {strides = array<i32: 2, 2, 1>} : memref<6x18x64xf32, #tpu.memory_space<vmem>>, vector<2x8x64xf32>
    %190 = vector.shape_cast %189 : vector<2x8x64xf32> to vector<16x64xf32>
    %c0_195 = arith.constant 0 : index
    %c3_196 = arith.constant 3 : index
    %c0_197 = arith.constant 0 : index
    %191 = tpu.strided_load %arg16[%c0_195, %c3_196, %c0_197] {strides = array<i32: 2, 2, 1>} : memref<6x18x64xf32, #tpu.memory_space<vmem>>, vector<2x8x64xf32>
    %192 = vector.shape_cast %191 : vector<2x8x64xf32> to vector<16x64xf32>
    %c1_198 = arith.constant 1 : index
    %c2_199 = arith.constant 2 : index
    %c0_200 = arith.constant 0 : index
    %193 = tpu.strided_load %arg16[%c1_198, %c2_199, %c0_200] {strides = array<i32: 2, 2, 1>} : memref<6x18x64xf32, #tpu.memory_space<vmem>>, vector<2x8x64xf32>
    %194 = vector.shape_cast %193 : vector<2x8x64xf32> to vector<16x64xf32>
    %c1_201 = arith.constant 1 : index
    %c3_202 = arith.constant 3 : index
    %c0_203 = arith.constant 0 : index
    %195 = tpu.strided_load %arg16[%c1_201, %c3_202, %c0_203] {strides = array<i32: 2, 2, 1>} : memref<6x18x64xf32, #tpu.memory_space<vmem>>, vector<2x8x64xf32>
    %196 = vector.shape_cast %195 : vector<2x8x64xf32> to vector<16x64xf32>
    %197 = tpu.concatenate %190, %192, %194, %196 in 0 : vector<16x64xf32>, vector<16x64xf32>, vector<16x64xf32>, vector<16x64xf32> -> vector<64x64xf32>
    %198 = arith.truncf %197 : vector<64x64xf32> to vector<64x64xbf16>
    %c2_204 = arith.constant 2 : index
    %c0_205 = arith.constant 0 : index
    %c0_206 = arith.constant 0 : index
    %199 = vector.load %arg6[%c2_204, %c0_205, %c0_206] : memref<9x64x128xbf16, #tpu.memory_space<vmem>>, vector<1x64x128xbf16>
    %200 = vector.shape_cast %199 : vector<1x64x128xbf16> to vector<64x128xbf16>
    %cst_207 = arith.constant dense<0.000000e+00> : vector<64x128xf32>
    %201 = tpu.matmul %198, %200, %cst_207 {dimension_numbers = #tpu.dot_dimension_numbers<[1], [0], [0], [1], [0, 0, 1, 1], [], []>} : vector<64x64xbf16>, vector<64x128xbf16>, vector<64x128xf32> -> vector<64x128xf32>
    %202 = arith.addf %188, %201 : vector<64x128xf32>
    %c1_208 = arith.constant 1 : index
    %c0_209 = arith.constant 0 : index
    %c0_210 = arith.constant 0 : index
    %203 = tpu.strided_load %arg16[%c1_208, %c0_209, %c0_210] {strides = array<i32: 2, 2, 1>} : memref<6x18x64xf32, #tpu.memory_space<vmem>>, vector<2x8x64xf32>
    %204 = vector.shape_cast %203 : vector<2x8x64xf32> to vector<16x64xf32>
    %c1_211 = arith.constant 1 : index
    %c1_212 = arith.constant 1 : index
    %c0_213 = arith.constant 0 : index
    %205 = tpu.strided_load %arg16[%c1_211, %c1_212, %c0_213] {strides = array<i32: 2, 2, 1>} : memref<6x18x64xf32, #tpu.memory_space<vmem>>, vector<2x8x64xf32>
    %206 = vector.shape_cast %205 : vector<2x8x64xf32> to vector<16x64xf32>
    %c2_214 = arith.constant 2 : index
    %c0_215 = arith.constant 0 : index
    %c0_216 = arith.constant 0 : index
    %207 = tpu.strided_load %arg16[%c2_214, %c0_215, %c0_216] {strides = array<i32: 2, 2, 1>} : memref<6x18x64xf32, #tpu.memory_space<vmem>>, vector<2x8x64xf32>
    %208 = vector.shape_cast %207 : vector<2x8x64xf32> to vector<16x64xf32>
    %c2_217 = arith.constant 2 : index
    %c1_218 = arith.constant 1 : index
    %c0_219 = arith.constant 0 : index
    %209 = tpu.strided_load %arg16[%c2_217, %c1_218, %c0_219] {strides = array<i32: 2, 2, 1>} : memref<6x18x64xf32, #tpu.memory_space<vmem>>, vector<2x8x64xf32>
    %210 = vector.shape_cast %209 : vector<2x8x64xf32> to vector<16x64xf32>
    %211 = tpu.concatenate %204, %206, %208, %210 in 0 : vector<16x64xf32>, vector<16x64xf32>, vector<16x64xf32>, vector<16x64xf32> -> vector<64x64xf32>
    %212 = arith.truncf %211 : vector<64x64xf32> to vector<64x64xbf16>
    %c3_220 = arith.constant 3 : index
    %c0_221 = arith.constant 0 : index
    %c0_222 = arith.constant 0 : index
    %213 = vector.load %arg6[%c3_220, %c0_221, %c0_222] : memref<9x64x128xbf16, #tpu.memory_space<vmem>>, vector<1x64x128xbf16>
    %214 = vector.shape_cast %213 : vector<1x64x128xbf16> to vector<64x128xbf16>
    %cst_223 = arith.constant dense<0.000000e+00> : vector<64x128xf32>
    %215 = tpu.matmul %212, %214, %cst_223 {dimension_numbers = #tpu.dot_dimension_numbers<[1], [0], [0], [1], [0, 0, 1, 1], [], []>} : vector<64x64xbf16>, vector<64x128xbf16>, vector<64x128xf32> -> vector<64x128xf32>
    %216 = arith.addf %202, %215 : vector<64x128xf32>
    %c1_224 = arith.constant 1 : index
    %c1_225 = arith.constant 1 : index
    %c0_226 = arith.constant 0 : index
    %217 = tpu.strided_load %arg16[%c1_224, %c1_225, %c0_226] {strides = array<i32: 2, 2, 1>} : memref<6x18x64xf32, #tpu.memory_space<vmem>>, vector<2x8x64xf32>
    %218 = vector.shape_cast %217 : vector<2x8x64xf32> to vector<16x64xf32>
    %c1_227 = arith.constant 1 : index
    %c2_228 = arith.constant 2 : index
    %c0_229 = arith.constant 0 : index
    %219 = tpu.strided_load %arg16[%c1_227, %c2_228, %c0_229] {strides = array<i32: 2, 2, 1>} : memref<6x18x64xf32, #tpu.memory_space<vmem>>, vector<2x8x64xf32>
    %220 = vector.shape_cast %219 : vector<2x8x64xf32> to vector<16x64xf32>
    %c2_230 = arith.constant 2 : index
    %c1_231 = arith.constant 1 : index
    %c0_232 = arith.constant 0 : index
    %221 = tpu.strided_load %arg16[%c2_230, %c1_231, %c0_232] {strides = array<i32: 2, 2, 1>} : memref<6x18x64xf32, #tpu.memory_space<vmem>>, vector<2x8x64xf32>
    %222 = vector.shape_cast %221 : vector<2x8x64xf32> to vector<16x64xf32>
    %c2_233 = arith.constant 2 : index
    %c2_234 = arith.constant 2 : index
    %c0_235 = arith.constant 0 : index
    %223 = tpu.strided_load %arg16[%c2_233, %c2_234, %c0_235] {strides = array<i32: 2, 2, 1>} : memref<6x18x64xf32, #tpu.memory_space<vmem>>, vector<2x8x64xf32>
    %224 = vector.shape_cast %223 : vector<2x8x64xf32> to vector<16x64xf32>
    %225 = tpu.concatenate %218, %220, %222, %224 in 0 : vector<16x64xf32>, vector<16x64xf32>, vector<16x64xf32>, vector<16x64xf32> -> vector<64x64xf32>
    %226 = arith.truncf %225 : vector<64x64xf32> to vector<64x64xbf16>
    %c4_236 = arith.constant 4 : index
    %c0_237 = arith.constant 0 : index
    %c0_238 = arith.constant 0 : index
    %227 = vector.load %arg6[%c4_236, %c0_237, %c0_238] : memref<9x64x128xbf16, #tpu.memory_space<vmem>>, vector<1x64x128xbf16>
    %228 = vector.shape_cast %227 : vector<1x64x128xbf16> to vector<64x128xbf16>
    %cst_239 = arith.constant dense<0.000000e+00> : vector<64x128xf32>
    %229 = tpu.matmul %226, %228, %cst_239 {dimension_numbers = #tpu.dot_dimension_numbers<[1], [0], [0], [1], [0, 0, 1, 1], [], []>} : vector<64x64xbf16>, vector<64x128xbf16>, vector<64x128xf32> -> vector<64x128xf32>
    %230 = arith.addf %216, %229 : vector<64x128xf32>
    %c1_240 = arith.constant 1 : index
    %c2_241 = arith.constant 2 : index
    %c0_242 = arith.constant 0 : index
    %231 = tpu.strided_load %arg16[%c1_240, %c2_241, %c0_242] {strides = array<i32: 2, 2, 1>} : memref<6x18x64xf32, #tpu.memory_space<vmem>>, vector<2x8x64xf32>
    %232 = vector.shape_cast %231 : vector<2x8x64xf32> to vector<16x64xf32>
    %c1_243 = arith.constant 1 : index
    %c3_244 = arith.constant 3 : index
    %c0_245 = arith.constant 0 : index
    %233 = tpu.strided_load %arg16[%c1_243, %c3_244, %c0_245] {strides = array<i32: 2, 2, 1>} : memref<6x18x64xf32, #tpu.memory_space<vmem>>, vector<2x8x64xf32>
    %234 = vector.shape_cast %233 : vector<2x8x64xf32> to vector<16x64xf32>
    %c2_246 = arith.constant 2 : index
    %c2_247 = arith.constant 2 : index
    %c0_248 = arith.constant 0 : index
    %235 = tpu.strided_load %arg16[%c2_246, %c2_247, %c0_248] {strides = array<i32: 2, 2, 1>} : memref<6x18x64xf32, #tpu.memory_space<vmem>>, vector<2x8x64xf32>
    %236 = vector.shape_cast %235 : vector<2x8x64xf32> to vector<16x64xf32>
    %c2_249 = arith.constant 2 : index
    %c3_250 = arith.constant 3 : index
    %c0_251 = arith.constant 0 : index
    %237 = tpu.strided_load %arg16[%c2_249, %c3_250, %c0_251] {strides = array<i32: 2, 2, 1>} : memref<6x18x64xf32, #tpu.memory_space<vmem>>, vector<2x8x64xf32>
    %238 = vector.shape_cast %237 : vector<2x8x64xf32> to vector<16x64xf32>
    %239 = tpu.concatenate %232, %234, %236, %238 in 0 : vector<16x64xf32>, vector<16x64xf32>, vector<16x64xf32>, vector<16x64xf32> -> vector<64x64xf32>
    %240 = arith.truncf %239 : vector<64x64xf32> to vector<64x64xbf16>
    %c5_252 = arith.constant 5 : index
    %c0_253 = arith.constant 0 : index
    %c0_254 = arith.constant 0 : index
    %241 = vector.load %arg6[%c5_252, %c0_253, %c0_254] : memref<9x64x128xbf16, #tpu.memory_space<vmem>>, vector<1x64x128xbf16>
    %242 = vector.shape_cast %241 : vector<1x64x128xbf16> to vector<64x128xbf16>
    %cst_255 = arith.constant dense<0.000000e+00> : vector<64x128xf32>
    %243 = tpu.matmul %240, %242, %cst_255 {dimension_numbers = #tpu.dot_dimension_numbers<[1], [0], [0], [1], [0, 0, 1, 1], [], []>} : vector<64x64xbf16>, vector<64x128xbf16>, vector<64x128xf32> -> vector<64x128xf32>
    %244 = arith.addf %230, %243 : vector<64x128xf32>
    %c2_256 = arith.constant 2 : index
    %c0_257 = arith.constant 0 : index
    %c0_258 = arith.constant 0 : index
    %245 = tpu.strided_load %arg16[%c2_256, %c0_257, %c0_258] {strides = array<i32: 2, 2, 1>} : memref<6x18x64xf32, #tpu.memory_space<vmem>>, vector<2x8x64xf32>
    %246 = vector.shape_cast %245 : vector<2x8x64xf32> to vector<16x64xf32>
    %c2_259 = arith.constant 2 : index
    %c1_260 = arith.constant 1 : index
    %c0_261 = arith.constant 0 : index
    %247 = tpu.strided_load %arg16[%c2_259, %c1_260, %c0_261] {strides = array<i32: 2, 2, 1>} : memref<6x18x64xf32, #tpu.memory_space<vmem>>, vector<2x8x64xf32>
    %248 = vector.shape_cast %247 : vector<2x8x64xf32> to vector<16x64xf32>
    %c3_262 = arith.constant 3 : index
    %c0_263 = arith.constant 0 : index
    %c0_264 = arith.constant 0 : index
    %249 = tpu.strided_load %arg16[%c3_262, %c0_263, %c0_264] {strides = array<i32: 2, 2, 1>} : memref<6x18x64xf32, #tpu.memory_space<vmem>>, vector<2x8x64xf32>
    %250 = vector.shape_cast %249 : vector<2x8x64xf32> to vector<16x64xf32>
    %c3_265 = arith.constant 3 : index
    %c1_266 = arith.constant 1 : index
    %c0_267 = arith.constant 0 : index
    %251 = tpu.strided_load %arg16[%c3_265, %c1_266, %c0_267] {strides = array<i32: 2, 2, 1>} : memref<6x18x64xf32, #tpu.memory_space<vmem>>, vector<2x8x64xf32>
    %252 = vector.shape_cast %251 : vector<2x8x64xf32> to vector<16x64xf32>
    %253 = tpu.concatenate %246, %248, %250, %252 in 0 : vector<16x64xf32>, vector<16x64xf32>, vector<16x64xf32>, vector<16x64xf32> -> vector<64x64xf32>
    %254 = arith.truncf %253 : vector<64x64xf32> to vector<64x64xbf16>
    %c6_268 = arith.constant 6 : index
    %c0_269 = arith.constant 0 : index
    %c0_270 = arith.constant 0 : index
    %255 = vector.load %arg6[%c6_268, %c0_269, %c0_270] : memref<9x64x128xbf16, #tpu.memory_space<vmem>>, vector<1x64x128xbf16>
    %256 = vector.shape_cast %255 : vector<1x64x128xbf16> to vector<64x128xbf16>
    %cst_271 = arith.constant dense<0.000000e+00> : vector<64x128xf32>
    %257 = tpu.matmul %254, %256, %cst_271 {dimension_numbers = #tpu.dot_dimension_numbers<[1], [0], [0], [1], [0, 0, 1, 1], [], []>} : vector<64x64xbf16>, vector<64x128xbf16>, vector<64x128xf32> -> vector<64x128xf32>
    %258 = arith.addf %244, %257 : vector<64x128xf32>
    %c2_272 = arith.constant 2 : index
    %c1_273 = arith.constant 1 : index
    %c0_274 = arith.constant 0 : index
    %259 = tpu.strided_load %arg16[%c2_272, %c1_273, %c0_274] {strides = array<i32: 2, 2, 1>} : memref<6x18x64xf32, #tpu.memory_space<vmem>>, vector<2x8x64xf32>
    %260 = vector.shape_cast %259 : vector<2x8x64xf32> to vector<16x64xf32>
    %c2_275 = arith.constant 2 : index
    %c2_276 = arith.constant 2 : index
    %c0_277 = arith.constant 0 : index
    %261 = tpu.strided_load %arg16[%c2_275, %c2_276, %c0_277] {strides = array<i32: 2, 2, 1>} : memref<6x18x64xf32, #tpu.memory_space<vmem>>, vector<2x8x64xf32>
    %262 = vector.shape_cast %261 : vector<2x8x64xf32> to vector<16x64xf32>
    %c3_278 = arith.constant 3 : index
    %c1_279 = arith.constant 1 : index
    %c0_280 = arith.constant 0 : index
    %263 = tpu.strided_load %arg16[%c3_278, %c1_279, %c0_280] {strides = array<i32: 2, 2, 1>} : memref<6x18x64xf32, #tpu.memory_space<vmem>>, vector<2x8x64xf32>
    %264 = vector.shape_cast %263 : vector<2x8x64xf32> to vector<16x64xf32>
    %c3_281 = arith.constant 3 : index
    %c2_282 = arith.constant 2 : index
    %c0_283 = arith.constant 0 : index
    %265 = tpu.strided_load %arg16[%c3_281, %c2_282, %c0_283] {strides = array<i32: 2, 2, 1>} : memref<6x18x64xf32, #tpu.memory_space<vmem>>, vector<2x8x64xf32>
    %266 = vector.shape_cast %265 : vector<2x8x64xf32> to vector<16x64xf32>
    %267 = tpu.concatenate %260, %262, %264, %266 in 0 : vector<16x64xf32>, vector<16x64xf32>, vector<16x64xf32>, vector<16x64xf32> -> vector<64x64xf32>
    %268 = arith.truncf %267 : vector<64x64xf32> to vector<64x64xbf16>
    %c7_284 = arith.constant 7 : index
    %c0_285 = arith.constant 0 : index
    %c0_286 = arith.constant 0 : index
    %269 = vector.load %arg6[%c7_284, %c0_285, %c0_286] : memref<9x64x128xbf16, #tpu.memory_space<vmem>>, vector<1x64x128xbf16>
    %270 = vector.shape_cast %269 : vector<1x64x128xbf16> to vector<64x128xbf16>
    %cst_287 = arith.constant dense<0.000000e+00> : vector<64x128xf32>
    %271 = tpu.matmul %268, %270, %cst_287 {dimension_numbers = #tpu.dot_dimension_numbers<[1], [0], [0], [1], [0, 0, 1, 1], [], []>} : vector<64x64xbf16>, vector<64x128xbf16>, vector<64x128xf32> -> vector<64x128xf32>
    %272 = arith.addf %258, %271 : vector<64x128xf32>
    %c2_288 = arith.constant 2 : index
    %c2_289 = arith.constant 2 : index
    %c0_290 = arith.constant 0 : index
    %273 = tpu.strided_load %arg16[%c2_288, %c2_289, %c0_290] {strides = array<i32: 2, 2, 1>} : memref<6x18x64xf32, #tpu.memory_space<vmem>>, vector<2x8x64xf32>
    %274 = vector.shape_cast %273 : vector<2x8x64xf32> to vector<16x64xf32>
    %c2_291 = arith.constant 2 : index
    %c3_292 = arith.constant 3 : index
    %c0_293 = arith.constant 0 : index
    %275 = tpu.strided_load %arg16[%c2_291, %c3_292, %c0_293] {strides = array<i32: 2, 2, 1>} : memref<6x18x64xf32, #tpu.memory_space<vmem>>, vector<2x8x64xf32>
    %276 = vector.shape_cast %275 : vector<2x8x64xf32> to vector<16x64xf32>
    %c3_294 = arith.constant 3 : index
    %c2_295 = arith.constant 2 : index
    %c0_296 = arith.constant 0 : index
    %277 = tpu.strided_load %arg16[%c3_294, %c2_295, %c0_296] {strides = array<i32: 2, 2, 1>} : memref<6x18x64xf32, #tpu.memory_space<vmem>>, vector<2x8x64xf32>
    %278 = vector.shape_cast %277 : vector<2x8x64xf32> to vector<16x64xf32>
    %c3_297 = arith.constant 3 : index
    %c3_298 = arith.constant 3 : index
    %c0_299 = arith.constant 0 : index
    %279 = tpu.strided_load %arg16[%c3_297, %c3_298, %c0_299] {strides = array<i32: 2, 2, 1>} : memref<6x18x64xf32, #tpu.memory_space<vmem>>, vector<2x8x64xf32>
    %280 = vector.shape_cast %279 : vector<2x8x64xf32> to vector<16x64xf32>
    %281 = tpu.concatenate %274, %276, %278, %280 in 0 : vector<16x64xf32>, vector<16x64xf32>, vector<16x64xf32>, vector<16x64xf32> -> vector<64x64xf32>
    %282 = arith.truncf %281 : vector<64x64xf32> to vector<64x64xbf16>
    %c8_300 = arith.constant 8 : index
    %c0_301 = arith.constant 0 : index
    %c0_302 = arith.constant 0 : index
    %283 = vector.load %arg6[%c8_300, %c0_301, %c0_302] : memref<9x64x128xbf16, #tpu.memory_space<vmem>>, vector<1x64x128xbf16>
    %284 = vector.shape_cast %283 : vector<1x64x128xbf16> to vector<64x128xbf16>
    %cst_303 = arith.constant dense<0.000000e+00> : vector<64x128xf32>
    %285 = tpu.matmul %282, %284, %cst_303 {dimension_numbers = #tpu.dot_dimension_numbers<[1], [0], [0], [1], [0, 0, 1, 1], [], []>} : vector<64x64xbf16>, vector<64x128xbf16>, vector<64x128xf32> -> vector<64x128xf32>
    %286 = arith.addf %272, %285 : vector<64x128xf32>
    %c0_304 = arith.constant 0 : index
    %c0_305 = arith.constant 0 : index
    %287 = vector.load %arg7[%c0_304, %c0_305] : memref<1x128xf32, #tpu.memory_space<vmem>>, vector<1x128xf32>
    %288 = vector.broadcast %287 : vector<1x128xf32> to vector<64x128xf32>
    %289 = arith.addf %286, %288 : vector<64x128xf32>
    %cst_306 = arith.constant 0.000000e+00 : f32
    %290 = vector.broadcast %cst_306 : f32 to vector<64x128xf32>
    %291 = arith.maximumf %289, %290 : vector<64x128xf32>
    %292 = vector.extract_strided_slice %291 {offsets = [0, 0], sizes = [16, 128], strides = [1, 1]} : vector<64x128xf32> to vector<16x128xf32>
    %293 = vector.extract_strided_slice %291 {offsets = [16, 0], sizes = [16, 128], strides = [1, 1]} : vector<64x128xf32> to vector<16x128xf32>
    %294 = arith.maximumf %292, %293 : vector<16x128xf32>
    %295 = vector.extract_strided_slice %291 {offsets = [32, 0], sizes = [16, 128], strides = [1, 1]} : vector<64x128xf32> to vector<16x128xf32>
    %296 = vector.extract_strided_slice %291 {offsets = [48, 0], sizes = [16, 128], strides = [1, 1]} : vector<64x128xf32> to vector<16x128xf32>
    %297 = arith.maximumf %295, %296 : vector<16x128xf32>
    %298 = arith.maximumf %294, %297 : vector<16x128xf32>
    %299 = vector.extract_strided_slice %298 {offsets = [0, 0], sizes = [1, 128], strides = [1, 1]} : vector<16x128xf32> to vector<1x128xf32>
    %300 = arith.truncf %299 : vector<1x128xf32> to vector<1x128xbf16>
    %c0_307 = arith.constant 0 : index
    %c0_308 = arith.constant 0 : index
    %c0_309 = arith.constant 0 : index
    %301 = vector.load %arg8[%c0_307, %c0_308, %c0_309] : memref<4x128x256xbf16, #tpu.memory_space<vmem>>, vector<1x128x256xbf16>
    %302 = vector.shape_cast %301 : vector<1x128x256xbf16> to vector<128x256xbf16>
    %cst_310 = arith.constant dense<0.000000e+00> : vector<1x256xf32>
    %303 = tpu.matmul %300, %302, %cst_310 {dimension_numbers = #tpu.dot_dimension_numbers<[1], [0], [0], [1], [0, 0, 1, 1], [], []>} : vector<1x128xbf16>, vector<128x256xbf16>, vector<1x256xf32> -> vector<1x256xf32>
    %304 = vector.extract_strided_slice %298 {offsets = [1, 0], sizes = [1, 128], strides = [1, 1]} : vector<16x128xf32> to vector<1x128xf32>
    %305 = arith.truncf %304 : vector<1x128xf32> to vector<1x128xbf16>
    %c1_311 = arith.constant 1 : index
    %c0_312 = arith.constant 0 : index
    %c0_313 = arith.constant 0 : index
    %306 = vector.load %arg8[%c1_311, %c0_312, %c0_313] : memref<4x128x256xbf16, #tpu.memory_space<vmem>>, vector<1x128x256xbf16>
    %307 = vector.shape_cast %306 : vector<1x128x256xbf16> to vector<128x256xbf16>
    %cst_314 = arith.constant dense<0.000000e+00> : vector<1x256xf32>
    %308 = tpu.matmul %305, %307, %cst_314 {dimension_numbers = #tpu.dot_dimension_numbers<[1], [0], [0], [1], [0, 0, 1, 1], [], []>} : vector<1x128xbf16>, vector<128x256xbf16>, vector<1x256xf32> -> vector<1x256xf32>
    %309 = arith.addf %303, %308 : vector<1x256xf32>
    %310 = vector.extract_strided_slice %298 {offsets = [8, 0], sizes = [1, 128], strides = [1, 1]} : vector<16x128xf32> to vector<1x128xf32>
    %311 = arith.truncf %310 : vector<1x128xf32> to vector<1x128xbf16>
    %c2_315 = arith.constant 2 : index
    %c0_316 = arith.constant 0 : index
    %c0_317 = arith.constant 0 : index
    %312 = vector.load %arg8[%c2_315, %c0_316, %c0_317] : memref<4x128x256xbf16, #tpu.memory_space<vmem>>, vector<1x128x256xbf16>
    %313 = vector.shape_cast %312 : vector<1x128x256xbf16> to vector<128x256xbf16>
    %cst_318 = arith.constant dense<0.000000e+00> : vector<1x256xf32>
    %314 = tpu.matmul %311, %313, %cst_318 {dimension_numbers = #tpu.dot_dimension_numbers<[1], [0], [0], [1], [0, 0, 1, 1], [], []>} : vector<1x128xbf16>, vector<128x256xbf16>, vector<1x256xf32> -> vector<1x256xf32>
    %315 = arith.addf %309, %314 : vector<1x256xf32>
    %316 = vector.extract_strided_slice %298 {offsets = [9, 0], sizes = [1, 128], strides = [1, 1]} : vector<16x128xf32> to vector<1x128xf32>
    %317 = arith.truncf %316 : vector<1x128xf32> to vector<1x128xbf16>
    %c3_319 = arith.constant 3 : index
    %c0_320 = arith.constant 0 : index
    %c0_321 = arith.constant 0 : index
    %318 = vector.load %arg8[%c3_319, %c0_320, %c0_321] : memref<4x128x256xbf16, #tpu.memory_space<vmem>>, vector<1x128x256xbf16>
    %319 = vector.shape_cast %318 : vector<1x128x256xbf16> to vector<128x256xbf16>
    %cst_322 = arith.constant dense<0.000000e+00> : vector<1x256xf32>
    %320 = tpu.matmul %317, %319, %cst_322 {dimension_numbers = #tpu.dot_dimension_numbers<[1], [0], [0], [1], [0, 0, 1, 1], [], []>} : vector<1x128xbf16>, vector<128x256xbf16>, vector<1x256xf32> -> vector<1x256xf32>
    %321 = arith.addf %315, %320 : vector<1x256xf32>
    %c0_323 = arith.constant 0 : index
    %c0_324 = arith.constant 0 : index
    %322 = vector.load %arg9[%c0_323, %c0_324] : memref<1x256xf32, #tpu.memory_space<vmem>>, vector<1x256xf32>
    %323 = arith.addf %321, %322 : vector<1x256xf32>
    %cst_325 = arith.constant 0.000000e+00 : f32
    %324 = vector.broadcast %cst_325 : f32 to vector<1x256xf32>
    %325 = arith.maximumf %323, %324 : vector<1x256xf32>
    %326 = arith.truncf %325 : vector<1x256xf32> to vector<1x256xbf16>
    %c0_326 = arith.constant 0 : index
    %c0_327 = arith.constant 0 : index
    %327 = vector.load %arg10[%c0_326, %c0_327] : memref<256x128xbf16, #tpu.memory_space<vmem>>, vector<256x128xbf16>
    %cst_328 = arith.constant dense<0.000000e+00> : vector<1x128xf32>
    %328 = tpu.matmul %326, %327, %cst_328 {dimension_numbers = #tpu.dot_dimension_numbers<[1], [0], [0], [1], [0, 0, 1, 1], [], []>} : vector<1x256xbf16>, vector<256x128xbf16>, vector<1x128xf32> -> vector<1x128xf32>
    %c0_329 = arith.constant 0 : index
    %c0_330 = arith.constant 0 : index
    %329 = vector.load %arg11[%c0_329, %c0_330] : memref<1x128xf32, #tpu.memory_space<vmem>>, vector<1x128xf32>
    %330 = arith.addf %328, %329 : vector<1x128xf32>
    %cst_331 = arith.constant 0.000000e+00 : f32
    %331 = vector.broadcast %cst_331 : f32 to vector<1x128xf32>
    %332 = arith.maximumf %330, %331 : vector<1x128xf32>
    %333 = arith.truncf %332 : vector<1x128xf32> to vector<1x128xbf16>
    %c0_332 = arith.constant 0 : index
    %c0_333 = arith.constant 0 : index
    %334 = vector.load %arg12[%c0_332, %c0_333] : memref<128x128xbf16, #tpu.memory_space<vmem>>, vector<128x128xbf16>
    %cst_334 = arith.constant dense<0.000000e+00> : vector<1x128xf32>
    %335 = tpu.matmul %333, %334, %cst_334 {dimension_numbers = #tpu.dot_dimension_numbers<[1], [0], [0], [1], [0, 0, 1, 1], [], []>} : vector<1x128xbf16>, vector<128x128xbf16>, vector<1x128xf32> -> vector<1x128xf32>
    %c0_335 = arith.constant 0 : index
    %c0_336 = arith.constant 0 : index
    %336 = vector.load %arg13[%c0_335, %c0_336] : memref<1x128xf32, #tpu.memory_space<vmem>>, vector<1x128xf32>
    %337 = arith.addf %335, %336 : vector<1x128xf32>
    %338 = vector.shape_cast %337 : vector<1x128xf32> to vector<1x1x128xf32>
    %c0_337 = arith.constant 0 : index
    %c0_338 = arith.constant 0 : index
    %c0_339 = arith.constant 0 : index
    %339 = vector.load %arg14[%c0_337, %c0_338, %c0_339] : memref<1x1x128xf32, #tpu.memory_space<vmem>>, vector<1x1x128xf32>
    tpu.vector_store %arg14[%c0_337, %c0_338, %c0_339], %338 {strides = array<i32>} : memref<1x1x128xf32, #tpu.memory_space<vmem>>, vector<1x1x128xf32>,
    return
  }
  func.func @transform_0(%arg0: i32) -> (i32, i32, i32) {
    %c0_i32 = arith.constant 0 : i32
    %c0_i32_0 = arith.constant 0 : i32
    %c0_i32_1 = arith.constant 0 : i32
    return %arg0, %c0_i32, %c0_i32_0 : i32, i32, i32
  }
  func.func @transform_1(%arg0: i32) -> (i32, i32) {
    %c0_i32 = arith.constant 0 : i32
    %c0_i32_0 = arith.constant 0 : i32
    %c0_i32_1 = arith.constant 0 : i32
    return %c0_i32, %c0_i32_0 : i32, i32
  }
  func.func @transform_2(%arg0: i32) -> (i32, i32) {
    %c0_i32 = arith.constant 0 : i32
    %c0_i32_0 = arith.constant 0 : i32
    %c0_i32_1 = arith.constant 0 : i32
    return %c0_i32, %c0_i32_0 : i32, i32
  }
  func.func @transform_3(%arg0: i32) -> (i32, i32, i32) {
    %c0_i32 = arith.constant 0 : i32
    %c0_i32_0 = arith.constant 0 : i32
    %c0_i32_1 = arith.constant 0 : i32
    %c0_i32_2 = arith.constant 0 : i32
    return %c0_i32, %c0_i32_0, %c0_i32_1 : i32, i32, i32
  }
  func.func @transform_4(%arg0: i32) -> (i32, i32) {
    %c0_i32 = arith.constant 0 : i32
    %c0_i32_0 = arith.constant 0 : i32
    %c0_i32_1 = arith.constant 0 : i32
    return %c0_i32, %c0_i32_0 : i32, i32
  }
  func.func @transform_5(%arg0: i32) -> (i32, i32, i32) {
    %c0_i32 = arith.constant 0 : i32
    %c0_i32_0 = arith.constant 0 : i32
    %c0_i32_1 = arith.constant 0 : i32
    %c0_i32_2 = arith.constant 0 : i32
    return %c0_i32, %c0_i32_0, %c0_i32_1 : i32, i32, i32
  }
  func.func @transform_6(%arg0: i32) -> (i32, i32) {
    %c0_i32 = arith.constant 0 : i32
    %c0_i32_0 = arith.constant 0 : i32
    %c0_i32_1 = arith.constant 0 : i32
    return %c0_i32, %c0_i32_0 : i32, i32
  }
  func.func @transform_7(%arg0: i32) -> (i32, i32, i32) {
    %c0_i32 = arith.constant 0 : i32
    %c0_i32_0 = arith.constant 0 : i32
    %c0_i32_1 = arith.constant 0 : i32
    %c0_i32_2 = arith.constant 0 : i32
    return %c0_i32, %c0_i32_0, %c0_i32_1 : i32, i32, i32
  }
  func.func @transform_8(%arg0: i32) -> (i32, i32) {
    %c0_i32 = arith.constant 0 : i32
    %c0_i32_0 = arith.constant 0 : i32
    %c0_i32_1 = arith.constant 0 : i32
    return %c0_i32, %c0_i32_0 : i32, i32
  }
  func.func @transform_9(%arg0: i32) -> (i32, i32) {
    %c0_i32 = arith.constant 0 : i32
    %c0_i32_0 = arith.constant 0 : i32
    %c0_i32_1 = arith.constant 0 : i32
    return %c0_i32, %c0_i32_0 : i32, i32
  }
  func.func @transform_10(%arg0: i32) -> (i32, i32) {
    %c0_i32 = arith.constant 0 : i32
    %c0_i32_0 = arith.constant 0 : i32
    %c0_i32_1 = arith.constant 0 : i32
    return %c0_i32, %c0_i32_0 : i32, i32
  }
  func.func @transform_11(%arg0: i32) -> (i32, i32) {
    %c0_i32 = arith.constant 0 : i32
    %c0_i32_0 = arith.constant 0 : i32
    %c0_i32_1 = arith.constant 0 : i32
    return %c0_i32, %c0_i32_0 : i32, i32
  }
  func.func @transform_12(%arg0: i32) -> (i32, i32) {
    %c0_i32 = arith.constant 0 : i32
    %c0_i32_0 = arith.constant 0 : i32
    %c0_i32_1 = arith.constant 0 : i32
    return %c0_i32, %c0_i32_0 : i32, i32
  }
  func.func @transform_13(%arg0: i32) -> (i32, i32, i32) {
    %c0_i32 = arith.constant 0 : i32
    %c0_i32_0 = arith.constant 0 : i32
    %c0_i32_1 = arith.constant 0 : i32
    return %arg0, %c0_i32, %c0_i32_0 : i32, i32, i32
  }
}

</mosaic_0001>

<llo_original>
// kernel: forward.1
$region0: #{forward.1}
  #allocation0 [shape = 'u32[]', space=smem, size = 0x4, offset = 0x4, fixed_abs, tag = 'smem constant byte address 0x4 - core index']
  #allocation1 [shape = 'u32[144,128]{1,0:T(1,128)}', space=vmem, size = 0x12000, scoped, tag = 'internal scratch']
  #allocation2 [shape = 'f32[10,18,32]{2,1,0:T(8,128)}', space=vmem, size = 0x1e000, scoped, tag = 'scratch operand']
  #allocation3 [shape = 'f32[6,18,64]{2,1,0:T(8,128)}', space=vmem, size = 0x12000, scoped, tag = 'scratch operand']
  %s0 = inlined_call_operand.vmem [shape: bf16[2,256,32], index: 0, kind: input, shape index: {}]
  %s1 = inlined_call_operand.vmem [shape: bf16[32,32], index: 1, kind: input, shape index: {}]
  %s2 = inlined_call_operand.vmem [shape: f32[1,32], index: 2, kind: input, shape index: {}]
  %s3 = inlined_call_operand.vmem [shape: bf16[9,32,64], index: 3, kind: input, shape index: {}]
  %s4 = inlined_call_operand.vmem [shape: f32[1,64], index: 4, kind: input, shape index: {}]
  %s5 = inlined_call_operand.vmem [shape: bf16[9,64,128], index: 5, kind: input, shape index: {}]
  %s6 = inlined_call_operand.vmem [shape: f32[1,128], index: 6, kind: input, shape index: {}]
  %s7 = inlined_call_operand.vmem [shape: bf16[4,128,256], index: 7, kind: input, shape index: {}]
  %s8 = inlined_call_operand.vmem [shape: f32[1,256], index: 8, kind: input, shape index: {}]
  %s9 = inlined_call_operand.vmem [shape: bf16[256,128], index: 9, kind: input, shape index: {}]
  %s10 = inlined_call_operand.vmem [shape: f32[1,128], index: 10, kind: input, shape index: {}]
  %s11 = inlined_call_operand.vmem [shape: bf16[128,128], index: 11, kind: input, shape index: {}]
  %s12 = inlined_call_operand.vmem [shape: f32[1,128], index: 12, kind: input, shape index: {}]
  %s13 = inlined_call_operand.hbm [shape: f32[2,1,128], index: 13, kind: output, shape index: {}]
  %s14 = sld [smem:[#allocation0]]
  $region85: #{forward.1} parent=0
    _
  %s16 = ssub.s32 1, %s14
  %s17 = scalar_select 0, %s16, %s14
  $region1: #{forward.1} parent=0
    #allocation4 [shape = 'u8[1024]{0}', space=vmem, size = 0x400, scoped, tag = 'output window, operand 0']
    #allocation5 [shape = 's32[2]{0}', space=sflag, size = 0x8, scoped, tag = 'scoped memory for forward.1']
    %18 = vsyncpa [#allocation5], 0
    %s19 = scalar_lea.sflag [#allocation5], 1
    %20 = vsyncpa %s19, 0
    loop: start=0, step=1, limit=4
    $region2: #{forward.1} parent=1 // loop_pre_header
      _
    $region3: #{forward.1} parent=1 // loop_header
      %s22 = sphi 0, %s26
      %p23 = scmp.ge.s32.totalorder %s22, 4
      %s32 = sphi 0, %s34
      %s35 = sphi 0, %s32
      %s36 = sphi 0, %s35
      %s52 = sphi 0, %s36
      %s56 = sphi 0, %s56
      %s58 = sphi 0, %s56
      %s59 = sphi 0, %s58
      %s73 = sphi 0, %s59
      %s77 = sphi 0, %s77
      %s79 = sphi 0, %s77
      %s80 = sphi 0, %s79
      %s94 = sphi 0, %s80
      %s98 = sphi 0, %s98
      %s100 = sphi 0, %s98
      %s101 = sphi 0, %s100
      %s115 = sphi 0, %s101
      %s119 = sphi 0, %s119
      %s121 = sphi 0, %s119
      %s122 = sphi 0, %s121
      %s136 = sphi 0, %s122
      %s140 = sphi 0, %s140
      %s142 = sphi 0, %s140
      %s143 = sphi 0, %s142
      %s157 = sphi 0, %s143
      %s161 = sphi 0, %s161
      %s163 = sphi 0, %s161
      %s164 = sphi 0, %s163
      %s178 = sphi 0, %s164
      %s182 = sphi 0, %s182
      %s184 = sphi 0, %s182
      %s185 = sphi 0, %s184
      %s199 = sphi 0, %s185
      %s203 = sphi 0, %s203
      %s205 = sphi 0, %s203
      %s206 = sphi 0, %s205
      %s220 = sphi 0, %s206
      %s224 = sphi 0, %s224
      %s226 = sphi 0, %s224
      %s227 = sphi 0, %s226
      %s241 = sphi 0, %s227
      %s245 = sphi 0, %s245
      %s247 = sphi 0, %s245
      %s248 = sphi 0, %s247
      %s262 = sphi 0, %s248
      %s266 = sphi 0, %s266
      %s268 = sphi 0, %s266
      %s269 = sphi 0, %s268
      %s283 = sphi 0, %s269
      %s287 = sphi 0, %s287
      %s289 = sphi 0, %s287
      %s290 = sphi 0, %s289
      %s304 = sphi 0, %s290
      %s310 = sphi 0, %s312
      %s313 = sphi 0, %s310
      %s314 = sphi 0, %s313
      %s330 = sphi 0, %s314
    $region4: #{forward.1} parent=1 // loop_header_branch
      %25 = sbr.rel (%p23) target = $region8
    $region5: #{forward.1} parent=1 // loop_body
      %s27 = ssub.s32 %s22, 1
      %s28 = ssub.s32 %s22, 2
      %s29 = sadd.s32 %s22, 1
      %s30 = ssub.s32 %s22, %s29
      %p31 = scmp.eq.s32.totalorder %s30, 0
      %s33 = sadd.s32 %s32, 1
      %s34 = scalar_select %p31, %s32, %s33
      %p37 = pneg %p31
      %p38 = scmp.eq.s32.totalorder %s22, 1
      %p39 = por %p37, %p38
      %p40 = scmp.ne.s32.totalorder %s32, %s35
      %p41 = scmp.eq.s32.totalorder %s22, 0
      %p42 = por %p40, %p41
      %p43 = scmp.ne.s32.totalorder %s32, %s35
      %p44 = scmp.eq.s32.totalorder %s27, 1
      %p45 = por %p43, %p44
      %p46 = scmp.ne.s32.totalorder %s35, %s36
      %p47 = scmp.eq.s32.totalorder %s27, 0
      %p48 = por %p46, %p47
      %p49 = scmp.ne.s32.totalorder %s35, %s36
      %p50 = scmp.eq.s32.totalorder %s28, 1
      %p51 = por %p49, %p50
      %p53 = scmp.ne.s32.totalorder %s36, %s52
      %p54 = scmp.eq.s32.totalorder %s28, 0
      %p55 = por %p53, %p54
      %s57 = sadd.s32 %s56, 1
      %p60 = scmp.eq.s32.totalorder %s22, 1
      %p61 = scmp.ne.s32.totalorder %s56, %s58
      %p62 = scmp.eq.s32.totalorder %s22, 0
      %p63 = por %p61, %p62
      %p64 = scmp.ne.s32.totalorder %s56, %s58
      %p65 = scmp.eq.s32.totalorder %s27, 1
      %p66 = por %p64, %p65
      %p67 = scmp.ne.s32.totalorder %s58, %s59
      %p68 = scmp.eq.s32.totalorder %s27, 0
      %p69 = por %p67, %p68
      %p70 = scmp.ne.s32.totalorder %s58, %s59
      %p71 = scmp.eq.s32.totalorder %s28, 1
      %p72 = por %p70, %p71
      %p74 = scmp.ne.s32.totalorder %s59, %s73
      %p75 = scmp.eq.s32.totalorder %s28, 0
      %p76 = por %p74, %p75
      %s78 = sadd.s32 %s77, 1
      %p81 = scmp.eq.s32.totalorder %s22, 1
      %p82 = scmp.ne.s32.totalorder %s77, %s79
      %p83 = scmp.eq.s32.totalorder %s22, 0
      %p84 = por %p82, %p83
      %p85 = scmp.ne.s32.totalorder %s77, %s79
      %p86 = scmp.eq.s32.totalorder %s27, 1
      %p87 = por %p85, %p86
      %p88 = scmp.ne.s32.totalorder %s79, %s80
      %p89 = scmp.eq.s32.totalorder %s27, 0
      %p90 = por %p88, %p89
      %p91 = scmp.ne.s32.totalorder %s79, %s80
      %p92 = scmp.eq.s32.totalorder %s28, 1
      %p93 = por %p91, %p92
      %p95 = scmp.ne.s32.totalorder %s80, %s94
      %p96 = scmp.eq.s32.totalorder %s28, 0
      %p97 = por %p95, %p96
      %s99 = sadd.s32 %s98, 1
      %p102 = scmp.eq.s32.totalorder %s22, 1
      %p103 = scmp.ne.s32.totalorder %s98, %s100
      %p104 = scmp.eq.s32.totalorder %s22, 0
      %p105 = por %p103, %p104
      %p106 = scmp.ne.s32.totalorder %s98, %s100
      %p107 = scmp.eq.s32.totalorder %s27, 1
      %p108 = por %p106, %p107
      %p109 = scmp.ne.s32.totalorder %s100, %s101
      %p110 = scmp.eq.s32.totalorder %s27, 0
      %p111 = por %p109, %p110
      %p112 = scmp.ne.s32.totalorder %s100, %s101
      %p113 = scmp.eq.s32.totalorder %s28, 1
      %p114 = por %p112, %p113
      %p116 = scmp.ne.s32.totalorder %s101, %s115
      %p117 = scmp.eq.s32.totalorder %s28, 0
      %p118 = por %p116, %p117
      %s120 = sadd.s32 %s119, 1
      %p123 = scmp.eq.s32.totalorder %s22, 1
      %p124 = scmp.ne.s32.totalorder %s119, %s121
      %p125 = scmp.eq.s32.totalorder %s22, 0
      %p126 = por %p124, %p125
      %p127 = scmp.ne.s32.totalorder %s119, %s121
      %p128 = scmp.eq.s32.totalorder %s27, 1
      %p129 = por %p127, %p128
      %p130 = scmp.ne.s32.totalorder %s121, %s122
      %p131 = scmp.eq.s32.totalorder %s27, 0
      %p132 = por %p130, %p131
      %p133 = scmp.ne.s32.totalorder %s121, %s122
      %p134 = scmp.eq.s32.totalorder %s28, 1
      %p135 = por %p133, %p134
      %p137 = scmp.ne.s32.totalorder %s122, %s136
      %p138 = scmp.eq.s32.totalorder %s28, 0
      %p139 = por %p137, %p138
      %s141 = sadd.s32 %s140, 1
      %p144 = scmp.eq.s32.totalorder %s22, 1
      %p145 = scmp.ne.s32.totalorder %s140, %s142
      %p146 = scmp.eq.s32.totalorder %s22, 0
      %p147 = por %p145, %p146
      %p148 = scmp.ne.s32.totalorder %s140, %s142
      %p149 = scmp.eq.s32.totalorder %s27, 1
      %p150 = por %p148, %p149
      %p151 = scmp.ne.s32.totalorder %s142, %s143
      %p152 = scmp.eq.s32.totalorder %s27, 0
      %p153 = por %p151, %p152
      %p154 = scmp.ne.s32.totalorder %s142, %s143
      %p155 = scmp.eq.s32.totalorder %s28, 1
      %p156 = por %p154, %p155
      %p158 = scmp.ne.s32.totalorder %s143, %s157
      %p159 = scmp.eq.s32.totalorder %s28, 0
      %p160 = por %p158, %p159
      %s162 = sadd.s32 %s161, 1
      %p165 = scmp.eq.s32.totalorder %s22, 1
      %p166 = scmp.ne.s32.totalorder %s161, %s163
      %p167 = scmp.eq.s32.totalorder %s22, 0
      %p168 = por %p166, %p167
      %p169 = scmp.ne.s32.totalorder %s161, %s163
      %p170 = scmp.eq.s32.totalorder %s27, 1
      %p171 = por %p169, %p170
      %p172 = scmp.ne.s32.totalorder %s163, %s164
      %p173 = scmp.eq.s32.totalorder %s27, 0
      %p174 = por %p172, %p173
      %p175 = scmp.ne.s32.totalorder %s163, %s164
      %p176 = scmp.eq.s32.totalorder %s28, 1
      %p177 = por %p175, %p176
      %p179 = scmp.ne.s32.totalorder %s164, %s178
      %p180 = scmp.eq.s32.totalorder %s28, 0
      %p181 = por %p179, %p180
      %s183 = sadd.s32 %s182, 1
      %p186 = scmp.eq.s32.totalorder %s22, 1
      %p187 = scmp.ne.s32.totalorder %s182, %s184
      %p188 = scmp.eq.s32.totalorder %s22, 0
      %p189 = por %p187, %p188
      %p190 = scmp.ne.s32.totalorder %s182, %s184
      %p191 = scmp.eq.s32.totalorder %s27, 1
      %p192 = por %p190, %p191
      %p193 = scmp.ne.s32.totalorder %s184, %s185
      %p194 = scmp.eq.s32.totalorder %s27, 0
      %p195 = por %p193, %p194
      %p196 = scmp.ne.s32.totalorder %s184, %s185
      %p197 = scmp.eq.s32.totalorder %s28, 1
      %p198 = por %p196, %p197
      %p200 = scmp.ne.s32.totalorder %s185, %s199
      %p201 = scmp.eq.s32.totalorder %s28, 0
      %p202 = por %p200, %p201
      %s204 = sadd.s32 %s203, 1
      %p207 = scmp.eq.s32.totalorder %s22, 1
      %p208 = scmp.ne.s32.totalorder %s203, %s205
      %p209 = scmp.eq.s32.totalorder %s22, 0
      %p210 = por %p208, %p209
      %p211 = scmp.ne.s32.totalorder %s203, %s205
      %p212 = scmp.eq.s32.totalorder %s27, 1
      %p213 = por %p211, %p212
      %p214 = scmp.ne.s32.totalorder %s205, %s206
      %p215 = scmp.eq.s32.totalorder %s27, 0
      %p216 = por %p214, %p215
      %p217 = scmp.ne.s32.totalorder %s205, %s206
      %p218 = scmp.eq.s32.totalorder %s28, 1
      %p219 = por %p217, %p218
      %p221 = scmp.ne.s32.totalorder %s206, %s220
      %p222 = scmp.eq.s32.totalorder %s28, 0
      %p223 = por %p221, %p222
      %s225 = sadd.s32 %s224, 1
      %p228 = scmp.eq.s32.totalorder %s22, 1
      %p229 = scmp.ne.s32.totalorder %s224, %s226
      %p230 = scmp.eq.s32.totalorder %s22, 0
      %p231 = por %p229, %p230
      %p232 = scmp.ne.s32.totalorder %s224, %s226
      %p233 = scmp.eq.s32.totalorder %s27, 1
      %p234 = por %p232, %p233
      %p235 = scmp.ne.s32.totalorder %s226, %s227
      %p236 = scmp.eq.s32.totalorder %s27, 0
      %p237 = por %p235, %p236
      %p238 = scmp.ne.s32.totalorder %s226, %s227
      %p239 = scmp.eq.s32.totalorder %s28, 1
      %p240 = por %p238, %p239
      %p242 = scmp.ne.s32.totalorder %s227, %s241
      %p243 = scmp.eq.s32.totalorder %s28, 0
      %p244 = por %p242, %p243
      %s246 = sadd.s32 %s245, 1
      %p249 = scmp.eq.s32.totalorder %s22, 1
      %p250 = scmp.ne.s32.totalorder %s245, %s247
      %p251 = scmp.eq.s32.totalorder %s22, 0
      %p252 = por %p250, %p251
      %p253 = scmp.ne.s32.totalorder %s245, %s247
      %p254 = scmp.eq.s32.totalorder %s27, 1
      %p255 = por %p253, %p254
      %p256 = scmp.ne.s32.totalorder %s247, %s248
      %p257 = scmp.eq.s32.totalorder %s27, 0
      %p258 = por %p256, %p257
      %p259 = scmp.ne.s32.totalorder %s247, %s248
      %p260 = scmp.eq.s32.totalorder %s28, 1
      %p261 = por %p259, %p260
      %p263 = scmp.ne.s32.totalorder %s248, %s262
      %p264 = scmp.eq.s32.totalorder %s28, 0
      %p265 = por %p263, %p264
      %s267 = sadd.s32 %s266, 1
      %p270 = scmp.eq.s32.totalorder %s22, 1
      %p271 = scmp.ne.s32.totalorder %s266, %s268
      %p272 = scmp.eq.s32.totalorder %s22, 0
      %p273 = por %p271, %p272
      %p274 = scmp.ne.s32.totalorder %s266, %s268
      %p275 = scmp.eq.s32.totalorder %s27, 1
      %p276 = por %p274, %p275
      %p277 = scmp.ne.s32.totalorder %s268, %s269
      %p278 = scmp.eq.s32.totalorder %s27, 0
      %p279 = por %p277, %p278
      %p280 = scmp.ne.s32.totalorder %s268, %s269
      %p281 = scmp.eq.s32.totalorder %s28, 1
      %p282 = por %p280, %p281
      %p284 = scmp.ne.s32.totalorder %s269, %s283
      %p285 = scmp.eq.s32.totalorder %s28, 0
      %p286 = por %p284, %p285
      %s288 = sadd.s32 %s287, 1
      %p291 = scmp.eq.s32.totalorder %s22, 1
      %p292 = scmp.ne.s32.totalorder %s287, %s289
      %p293 = scmp.eq.s32.totalorder %s22, 0
      %p294 = por %p292, %p293
      %p295 = scmp.ne.s32.totalorder %s287, %s289
      %p296 = scmp.eq.s32.totalorder %s27, 1
      %p297 = por %p295, %p296
      %p298 = scmp.ne.s32.totalorder %s289, %s290
      %p299 = scmp.eq.s32.totalorder %s27, 0
      %p300 = por %p298, %p299
      %p301 = scmp.ne.s32.totalorder %s289, %s290
      %p302 = scmp.eq.s32.totalorder %s28, 1
      %p303 = por %p301, %p302
      %p305 = scmp.ne.s32.totalorder %s290, %s304
      %p306 = scmp.eq.s32.totalorder %s28, 0
      %p307 = por %p305, %p306
      %s308 = ssub.s32 %s22, %s29
      %p309 = scmp.eq.s32.totalorder %s308, 0
      %s311 = sadd.s32 %s310, 1
      %s312 = scalar_select %p309, %s310, %s311
      %p315 = pneg %p309
      %p316 = scmp.eq.s32.totalorder %s22, 1
      %p317 = por %p315, %p316
      %p318 = scmp.ne.s32.totalorder %s310, %s313
      %p319 = scmp.eq.s32.totalorder %s22, 0
      %p320 = por %p318, %p319
      %p321 = scmp.ne.s32.totalorder %s310, %s313
      %p322 = scmp.eq.s32.totalorder %s27, 1
      %p323 = por %p321, %p322
      %p324 = scmp.ne.s32.totalorder %s313, %s314
      %p325 = scmp.eq.s32.totalorder %s27, 0
      %p326 = por %p324, %p325
      %p327 = scmp.ne.s32.totalorder %s313, %s314
      %p328 = scmp.eq.s32.totalorder %s28, 1
      %p329 = por %p327, %p328
      %p331 = scmp.ne.s32.totalorder %s314, %s330
      %p332 = scmp.eq.s32.totalorder %s28, 0
      %p333 = por %p331, %p332
      %p334 = scmp.le.s32.totalorder 1, %s22
      %p335 = scmp.lt.s32.totalorder %s22, 3
      %p336 = pnand %p334, %p335
      %p337 = pneg %p336
      // Predicated region
      $region9: #{forward.1} parent=5 // pred_check
        _
      $region10: #{forward.1} parent=5 // pred_check_branch
        %339 = sbr.rel (%p336) target = $region12
      $region11: #{forward.1} parent=5 // pred_region
        %s340 = ssub.s32 %s22, 1
        // Predicated region
        $region13: #{forward.1} parent=11 // pred_check
          %p341 = pneg %p69
        $region14: #{forward.1} parent=11 // pred_check_branch
          %343 = sbr.rel (%p341) target = $region16
        $region15: #{forward.1} parent=11 // pred_region
          _
        $region16: #{forward.1} parent=11 // pred_fallthru
          _
        // Predicated region
        $region17: #{forward.1} parent=11 // pred_check
          %p344 = pneg %p90
        $region18: #{forward.1} parent=11 // pred_check_branch
          %346 = sbr.rel (%p344) target = $region20
        $region19: #{forward.1} parent=11 // pred_region
          _
        $region20: #{forward.1} parent=11 // pred_fallthru
          _
        // Predicated region
        $region21: #{forward.1} parent=11 // pred_check
          %p347 = pneg %p111
        $region22: #{forward.1} parent=11 // pred_check_branch
          %349 = sbr.rel (%p347) target = $region24
        $region23: #{forward.1} parent=11 // pred_region
          _
        $region24: #{forward.1} parent=11 // pred_fallthru
          _
        // Predicated region
        $region25: #{forward.1} parent=11 // pred_check
          %p350 = pneg %p132
        $region26: #{forward.1} parent=11 // pred_check_branch
          %352 = sbr.rel (%p350) target = $region28
        $region27: #{forward.1} parent=11 // pred_region
          _
        $region28: #{forward.1} parent=11 // pred_fallthru
          _
        // Predicated region
        $region29: #{forward.1} parent=11 // pred_check
          %p353 = pneg %p153
        $region30: #{forward.1} parent=11 // pred_check_branch
          %355 = sbr.rel (%p353) target = $region32
        $region31: #{forward.1} parent=11 // pred_region
          _
        $region32: #{forward.1} parent=11 // pred_fallthru
          _
        // Predicated region
        $region33: #{forward.1} parent=11 // pred_check
          %p356 = pneg %p174
        $region34: #{forward.1} parent=11 // pred_check_branch
          %358 = sbr.rel (%p356) target = $region36
        $region35: #{forward.1} parent=11 // pred_region
          _
        $region36: #{forward.1} parent=11 // pred_fallthru
          _
        // Predicated region
        $region37: #{forward.1} parent=11 // pred_check
          %p359 = pneg %p195
        $region38: #{forward.1} parent=11 // pred_check_branch
          %361 = sbr.rel (%p359) target = $region40
        $region39: #{forward.1} parent=11 // pred_region
          _
        $region40: #{forward.1} parent=11 // pred_fallthru
          _
        // Predicated region
        $region41: #{forward.1} parent=11 // pred_check
          %p362 = pneg %p216
        $region42: #{forward.1} parent=11 // pred_check_branch
          %364 = sbr.rel (%p362) target = $region44
        $region43: #{forward.1} parent=11 // pred_region
          _
        $region44: #{forward.1} parent=11 // pred_fallthru
          _
        // Predicated region
        $region45: #{forward.1} parent=11 // pred_check
          %p365 = pneg %p237
        $region46: #{forward.1} parent=11 // pred_check_branch
          %367 = sbr.rel (%p365) target = $region48
        $region47: #{forward.1} parent=11 // pred_region
          _
        $region48: #{forward.1} parent=11 // pred_fallthru
          _
        // Predicated region
        $region49: #{forward.1} parent=11 // pred_check
          %p368 = pneg %p258
        $region50: #{forward.1} parent=11 // pred_check_branch
          %370 = sbr.rel (%p368) target = $region52
        $region51: #{forward.1} parent=11 // pred_region
          _
        $region52: #{forward.1} parent=11 // pred_fallthru
          _
        // Predicated region
        $region53: #{forward.1} parent=11 // pred_check
          %p371 = pneg %p279
        $region54: #{forward.1} parent=11 // pred_check_branch
          %373 = sbr.rel (%p371) target = $region56
        $region55: #{forward.1} parent=11 // pred_region
          _
        $region56: #{forward.1} parent=11 // pred_fallthru
          _
        // Predicated region
        $region57: #{forward.1} parent=11 // pred_check
          %p374 = pneg %p300
        $region58: #{forward.1} parent=11 // pred_check_branch
          %376 = sbr.rel (%p374) target = $region60
        $region59: #{forward.1} parent=11 // pred_region
          _
        $region60: #{forward.1} parent=11 // pred_fallthru
          _
      $region12: #{forward.1} parent=5 // pred_fallthru
        _
      %p377 = scmp.lt.s32.totalorder %s22, 2
      // Predicated region
      $region61: #{forward.1} parent=5 // pred_check
        %p378 = pneg %p377
      $region62: #{forward.1} parent=5 // pred_check_branch
        %380 = sbr.rel (%p378) target = $region64
      $region63: #{forward.1} parent=5 // pred_region
        // Predicated region
        $region65: #{forward.1} parent=63 // pred_check
          %p381 = pneg %p42
        $region66: #{forward.1} parent=63 // pred_check_branch
          %383 = sbr.rel (%p381) target = $region68
        $region67: #{forward.1} parent=63 // pred_region
          %p384 = scmp.lt.s32.totalorder %s22, 1
          %s385 = scalar_select %p384, %s22, 1
          %s386 = smul.addr %s385, 32
          %s387 = smul.addr %s386, 4
          %s388 = scalar_lea.vmem %s0, %s387
        $region68: #{forward.1} parent=63 // pred_fallthru
          _
      $region64: #{forward.1} parent=5 // pred_fallthru
        _
      %p389 = scmp.le.s32.totalorder 1, %s22
      %p390 = scmp.lt.s32.totalorder %s22, 3
      %p391 = pnand %p389, %p390
      %p392 = pneg %p391
      // Predicated region
      $region69: #{forward.1} parent=5 // pred_check
        _
      $region70: #{forward.1} parent=5 // pred_check_branch
        %394 = sbr.rel (%p391) target = $region72
      $region71: #{forward.1} parent=5 // pred_region
        %s395 = ssub.s32 %s22, 1
        %p396 = scmp.lt.s32.totalorder %s27, 1
        %s397 = scalar_select %p396, %s27, 1
        %s398 = smul.addr %s397, 32
        %s399 = smul.addr %s398, 4
        %s400 = scalar_lea.vmem %s0, %s399
        %p401 = pneg %p48
        %p402 = pneg %p45
        %p403 = pneg %p69
        %p404 = pneg %p66
        %p405 = pneg %p90
        %p406 = pneg %p87
        %p407 = pneg %p111
        %p408 = pneg %p108
        %p409 = pneg %p132
        %p410 = pneg %p129
        %p411 = pneg %p153
        %p412 = pneg %p150
        %p413 = pneg %p174
        %p414 = pneg %p171
        %p415 = pneg %p195
        %p416 = pneg %p192
        %p417 = pneg %p216
        %p418 = pneg %p213
        %p419 = pneg %p237
        %p420 = pneg %p234
        %p421 = pneg %p258
        %p422 = pneg %p255
        %p423 = pneg %p279
        %p424 = pneg %p276
        %p425 = pneg %p300
        %p426 = pneg %p297
        %p427 = pneg %p326
        %p428 = pneg %p323
        %s429 = sand.u32 %s313, 1
        %s430 = scalar_lea.sflag [#allocation5], %s429
        %s431 = sand.u32 %s313, 1
        %s432 = scalar_lea.vmem [#allocation4], %s431
        %p433 = scmp.lt.s32.totalorder %s27, 1
        %s434 = scalar_select %p433, %s27, 1
        %s435 = smul.addr %s434, 32
        %s436 = smul.addr %s435, 4
        %s437 = scalar_lea.vmem %s0, %s436
        %v439 = vld [vmem:[%s437] sm:$0xf]
        %v440 = vld [vmem:[%s437 + $0x4] sm:$0xf]
        %v441 = vld [vmem:[%s437 + $0x8] sm:$0xf]
        %v442 = vld [vmem:[%s437 + $0xc] sm:$0xf]
        %v443 = vld [vmem:[%s437 + $0x10] sm:$0xf]
        %v444 = vld [vmem:[%s437 + $0x14] sm:$0xf]
        %v445 = vld [vmem:[%s437 + $0x18] sm:$0xf]
        %v446 = vld [vmem:[%s437 + $0x1c] sm:$0xf]
        %v447 = vld [vmem:[%s437 + $0x20] sm:$0xf]
        %v448 = vld [vmem:[%s437 + $0x24] sm:$0xf]
        %v449 = vld [vmem:[%s437 + $0x28] sm:$0xf]
        %v450 = vld [vmem:[%s437 + $0x2c] sm:$0xf]
        %v451 = vld [vmem:[%s437 + $0x30] sm:$0xf]
        %v452 = vld [vmem:[%s437 + $0x34] sm:$0xf]
        %v453 = vld [vmem:[%s437 + $0x38] sm:$0xf]
        %v454 = vld [vmem:[%s437 + $0x3c] sm:$0xf]
        %v455 = vld [vmem:[%s437 + $0x40] sm:$0xf]
        %v456 = vld [vmem:[%s437 + $0x44] sm:$0xf]
        %v457 = vld [vmem:[%s437 + $0x48] sm:$0xf]
        %v458 = vld [vmem:[%s437 + $0x4c] sm:$0xf]
        %v459 = vld [vmem:[%s437 + $0x50] sm:$0xf]
        %v460 = vld [vmem:[%s437 + $0x54] sm:$0xf]
        %v461 = vld [vmem:[%s437 + $0x58] sm:$0xf]
        %v462 = vld [vmem:[%s437 + $0x5c] sm:$0xf]
        %v463 = vld [vmem:[%s437 + $0x60] sm:$0xf]
        %v464 = vld [vmem:[%s437 + $0x64] sm:$0xf]
        %v465 = vld [vmem:[%s437 + $0x68] sm:$0xf]
        %v466 = vld [vmem:[%s437 + $0x6c] sm:$0xf]
        %v467 = vld [vmem:[%s437 + $0x70] sm:$0xf]
        %v468 = vld [vmem:[%s437 + $0x74] sm:$0xf]
        %v469 = vld [vmem:[%s437 + $0x78] sm:$0xf]
        %v470 = vld [vmem:[%s437 + $0x7c] sm:$0xf]
        %v471 = vld [vmem:[%s1] sm:$0xf]
        %v472 = vld [vmem:[%s1 + $0x4] sm:$0xf]
        %v473 = vld [vmem:[%s1 + $0x8] sm:$0xf]
        %v474 = vld [vmem:[%s1 + $0xc] sm:$0xf]
        %v475 = vld [vmem:[%s2] sm:$0x1]
        %v477 = vlaneseq
        %v478 = vshrl.u32 %v477, 7
        %v479 = vsub.s32 0, %v478
        %v480 = vrot.slane %v475, %v479
        %v514 = vunpack.c.l.b16 %v439
        %v515 = vunpack.c.l.b16 %v440
        %v516 = vunpack.c.l.b16 %v441
        %v517 = vunpack.c.l.b16 %v442
        %v518 = vunpack.c.l.b16 %v443
        %v519 = vunpack.c.l.b16 %v444
        %v520 = vunpack.c.l.b16 %v445
        %v521 = vunpack.c.l.b16 %v446
        %v522 = vunpack.c.l.b16 %v447
        %v523 = vunpack.c.l.b16 %v448
        %v524 = vunpack.c.l.b16 %v449
        %v525 = vunpack.c.l.b16 %v450
        %v526 = vunpack.c.l.b16 %v451
        %v527 = vunpack.c.l.b16 %v452
        %v528 = vunpack.c.l.b16 %v453
        %v529 = vunpack.c.l.b16 %v454
        %v530 = vunpack.c.l.b16 %v455
        %v531 = vunpack.c.l.b16 %v456
        %v532 = vunpack.c.l.b16 %v457
        %v533 = vunpack.c.l.b16 %v458
        %v534 = vunpack.c.l.b16 %v459
        %v535 = vunpack.c.l.b16 %v460
        %v536 = vunpack.c.l.b16 %v461
        %v537 = vunpack.c.l.b16 %v462
        %v538 = vunpack.c.l.b16 %v463
        %v539 = vunpack.c.l.b16 %v464
        %v540 = vunpack.c.l.b16 %v465
        %v541 = vunpack.c.l.b16 %v466
        %v542 = vunpack.c.l.b16 %v467
        %v543 = vunpack.c.l.b16 %v468
        %v544 = vunpack.c.l.b16 %v469
        %v545 = vunpack.c.l.b16 %v470
        %v546 = vpack.c.b16 %v515, %v514
        %v547 = vpack.c.b16 %v517, %v516
        %v548 = vpack.c.b16 %v519, %v518
        %v549 = vpack.c.b16 %v521, %v520
        %v550 = vpack.c.b16 %v523, %v522
        %v551 = vpack.c.b16 %v525, %v524
        %v552 = vpack.c.b16 %v527, %v526
        %v553 = vpack.c.b16 %v529, %v528
        %v554 = vpack.c.b16 %v531, %v530
        %v555 = vpack.c.b16 %v533, %v532
        %v556 = vpack.c.b16 %v535, %v534
        %v557 = vpack.c.b16 %v537, %v536
        %v558 = vpack.c.b16 %v539, %v538
        %v559 = vpack.c.b16 %v541, %v540
        %v560 = vpack.c.b16 %v543, %v542
        %v561 = vpack.c.b16 %v545, %v544
        %v566 = vunpack.c.l.b16 %v471
        %v567 = vunpack.c.l.b16 %v472
        %v568 = vunpack.c.l.b16 %v473
        %v569 = vunpack.c.l.b16 %v474
        %v570 = vpack.c.b16 %v567, %v566
        %v571 = vpack.c.b16 %v569, %v568
        %vm574 = vcmask 261120
        %v576 = vsel %vm574, %v546, 0
        %v579 = vsel %vm574, %v547, 0
        %v582 = vsel %vm574, %v548, 0
        %v585 = vsel %vm574, %v549, 0
        %v588 = vsel %vm574, %v550, 0
        %v591 = vsel %vm574, %v551, 0
        %v594 = vsel %vm574, %v552, 0
        %v597 = vsel %vm574, %v553, 0
        %v600 = vsel %vm574, %v554, 0
        %v603 = vsel %vm574, %v555, 0
        %v606 = vsel %vm574, %v556, 0
        %v609 = vsel %vm574, %v557, 0
        %v612 = vsel %vm574, %v558, 0
        %v615 = vsel %vm574, %v559, 0
        %v618 = vsel %vm574, %v560, 0
        %v621 = vsel %vm574, %v561, 0
        %623 = vmatprep.subr.bf16.mxu0 0
        %624 = vmatpush1.bf16.msra.mxu0 %v570
        %625 = vmatprep.subr.bf16.mxu0 0
        %626 = vmatpush1.bf16.msra.mxu0 %v571
        %627 = vmatprep.subr.bf16.mxu0 0
        %628 = vmatpush1.bf16.msra.mxu0 0
        %629 = vmatprep.subr.bf16.mxu0 0
        %630 = vmatpush1.bf16.msra.mxu0 0
        %631 = vmatprep.subr.bf16.mxu0 0
        %632 = vmatpush1.bf16.msra.mxu0 0
        %633 = vmatprep.subr.bf16.mxu0 0
        %634 = vmatpush1.bf16.msra.mxu0 0
        %635 = vmatprep.subr.bf16.mxu0 0
        %636 = vmatpush1.bf16.msra.mxu0 0
        %637 = vmatprep.subr.bf16.mxu0 0
        %638 = vmatpush1.bf16.msra.mxu0 0
        %639 = vmatprep.subr.bf16.mxu0 0
        %640 = vmatpush1.bf16.msra.mxu0 0
        %641 = vmatprep.subr.bf16.mxu0 0
        %642 = vmatpush1.bf16.msra.mxu0 0
        %643 = vmatprep.subr.bf16.mxu0 0
        %644 = vmatpush1.bf16.msra.mxu0 0
        %645 = vmatprep.subr.bf16.mxu0 0
        %646 = vmatpush1.bf16.msra.mxu0 0
        %647 = vmatprep.subr.bf16.mxu0 0
        %648 = vmatpush1.bf16.msra.mxu0 0
        %649 = vmatprep.subr.bf16.mxu0 0
        %650 = vmatpush1.bf16.msra.mxu0 0
        %651 = vmatprep.subr.bf16.mxu0 0
        %652 = vmatpush1.bf16.msra.mxu0 0
        %653 = vmatprep.subr.bf16.mxu0 0
        %654 = vmatpush1.bf16.msra.mxu0 0
        %655 = vmatprep.mubr.bf16.mxu0 0
        %656 = vmatmul.mubr.bf16.gmra.mrb[0].mxu0 %v576
        %v657 = vpop.f32.mrb[0].mxu0
        %v658 = vadd.f32 %v480, %v657
        %v659 = vpop.f32.mrb[0].mxu0
        %v660 = vpop.f32.mrb[0].mxu0
        %v661 = vadd.f32 %v480, %v660
        %v662 = vpop.f32.mrb[0].mxu0
        %663 = vmatprep.mubr.bf16.mxu0 0
        %664 = vmatmul.mubr.bf16.gmra.mrb[0].mxu0 %v579
        %v665 = vpop.f32.mrb[0].mxu0
        %v666 = vadd.f32 %v480, %v665
        %v667 = vpop.f32.mrb[0].mxu0
        %v668 = vpop.f32.mrb[0].mxu0
        %v669 = vadd.f32 %v480, %v668
        %v670 = vpop.f32.mrb[0].mxu0
        %671 = vmatprep.mubr.bf16.mxu0 0
        %672 = vmatmul.mubr.bf16.gmra.mrb[0].mxu0 %v582
        %v673 = vpop.f32.mrb[0].mxu0
        %v674 = vadd.f32 %v480, %v673
        %v675 = vpop.f32.mrb[0].mxu0
        %v676 = vpop.f32.mrb[0].mxu0
        %v677 = vadd.f32 %v480, %v676
        %v678 = vpop.f32.mrb[0].mxu0
        %679 = vmatprep.mubr.bf16.mxu0 0
        %680 = vmatmul.mubr.bf16.gmra.mrb[0].mxu0 %v585
        %v681 = vpop.f32.mrb[0].mxu0
        %v682 = vadd.f32 %v480, %v681
        %v683 = vpop.f32.mrb[0].mxu0
        %v684 = vpop.f32.mrb[0].mxu0
        %v685 = vadd.f32 %v480, %v684
        %v686 = vpop.f32.mrb[0].mxu0
        %687 = vmatprep.mubr.bf16.mxu0 0
        %688 = vmatmul.mubr.bf16.gmra.mrb[0].mxu0 %v588
        %v689 = vpop.f32.mrb[0].mxu0
        %v690 = vadd.f32 %v480, %v689
        %v691 = vpop.f32.mrb[0].mxu0
        %v692 = vpop.f32.mrb[0].mxu0
        %v693 = vadd.f32 %v480, %v692
        %v694 = vpop.f32.mrb[0].mxu0
        %695 = vmatprep.mubr.bf16.mxu0 0
        %696 = vmatmul.mubr.bf16.gmra.mrb[0].mxu0 %v591
        %v697 = vpop.f32.mrb[0].mxu0
        %v698 = vadd.f32 %v480, %v697
        %v699 = vpop.f32.mrb[0].mxu0
        %v700 = vpop.f32.mrb[0].mxu0
        %v701 = vadd.f32 %v480, %v700
        %v702 = vpop.f32.mrb[0].mxu0
        %703 = vmatprep.mubr.bf16.mxu0 0
        %704 = vmatmul.mubr.bf16.gmra.mrb[0].mxu0 %v594
        %v705 = vpop.f32.mrb[0].mxu0
        %v706 = vadd.f32 %v480, %v705
        %v707 = vpop.f32.mrb[0].mxu0
        %v708 = vpop.f32.mrb[0].mxu0
        %v709 = vadd.f32 %v480, %v708
        %v710 = vpop.f32.mrb[0].mxu0
        %711 = vmatprep.mubr.bf16.mxu0 0
        %712 = vmatmul.mubr.bf16.gmra.mrb[0].mxu0 %v597
        %v713 = vpop.f32.mrb[0].mxu0
        %v714 = vadd.f32 %v480, %v713
        %v715 = vpop.f32.mrb[0].mxu0
        %v716 = vpop.f32.mrb[0].mxu0
        %v717 = vadd.f32 %v480, %v716
        %v718 = vpop.f32.mrb[0].mxu0
        %719 = vmatprep.mubr.bf16.mxu0 0
        %720 = vmatmul.mubr.bf16.gmra.mrb[0].mxu0 %v600
        %v721 = vpop.f32.mrb[0].mxu0
        %v722 = vadd.f32 %v480, %v721
        %v723 = vpop.f32.mrb[0].mxu0
        %v724 = vpop.f32.mrb[0].mxu0
        %v725 = vadd.f32 %v480, %v724
        %v726 = vpop.f32.mrb[0].mxu0
        %727 = vmatprep.mubr.bf16.mxu0 0
        %728 = vmatmul.mubr.bf16.gmra.mrb[0].mxu0 %v603
        %v729 = vpop.f32.mrb[0].mxu0
        %v730 = vadd.f32 %v480, %v729
        %v731 = vpop.f32.mrb[0].mxu0
        %v732 = vpop.f32.mrb[0].mxu0
        %v733 = vadd.f32 %v480, %v732
        %v734 = vpop.f32.mrb[0].mxu0
        %735 = vmatprep.mubr.bf16.mxu0 0
        %736 = vmatmul.mubr.bf16.gmra.mrb[0].mxu0 %v606
        %v737 = vpop.f32.mrb[0].mxu0
        %v738 = vadd.f32 %v480, %v737
        %v739 = vpop.f32.mrb[0].mxu0
        %v740 = vpop.f32.mrb[0].mxu0
        %v741 = vadd.f32 %v480, %v740
        %v742 = vpop.f32.mrb[0].mxu0
        %743 = vmatprep.mubr.bf16.mxu0 0
        %744 = vmatmul.mubr.bf16.gmra.mrb[0].mxu0 %v609
        %v745 = vpop.f32.mrb[0].mxu0
        %v746 = vadd.f32 %v480, %v745
        %v747 = vpop.f32.mrb[0].mxu0
        %v748 = vpop.f32.mrb[0].mxu0
        %v749 = vadd.f32 %v480, %v748
        %v750 = vpop.f32.mrb[0].mxu0
        %751 = vmatprep.mubr.bf16.mxu0 0
        %752 = vmatmul.mubr.bf16.gmra.mrb[0].mxu0 %v612
        %v753 = vpop.f32.mrb[0].mxu0
        %v754 = vadd.f32 %v480, %v753
        %v755 = vpop.f32.mrb[0].mxu0
        %v756 = vpop.f32.mrb[0].mxu0
        %v757 = vadd.f32 %v480, %v756
        %v758 = vpop.f32.mrb[0].mxu0
        %759 = vmatprep.mubr.bf16.mxu0 0
        %760 = vmatmul.mubr.bf16.gmra.mrb[0].mxu0 %v615
        %v761 = vpop.f32.mrb[0].mxu0
        %v762 = vadd.f32 %v480, %v761
        %v763 = vpop.f32.mrb[0].mxu0
        %v764 = vpop.f32.mrb[0].mxu0
        %v765 = vadd.f32 %v480, %v764
        %v766 = vpop.f32.mrb[0].mxu0
        %767 = vmatprep.mubr.bf16.mxu0 0
        %768 = vmatmul.mubr.bf16.gmra.mrb[0].mxu0 %v618
        %v769 = vpop.f32.mrb[0].mxu0
        %v770 = vadd.f32 %v480, %v769
        %v771 = vpop.f32.mrb[0].mxu0
        %v772 = vpop.f32.mrb[0].mxu0
        %v773 = vadd.f32 %v480, %v772
        %v774 = vpop.f32.mrb[0].mxu0
        %775 = vmatprep.mubr.bf16.mxu0 0
        %776 = vmatmul.mubr.bf16.gmra.mrb[0].mxu0 %v621
        %v777 = vpop.f32.mrb[0].mxu0
        %v778 = vadd.f32 %v480, %v777
        %v779 = vpop.f32.mrb[0].mxu0
        %v780 = vpop.f32.mrb[0].mxu0
        %v781 = vadd.f32 %v480, %v780
        %v782 = vpop.f32.mrb[0].mxu0
        %783 = vdwg.mxu0
        %v784 = vmax.f32 %v658, 0.0
        %v785 = vmax.f32 %v661, 0.0
        %v786 = vmax.f32 %v666, 0.0
        %v787 = vmax.f32 %v669, 0.0
        %v788 = vmax.f32 %v674, 0.0
        %v789 = vmax.f32 %v677, 0.0
        %v790 = vmax.f32 %v682, 0.0
        %v791 = vmax.f32 %v685, 0.0
        %v792 = vmax.f32 %v690, 0.0
        %v793 = vmax.f32 %v693, 0.0
        %v794 = vmax.f32 %v698, 0.0
        %v795 = vmax.f32 %v701, 0.0
        %v796 = vmax.f32 %v706, 0.0
        %v797 = vmax.f32 %v709, 0.0
        %v798 = vmax.f32 %v714, 0.0
        %v799 = vmax.f32 %v717, 0.0
        %v800 = vmax.f32 %v722, 0.0
        %v801 = vmax.f32 %v725, 0.0
        %v802 = vmax.f32 %v730, 0.0
        %v803 = vmax.f32 %v733, 0.0
        %v804 = vmax.f32 %v738, 0.0
        %v805 = vmax.f32 %v741, 0.0
        %v806 = vmax.f32 %v746, 0.0
        %v807 = vmax.f32 %v749, 0.0
        %v808 = vmax.f32 %v754, 0.0
        %v809 = vmax.f32 %v757, 0.0
        %v810 = vmax.f32 %v762, 0.0
        %v811 = vmax.f32 %v765, 0.0
        %v812 = vmax.f32 %v770, 0.0
        %v813 = vmax.f32 %v773, 0.0
        %v814 = vmax.f32 %v778, 0.0
        %v815 = vmax.f32 %v781, 0.0
        %v816 = vmax.f32 %v784, %v792
        %v817 = vmax.f32 %v785, %v793
        %v818 = vmax.f32 %v786, %v794
        %v819 = vmax.f32 %v787, %v795
        %v820 = vmax.f32 %v788, %v796
        %v821 = vmax.f32 %v789, %v797
        %v822 = vmax.f32 %v790, %v798
        %v823 = vmax.f32 %v791, %v799
        %v824 = vmax.f32 %v800, %v808
        %v825 = vmax.f32 %v801, %v809
        %v826 = vmax.f32 %v802, %v810
        %v827 = vmax.f32 %v803, %v811
        %v828 = vmax.f32 %v804, %v812
        %v829 = vmax.f32 %v805, %v813
        %v830 = vmax.f32 %v806, %v814
        %v831 = vmax.f32 %v807, %v815
        %v832 = vmax.f32 %v816, %v824
        %v833 = vmax.f32 %v817, %v825
        %v834 = vmax.f32 %v818, %v826
        %v835 = vmax.f32 %v819, %v827
        %v836 = vmax.f32 %v820, %v828
        %v837 = vmax.f32 %v821, %v829
        %v838 = vmax.f32 %v822, %v830
        %v839 = vmax.f32 %v823, %v831
        %840 = vst.msk [vmem:[#allocation2] sm:$0xff] %vm574, 0.0
        %841 = vst.msk [vmem:[#allocation2 + $0x8] sm:$0xff] %vm574, 0.0
        %vm842 = vcmask 254976
        %843 = vst.msk [vmem:[#allocation2 + $0x10] sm:$0x3] %vm842, 0.0
        %844 = vst.msk [vmem:[#allocation2 + $0x18] sm:$0xff] %vm574, 0.0
        %845 = vst.msk [vmem:[#allocation2 + $0x20] sm:$0xff] %vm574, 0.0
        %846 = vst.msk [vmem:[#allocation2 + $0x28] sm:$0x3] %vm842, 0.0
        %847 = vst.msk [vmem:[#allocation2 + $0x30] sm:$0xff] %vm574, 0.0
        %848 = vst.msk [vmem:[#allocation2 + $0x38] sm:$0xff] %vm574, 0.0
        %849 = vst.msk [vmem:[#allocation2 + $0x40] sm:$0x3] %vm842, 0.0
        %850 = vst.msk [vmem:[#allocation2 + $0x48] sm:$0xff] %vm574, 0.0
        %851 = vst.msk [vmem:[#allocation2 + $0x50] sm:$0xff] %vm574, 0.0
        %852 = vst.msk [vmem:[#allocation2 + $0x58] sm:$0x3] %vm842, 0.0
        %853 = vst.msk [vmem:[#allocation2 + $0x60] sm:$0xff] %vm574, 0.0
        %854 = vst.msk [vmem:[#allocation2 + $0x68] sm:$0xff] %vm574, 0.0
        %855 = vst.msk [vmem:[#allocation2 + $0x70] sm:$0x3] %vm842, 0.0
        %856 = vst.msk [vmem:[#allocation2 + $0x78] sm:$0xff] %vm574, 0.0
        %857 = vst.msk [vmem:[#allocation2 + $0x80] sm:$0xff] %vm574, 0.0
        %858 = vst.msk [vmem:[#allocation2 + $0x88] sm:$0x3] %vm842, 0.0
        %859 = vst.msk [vmem:[#allocation2 + $0x90] sm:$0xff] %vm574, 0.0
        %860 = vst.msk [vmem:[#allocation2 + $0x98] sm:$0xff] %vm574, 0.0
        %861 = vst.msk [vmem:[#allocation2 + $0xa0] sm:$0x3] %vm842, 0.0
        %862 = vst.msk [vmem:[#allocation2 + $0xa8] sm:$0xff] %vm574, 0.0
        %863 = vst.msk [vmem:[#allocation2 + $0xb0] sm:$0xff] %vm574, 0.0
        %864 = vst.msk [vmem:[#allocation2 + $0xb8] sm:$0x3] %vm842, 0.0
        %865 = vst.msk [vmem:[#allocation2 + $0xc0] sm:$0xff] %vm574, 0.0
        %866 = vst.msk [vmem:[#allocation2 + $0xc8] sm:$0xff] %vm574, 0.0
        %867 = vst.msk [vmem:[#allocation2 + $0xd0] sm:$0x3] %vm842, 0.0
        %868 = vst.msk [vmem:[#allocation2 + $0xd8] sm:$0xff] %vm574, 0.0
        %869 = vst.msk [vmem:[#allocation2 + $0xe0] sm:$0xff] %vm574, 0.0
        %870 = vst.msk [vmem:[#allocation2 + $0xe8] sm:$0x3] %vm842, 0.0
        %s871 = scalar_lea.vmem [#allocation2], 24
        %872 = vst.msk [vmem:[%s871 + $0x1] sm:$0xff] %vm574, %v832
        %873 = vst.msk [vmem:[%s871 + $0x19] sm:$0xff] %vm574, %v833
        %874 = vst.msk [vmem:[%s871 + $0x31] sm:$0xff] %vm574, %v834
        %875 = vst.msk [vmem:[%s871 + $0x49] sm:$0xff] %vm574, %v835
        %876 = vst.msk [vmem:[%s871 + $0x61] sm:$0xff] %vm574, %v836
        %877 = vst.msk [vmem:[%s871 + $0x79] sm:$0xff] %vm574, %v837
        %878 = vst.msk [vmem:[%s871 + $0x91] sm:$0xff] %vm574, %v838
        %879 = vst.msk [vmem:[%s871 + $0xa9] sm:$0xff] %vm574, %v839
        %v880 = vld [vmem:[#allocation2] ss:$2 sm:$0xff]
        %s881 = scalar_lea.vmem [#allocation2], 48
        %v882 = vld [vmem:[%s881] ss:$2 sm:$0xff]
        %s883 = scalar_lea.vmem [#allocation2], 96
        %v884 = vld [vmem:[%s883] ss:$2 sm:$0xff]
        %s885 = scalar_lea.vmem [#allocation2], 144
        %v886 = vld [vmem:[%s885] ss:$2 sm:$0xff]
        %s887 = scalar_lea.vmem [#allocation2], 1
        %v888 = vld [vmem:[%s887] ss:$2 sm:$0xff]
        %s889 = scalar_lea.vmem [#allocation2], 49
        %v890 = vld [vmem:[%s889] ss:$2 sm:$0xff]
        %s891 = scalar_lea.vmem [#allocation2], 97
        %v892 = vld [vmem:[%s891] ss:$2 sm:$0xff]
        %s893 = scalar_lea.vmem [#allocation2], 145
        %v894 = vld [vmem:[%s893] ss:$2 sm:$0xff]
        %v895 = vld [vmem:[%s871] ss:$2 sm:$0xff]
        %s896 = scalar_lea.vmem %s871, 48 [#allocation2]
        %v897 = vld [vmem:[%s896] ss:$2 sm:$0xff]
        %s898 = scalar_lea.vmem %s871, 96 [#allocation2]
        %v899 = vld [vmem:[%s898] ss:$2 sm:$0xff]
        %s900 = scalar_lea.vmem %s871, 144 [#allocation2]
        %v901 = vld [vmem:[%s900] ss:$2 sm:$0xff]
        %s902 = scalar_lea.vmem %s871, 1 [#allocation2]
        %v903 = vld [vmem:[%s902] ss:$2 sm:$0xff]
        %s904 = scalar_lea.vmem %s871, 49 [#allocation2]
        %v905 = vld [vmem:[%s904] ss:$2 sm:$0xff]
        %s906 = scalar_lea.vmem %s871, 97 [#allocation2]
        %v907 = vld [vmem:[%s906] ss:$2 sm:$0xff]
        %s908 = scalar_lea.vmem %s871, 145 [#allocation2]
        %v909 = vld [vmem:[%s908] ss:$2 sm:$0xff]
        %v910 = vpack.c.bf16 %v882, %v880
        %v911 = vpack.c.bf16 %v886, %v884
        %v912 = vpack.c.bf16 %v890, %v888
        %v913 = vpack.c.bf16 %v894, %v892
        %v914 = vpack.c.bf16 %v897, %v895
        %v915 = vpack.c.bf16 %v901, %v899
        %v916 = vpack.c.bf16 %v905, %v903
        %v917 = vpack.c.bf16 %v909, %v907
        %v918 = vld [vmem:[%s3] sm:$0xf]
        %v919 = vld [vmem:[%s3 + $0x4] sm:$0xf]
        %v920 = vld [vmem:[%s3 + $0x8] sm:$0xf]
        %v921 = vld [vmem:[%s3 + $0xc] sm:$0xf]
        %s922 = scalar_lea.vmem [#allocation2], 2
        %v923 = vld [vmem:[%s922] ss:$2 sm:$0xff]
        %s924 = scalar_lea.vmem [#allocation2], 50
        %v925 = vld [vmem:[%s924] ss:$2 sm:$0xff]
        %s926 = scalar_lea.vmem [#allocation2], 98
        %v927 = vld [vmem:[%s926] ss:$2 sm:$0xff]
        %s928 = scalar_lea.vmem [#allocation2], 146
        %v929 = vld [vmem:[%s928] ss:$2 sm:$0xff]
        %s930 = scalar_lea.vmem %s871, 2 [#allocation2]
        %v931 = vld [vmem:[%s930] ss:$2 sm:$0xff]
        %s932 = scalar_lea.vmem %s871, 50 [#allocation2]
        %v933 = vld [vmem:[%s932] ss:$2 sm:$0xff]
        %s934 = scalar_lea.vmem %s871, 98 [#allocation2]
        %v935 = vld [vmem:[%s934] ss:$2 sm:$0xff]
        %s936 = scalar_lea.vmem %s871, 146 [#allocation2]
        %v937 = vld [vmem:[%s936] ss:$2 sm:$0xff]
        %v938 = vpack.c.bf16 %v925, %v923
        %v939 = vpack.c.bf16 %v929, %v927
        %v940 = vpack.c.bf16 %v933, %v931
        %v941 = vpack.c.bf16 %v937, %v935
        %s942 = scalar_lea.vmem %s3, 16
        %v943 = vld [vmem:[%s942] sm:$0xf]
        %v944 = vld [vmem:[%s942 + $0x4] sm:$0xf]
        %v945 = vld [vmem:[%s942 + $0x8] sm:$0xf]
        %v946 = vld [vmem:[%s942 + $0xc] sm:$0xf]
        %v951 = vunpack.c.l.b16 %v943
        %v952 = vunpack.c.l.b16 %v944
        %v953 = vunpack.c.l.b16 %v945
        %v954 = vunpack.c.l.b16 %v946
        %v955 = vpack.c.b16 %v952, %v951
        %v956 = vpack.c.b16 %v954, %v953
        %v960 = vsel %vm574, %v912, 0
        %v963 = vsel %vm574, %v913, 0
        %v966 = vsel %vm574, %v938, 0
        %v969 = vsel %vm574, %v939, 0
        %v972 = vsel %vm574, %v916, 0
        %v975 = vsel %vm574, %v917, 0
        %v978 = vsel %vm574, %v940, 0
        %v981 = vsel %vm574, %v941, 0
        %983 = vmatprep.subr.bf16.mxu0 0
        %984 = vmatpush1.bf16.msra.mxu0 %v955
        %985 = vmatprep.subr.bf16.mxu0 0
        %986 = vmatpush1.bf16.msra.mxu0 %v956
        %987 = vmatprep.subr.bf16.mxu0 0
        %988 = vmatpush1.bf16.msra.mxu0 0
        %989 = vmatprep.subr.bf16.mxu0 0
        %990 = vmatpush1.bf16.msra.mxu0 0
        %991 = vmatprep.subr.bf16.mxu0 0
        %992 = vmatpush1.bf16.msra.mxu0 0
        %993 = vmatprep.subr.bf16.mxu0 0
        %994 = vmatpush1.bf16.msra.mxu0 0
        %995 = vmatprep.subr.bf16.mxu0 0
        %996 = vmatpush1.bf16.msra.mxu0 0
        %997 = vmatprep.subr.bf16.mxu0 0
        %998 = vmatpush1.bf16.msra.mxu0 0
        %999 = vmatprep.subr.bf16.mxu0 0
        %1000 = vmatpush1.bf16.msra.mxu0 0
        %1001 = vmatprep.subr.bf16.mxu0 0
        %1002 = vmatpush1.bf16.msra.mxu0 0
        %1003 = vmatprep.subr.bf16.mxu0 0
        %1004 = vmatpush1.bf16.msra.mxu0 0
        %1005 = vmatprep.subr.bf16.mxu0 0
        %1006 = vmatpush1.bf16.msra.mxu0 0
        %1007 = vmatprep.subr.bf16.mxu0 0
        %1008 = vmatpush1.bf16.msra.mxu0 0
        %1009 = vmatprep.subr.bf16.mxu0 0
        %1010 = vmatpush1.bf16.msra.mxu0 0
        %1011 = vmatprep.subr.bf16.mxu0 0
        %1012 = vmatpush1.bf16.msra.mxu0 0
        %1013 = vmatprep.subr.bf16.mxu0 0
        %1014 = vmatpush1.bf16.msra.mxu0 0
        %1015 = vmatprep.mubr.bf16.mxu0 0
        %1016 = vmatmul.mubr.bf16.gmra.mrb[0].mxu0 %v960
        %v1017 = vpop.f32.mrb[0].mxu0
        %v1018 = vadd.f32 0.0, %v1017
        %v1019 = vpop.f32.mrb[0].mxu0
        %v1020 = vpop.f32.mrb[0].mxu0
        %v1021 = vadd.f32 0.0, %v1020
        %v1022 = vpop.f32.mrb[0].mxu0
        %1023 = vmatprep.mubr.bf16.mxu0 0
        %1024 = vmatmul.mubr.bf16.gmra.mrb[0].mxu0 %v963
        %v1025 = vpop.f32.mrb[0].mxu0
        %v1026 = vadd.f32 0.0, %v1025
        %v1027 = vpop.f32.mrb[0].mxu0
        %v1028 = vpop.f32.mrb[0].mxu0
        %v1029 = vadd.f32 0.0, %v1028
        %v1030 = vpop.f32.mrb[0].mxu0
        %1031 = vmatprep.mubr.bf16.mxu0 0
        %1032 = vmatmul.mubr.bf16.gmra.mrb[0].mxu0 %v966
        %v1033 = vpop.f32.mrb[0].mxu0
        %v1034 = vadd.f32 0.0, %v1033
        %v1035 = vpop.f32.mrb[0].mxu0
        %v1036 = vpop.f32.mrb[0].mxu0
        %v1037 = vadd.f32 0.0, %v1036
        %v1038 = vpop.f32.mrb[0].mxu0
        %1039 = vmatprep.mubr.bf16.mxu0 0
        %1040 = vmatmul.mubr.bf16.gmra.mrb[0].mxu0 %v969
        %v1041 = vpop.f32.mrb[0].mxu0
        %v1042 = vadd.f32 0.0, %v1041
        %v1043 = vpop.f32.mrb[0].mxu0
        %v1044 = vpop.f32.mrb[0].mxu0
        %v1045 = vadd.f32 0.0, %v1044
        %v1046 = vpop.f32.mrb[0].mxu0
        %1047 = vmatprep.mubr.bf16.mxu0 0
        %1048 = vmatmul.mubr.bf16.gmra.mrb[0].mxu0 %v972
        %v1049 = vpop.f32.mrb[0].mxu0
        %v1050 = vadd.f32 0.0, %v1049
        %v1051 = vpop.f32.mrb[0].mxu0
        %v1052 = vpop.f32.mrb[0].mxu0
        %v1053 = vadd.f32 0.0, %v1052
        %v1054 = vpop.f32.mrb[0].mxu0
        %1055 = vmatprep.mubr.bf16.mxu0 0
        %1056 = vmatmul.mubr.bf16.gmra.mrb[0].mxu0 %v975
        %v1057 = vpop.f32.mrb[0].mxu0
        %v1058 = vadd.f32 0.0, %v1057
        %v1059 = vpop.f32.mrb[0].mxu0
        %v1060 = vpop.f32.mrb[0].mxu0
        %v1061 = vadd.f32 0.0, %v1060
        %v1062 = vpop.f32.mrb[0].mxu0
        %1063 = vmatprep.mubr.bf16.mxu0 0
        %1064 = vmatmul.mubr.bf16.gmra.mrb[0].mxu0 %v978
        %v1065 = vpop.f32.mrb[0].mxu0
        %v1066 = vadd.f32 0.0, %v1065
        %v1067 = vpop.f32.mrb[0].mxu0
        %v1068 = vpop.f32.mrb[0].mxu0
        %v1069 = vadd.f32 0.0, %v1068
        %v1070 = vpop.f32.mrb[0].mxu0
        %1071 = vmatprep.mubr.bf16.mxu0 0
        %1072 = vmatmul.mubr.bf16.gmra.mrb[0].mxu0 %v981
        %v1073 = vpop.f32.mrb[0].mxu0
        %v1074 = vadd.f32 0.0, %v1073
        %v1075 = vpop.f32.mrb[0].mxu0
        %v1076 = vpop.f32.mrb[0].mxu0
        %v1077 = vadd.f32 0.0, %v1076
        %v1078 = vpop.f32.mrb[0].mxu0
        %1079 = vdwg.mxu0
        %v1084 = vunpack.c.l.b16 %v918
        %v1085 = vunpack.c.l.b16 %v919
        %v1086 = vunpack.c.l.b16 %v920
        %v1087 = vunpack.c.l.b16 %v921
        %v1088 = vpack.c.b16 %v1085, %v1084
        %v1089 = vpack.c.b16 %v1087, %v1086
        %v1093 = vsel %vm574, %v910, 0
        %v1096 = vsel %vm574, %v911, 0
        %v1099 = vsel %vm574, %v914, 0
        %v1102 = vsel %vm574, %v915, 0
        %1104 = vmatprep.subr.bf16.mxu0 0
        %1105 = vmatpush1.bf16.msra.mxu0 %v1088
        %1106 = vmatprep.subr.bf16.mxu0 0
        %1107 = vmatpush1.bf16.msra.mxu0 %v1089
        %1108 = vmatprep.subr.bf16.mxu0 0
        %1109 = vmatpush1.bf16.msra.mxu0 0
        %1110 = vmatprep.subr.bf16.mxu0 0
        %1111 = vmatpush1.bf16.msra.mxu0 0
        %1112 = vmatprep.subr.bf16.mxu0 0
        %1113 = vmatpush1.bf16.msra.mxu0 0
        %1114 = vmatprep.subr.bf16.mxu0 0
        %1115 = vmatpush1.bf16.msra.mxu0 0
        %1116 = vmatprep.subr.bf16.mxu0 0
        %1117 = vmatpush1.bf16.msra.mxu0 0
        %1118 = vmatprep.subr.bf16.mxu0 0
        %1119 = vmatpush1.bf16.msra.mxu0 0
        %1120 = vmatprep.subr.bf16.mxu0 0
        %1121 = vmatpush1.bf16.msra.mxu0 0
        %1122 = vmatprep.subr.bf16.mxu0 0
        %1123 = vmatpush1.bf16.msra.mxu0 0
        %1124 = vmatprep.subr.bf16.mxu0 0
        %1125 = vmatpush1.bf16.msra.mxu0 0
        %1126 = vmatprep.subr.bf16.mxu0 0
        %1127 = vmatpush1.bf16.msra.mxu0 0
        %1128 = vmatprep.subr.bf16.mxu0 0
        %1129 = vmatpush1.bf16.msra.mxu0 0
        %1130 = vmatprep.subr.bf16.mxu0 0
        %1131 = vmatpush1.bf16.msra.mxu0 0
        %1132 = vmatprep.subr.bf16.mxu0 0
        %1133 = vmatpush1.bf16.msra.mxu0 0
        %1134 = vmatprep.subr.bf16.mxu0 0
        %1135 = vmatpush1.bf16.msra.mxu0 0
        %1136 = vmatprep.mubr.bf16.mxu0 0
        %1137 = vmatmul.mubr.bf16.gmra.mrb[0].mxu0 %v1093
        %v1138 = vpop.f32.mrb[0].mxu0
        %v1139 = vadd.f32 %v1018, %v1138
        %v1140 = vpop.f32.mrb[0].mxu0
        %v1141 = vpop.f32.mrb[0].mxu0
        %v1142 = vadd.f32 %v1021, %v1141
        %v1143 = vpop.f32.mrb[0].mxu0
        %1144 = vmatprep.mubr.bf16.mxu0 0
        %1145 = vmatmul.mubr.bf16.gmra.mrb[0].mxu0 %v1096
        %v1146 = vpop.f32.mrb[0].mxu0
        %v1147 = vadd.f32 %v1026, %v1146
        %v1148 = vpop.f32.mrb[0].mxu0
        %v1149 = vpop.f32.mrb[0].mxu0
        %v1150 = vadd.f32 %v1029, %v1149
        %v1151 = vpop.f32.mrb[0].mxu0
        %1152 = vmatprep.mubr.bf16.mxu0 0
        %1153 = vmatmul.mubr.bf16.gmra.mrb[0].mxu0 %v960
        %v1154 = vpop.f32.mrb[0].mxu0
        %v1155 = vadd.f32 %v1034, %v1154
        %v1156 = vpop.f32.mrb[0].mxu0
        %v1157 = vpop.f32.mrb[0].mxu0
        %v1158 = vadd.f32 %v1037, %v1157
        %v1159 = vpop.f32.mrb[0].mxu0
        %1160 = vmatprep.mubr.bf16.mxu0 0
        %1161 = vmatmul.mubr.bf16.gmra.mrb[0].mxu0 %v963
        %v1162 = vpop.f32.mrb[0].mxu0
        %v1163 = vadd.f32 %v1042, %v1162
        %v1164 = vpop.f32.mrb[0].mxu0
        %v1165 = vpop.f32.mrb[0].mxu0
        %v1166 = vadd.f32 %v1045, %v1165
        %v1167 = vpop.f32.mrb[0].mxu0
        %1168 = vmatprep.mubr.bf16.mxu0 0
        %1169 = vmatmul.mubr.bf16.gmra.mrb[0].mxu0 %v1099
        %v1170 = vpop.f32.mrb[0].mxu0
        %v1171 = vadd.f32 %v1050, %v1170
        %v1172 = vpop.f32.mrb[0].mxu0
        %v1173 = vpop.f32.mrb[0].mxu0
        %v1174 = vadd.f32 %v1053, %v1173
        %v1175 = vpop.f32.mrb[0].mxu0
        %1176 = vmatprep.mubr.bf16.mxu0 0
        %1177 = vmatmul.mubr.bf16.gmra.mrb[0].mxu0 %v1102
        %v1178 = vpop.f32.mrb[0].mxu0
        %v1179 = vadd.f32 %v1058, %v1178
        %v1180 = vpop.f32.mrb[0].mxu0
        %v1181 = vpop.f32.mrb[0].mxu0
        %v1182 = vadd.f32 %v1061, %v1181
        %v1183 = vpop.f32.mrb[0].mxu0
        %1184 = vmatprep.mubr.bf16.mxu0 0
        %1185 = vmatmul.mubr.bf16.gmra.mrb[0].mxu0 %v972
        %v1186 = vpop.f32.mrb[0].mxu0
        %v1187 = vadd.f32 %v1066, %v1186
        %v1188 = vpop.f32.mrb[0].mxu0
        %v1189 = vpop.f32.mrb[0].mxu0
        %v1190 = vadd.f32 %v1069, %v1189
        %v1191 = vpop.f32.mrb[0].mxu0
        %1192 = vmatprep.mubr.bf16.mxu0 0
        %1193 = vmatmul.mubr.bf16.gmra.mrb[0].mxu0 %v975
        %v1194 = vpop.f32.mrb[0].mxu0
        %v1195 = vadd.f32 %v1074, %v1194
        %v1196 = vpop.f32.mrb[0].mxu0
        %v1197 = vpop.f32.mrb[0].mxu0
        %v1198 = vadd.f32 %v1077, %v1197
        %v1199 = vpop.f32.mrb[0].mxu0
        %1200 = vdwg.mxu0
        %s1201 = scalar_lea.vmem [#allocation2], 3
        %v1202 = vld [vmem:[%s1201] ss:$2 sm:$0xff]
        %s1203 = scalar_lea.vmem [#allocation2], 51
        %v1204 = vld [vmem:[%s1203] ss:$2 sm:$0xff]
        %s1205 = scalar_lea.vmem [#allocation2], 99
        %v1206 = vld [vmem:[%s1205] ss:$2 sm:$0xff]
        %s1207 = scalar_lea.vmem [#allocation2], 147
        %v1208 = vld [vmem:[%s1207] ss:$2 sm:$0xff]
        %s1209 = scalar_lea.vmem %s871, 3 [#allocation2]
        %v1210 = vld [vmem:[%s1209] ss:$2 sm:$0xff]
        %s1211 = scalar_lea.vmem %s871, 51 [#allocation2]
        %v1212 = vld [vmem:[%s1211] ss:$2 sm:$0xff]
        %s1213 = scalar_lea.vmem %s871, 99 [#allocation2]
        %v1214 = vld [vmem:[%s1213] ss:$2 sm:$0xff]
        %s1215 = scalar_lea.vmem %s871, 147 [#allocation2]
        %v1216 = vld [vmem:[%s1215] ss:$2 sm:$0xff]
        %v1217 = vpack.c.bf16 %v1204, %v1202
        %v1218 = vpack.c.bf16 %v1208, %v1206
        %v1219 = vpack.c.bf16 %v1212, %v1210
        %v1220 = vpack.c.bf16 %v1216, %v1214
        %s1221 = scalar_lea.vmem %s3, 32
        %v1222 = vld [vmem:[%s1221] sm:$0xf]
        %v1223 = vld [vmem:[%s1221 + $0x4] sm:$0xf]
        %v1224 = vld [vmem:[%s1221 + $0x8] sm:$0xf]
        %v1225 = vld [vmem:[%s1221 + $0xc] sm:$0xf]
        %v1230 = vunpack.c.l.b16 %v1222
        %v1231 = vunpack.c.l.b16 %v1223
        %v1232 = vunpack.c.l.b16 %v1224
        %v1233 = vunpack.c.l.b16 %v1225
        %v1234 = vpack.c.b16 %v1231, %v1230
        %v1235 = vpack.c.b16 %v1233, %v1232
        %v1239 = vsel %vm574, %v1217, 0
        %v1242 = vsel %vm574, %v1218, 0
        %v1245 = vsel %vm574, %v1219, 0
        %v1248 = vsel %vm574, %v1220, 0
        %1250 = vmatprep.subr.bf16.mxu0 0
        %1251 = vmatpush1.bf16.msra.mxu0 %v1234
        %1252 = vmatprep.subr.bf16.mxu0 0
        %1253 = vmatpush1.bf16.msra.mxu0 %v1235
        %1254 = vmatprep.subr.bf16.mxu0 0
        %1255 = vmatpush1.bf16.msra.mxu0 0
        %1256 = vmatprep.subr.bf16.mxu0 0
        %1257 = vmatpush1.bf16.msra.mxu0 0
        %1258 = vmatprep.subr.bf16.mxu0 0
        %1259 = vmatpush1.bf16.msra.mxu0 0
        %1260 = vmatprep.subr.bf16.mxu0 0
        %1261 = vmatpush1.bf16.msra.mxu0 0
        %1262 = vmatprep.subr.bf16.mxu0 0
        %1263 = vmatpush1.bf16.msra.mxu0 0
        %1264 = vmatprep.subr.bf16.mxu0 0
        %1265 = vmatpush1.bf16.msra.mxu0 0
        %1266 = vmatprep.subr.bf16.mxu0 0
        %1267 = vmatpush1.bf16.msra.mxu0 0
        %1268 = vmatprep.subr.bf16.mxu0 0
        %1269 = vmatpush1.bf16.msra.mxu0 0
        %1270 = vmatprep.subr.bf16.mxu0 0
        %1271 = vmatpush1.bf16.msra.mxu0 0
        %1272 = vmatprep.subr.bf16.mxu0 0
        %1273 = vmatpush1.bf16.msra.mxu0 0
        %1274 = vmatprep.subr.bf16.mxu0 0
        %1275 = vmatpush1.bf16.msra.mxu0 0
        %1276 = vmatprep.subr.bf16.mxu0 0
        %1277 = vmatpush1.bf16.msra.mxu0 0
        %1278 = vmatprep.subr.bf16.mxu0 0
        %1279 = vmatpush1.bf16.msra.mxu0 0
        %1280 = vmatprep.subr.bf16.mxu0 0
        %1281 = vmatpush1.bf16.msra.mxu0 0
        %1282 = vmatprep.mubr.bf16.mxu0 0
        %1283 = vmatmul.mubr.bf16.gmra.mrb[0].mxu0 %v966
        %v1284 = vpop.f32.mrb[0].mxu0
        %v1285 = vadd.f32 0.0, %v1284
        %v1286 = vpop.f32.mrb[0].mxu0
        %v1287 = vpop.f32.mrb[0].mxu0
        %v1288 = vadd.f32 0.0, %v1287
        %v1289 = vpop.f32.mrb[0].mxu0
        %1290 = vmatprep.mubr.bf16.mxu0 0
        %1291 = vmatmul.mubr.bf16.gmra.mrb[0].mxu0 %v969
        %v1292 = vpop.f32.mrb[0].mxu0
        %v1293 = vadd.f32 0.0, %v1292
        %v1294 = vpop.f32.mrb[0].mxu0
        %v1295 = vpop.f32.mrb[0].mxu0
        %v1296 = vadd.f32 0.0, %v1295
        %v1297 = vpop.f32.mrb[0].mxu0
        %1298 = vmatprep.mubr.bf16.mxu0 0
        %1299 = vmatmul.mubr.bf16.gmra.mrb[0].mxu0 %v1239
        %v1300 = vpop.f32.mrb[0].mxu0
        %v1301 = vadd.f32 0.0, %v1300
        %v1302 = vpop.f32.mrb[0].mxu0
        %v1303 = vpop.f32.mrb[0].mxu0
        %v1304 = vadd.f32 0.0, %v1303
        %v1305 = vpop.f32.mrb[0].mxu0
        %1306 = vmatprep.mubr.bf16.mxu0 0
        %1307 = vmatmul.mubr.bf16.gmra.mrb[0].mxu0 %v1242
        %v1308 = vpop.f32.mrb[0].mxu0
        %v1309 = vadd.f32 0.0, %v1308
        %v1310 = vpop.f32.mrb[0].mxu0
        %v1311 = vpop.f32.mrb[0].mxu0
        %v1312 = vadd.f32 0.0, %v1311
        %v1313 = vpop.f32.mrb[0].mxu0
        %1314 = vmatprep.mubr.bf16.mxu0 0
        %1315 = vmatmul.mubr.bf16.gmra.mrb[0].mxu0 %v978
        %v1316 = vpop.f32.mrb[0].mxu0
        %v1317 = vadd.f32 0.0, %v1316
        %v1318 = vpop.f32.mrb[0].mxu0
        %v1319 = vpop.f32.mrb[0].mxu0
        %v1320 = vadd.f32 0.0, %v1319
        %v1321 = vpop.f32.mrb[0].mxu0
        %1322 = vmatprep.mubr.bf16.mxu0 0
        %1323 = vmatmul.mubr.bf16.gmra.mrb[0].mxu0 %v981
        %v1324 = vpop.f32.mrb[0].mxu0
        %v1325 = vadd.f32 0.0, %v1324
        %v1326 = vpop.f32.mrb[0].mxu0
        %v1327 = vpop.f32.mrb[0].mxu0
        %v1328 = vadd.f32 0.0, %v1327
        %v1329 = vpop.f32.mrb[0].mxu0
        %1330 = vmatprep.mubr.bf16.mxu0 0
        %1331 = vmatmul.mubr.bf16.gmra.mrb[0].mxu0 %v1245
        %v1332 = vpop.f32.mrb[0].mxu0
        %v1333 = vadd.f32 0.0, %v1332
        %v1334 = vpop.f32.mrb[0].mxu0
        %v1335 = vpop.f32.mrb[0].mxu0
        %v1336 = vadd.f32 0.0, %v1335
        %v1337 = vpop.f32.mrb[0].mxu0
        %1338 = vmatprep.mubr.bf16.mxu0 0
        %1339 = vmatmul.mubr.bf16.gmra.mrb[0].mxu0 %v1248
        %v1340 = vpop.f32.mrb[0].mxu0
        %v1341 = vadd.f32 0.0, %v1340
        %v1342 = vpop.f32.mrb[0].mxu0
        %v1343 = vpop.f32.mrb[0].mxu0
        %v1344 = vadd.f32 0.0, %v1343
        %v1345 = vpop.f32.mrb[0].mxu0
        %1346 = vdwg.mxu0
        %v1347 = vadd.f32 %v1139, %v1285
        %v1348 = vadd.f32 %v1142, %v1288
        %v1349 = vadd.f32 %v1147, %v1293
        %v1350 = vadd.f32 %v1150, %v1296
        %v1351 = vadd.f32 %v1155, %v1301
        %v1352 = vadd.f32 %v1158, %v1304
        %v1353 = vadd.f32 %v1163, %v1309
        %v1354 = vadd.f32 %v1166, %v1312
        %v1355 = vadd.f32 %v1171, %v1317
        %v1356 = vadd.f32 %v1174, %v1320
        %v1357 = vadd.f32 %v1179, %v1325
        %v1358 = vadd.f32 %v1182, %v1328
        %v1359 = vadd.f32 %v1187, %v1333
        %v1360 = vadd.f32 %v1190, %v1336
        %v1361 = vadd.f32 %v1195, %v1341
        %v1362 = vadd.f32 %v1198, %v1344
        %s1363 = scalar_lea.vmem [#allocation2], 48
        %v1364 = vld [vmem:[%s1363] ss:$2 sm:$0xff]
        %s1365 = scalar_lea.vmem %s1363, 48 [#allocation2]
        %v1366 = vld [vmem:[%s1365] ss:$2 sm:$0xff]
        %s1367 = scalar_lea.vmem %s1363, 96 [#allocation2]
        %v1368 = vld [vmem:[%s1367] ss:$2 sm:$0xff]
        %s1369 = scalar_lea.vmem %s1363, 144 [#allocation2]
        %v1370 = vld [vmem:[%s1369] ss:$2 sm:$0xff]
        %s1371 = scalar_lea.vmem %s1363, 1 [#allocation2]
        %v1372 = vld [vmem:[%s1371] ss:$2 sm:$0xff]
        %s1373 = scalar_lea.vmem %s1363, 49 [#allocation2]
        %v1374 = vld [vmem:[%s1373] ss:$2 sm:$0xff]
        %s1375 = scalar_lea.vmem %s1363, 97 [#allocation2]
        %v1376 = vld [vmem:[%s1375] ss:$2 sm:$0xff]
        %s1377 = scalar_lea.vmem %s1363, 145 [#allocation2]
        %v1378 = vld [vmem:[%s1377] ss:$2 sm:$0xff]
        %v1379 = vpack.c.bf16 %v1366, %v1364
        %v1380 = vpack.c.bf16 %v1370, %v1368
        %v1381 = vpack.c.bf16 %v1374, %v1372
        %v1382 = vpack.c.bf16 %v1378, %v1376
        %s1383 = scalar_lea.vmem %s3, 48
        %v1384 = vld [vmem:[%s1383] sm:$0xf]
        %v1385 = vld [vmem:[%s1383 + $0x4] sm:$0xf]
        %v1386 = vld [vmem:[%s1383 + $0x8] sm:$0xf]
        %v1387 = vld [vmem:[%s1383 + $0xc] sm:$0xf]
        %v1392 = vunpack.c.l.b16 %v1384
        %v1393 = vunpack.c.l.b16 %v1385
        %v1394 = vunpack.c.l.b16 %v1386
        %v1395 = vunpack.c.l.b16 %v1387
        %v1396 = vpack.c.b16 %v1393, %v1392
        %v1397 = vpack.c.b16 %v1395, %v1394
        %v1401 = vsel %vm574, %v1379, 0
        %v1404 = vsel %vm574, %v1380, 0
        %v1407 = vsel %vm574, %v1381, 0
        %v1410 = vsel %vm574, %v1382, 0
        %1412 = vmatprep.subr.bf16.mxu0 0
        %1413 = vmatpush1.bf16.msra.mxu0 %v1396
        %1414 = vmatprep.subr.bf16.mxu0 0
        %1415 = vmatpush1.bf16.msra.mxu0 %v1397
        %1416 = vmatprep.subr.bf16.mxu0 0
        %1417 = vmatpush1.bf16.msra.mxu0 0
        %1418 = vmatprep.subr.bf16.mxu0 0
        %1419 = vmatpush1.bf16.msra.mxu0 0
        %1420 = vmatprep.subr.bf16.mxu0 0
        %1421 = vmatpush1.bf16.msra.mxu0 0
        %1422 = vmatprep.subr.bf16.mxu0 0
        %1423 = vmatpush1.bf16.msra.mxu0 0
        %1424 = vmatprep.subr.bf16.mxu0 0
        %1425 = vmatpush1.bf16.msra.mxu0 0
        %1426 = vmatprep.subr.bf16.mxu0 0
        %1427 = vmatpush1.bf16.msra.mxu0 0
        %1428 = vmatprep.subr.bf16.mxu0 0
        %1429 = vmatpush1.bf16.msra.mxu0 0
        %1430 = vmatprep.subr.bf16.mxu0 0
        %1431 = vmatpush1.bf16.msra.mxu0 0
        %1432 = vmatprep.subr.bf16.mxu0 0
        %1433 = vmatpush1.bf16.msra.mxu0 0
        %1434 = vmatprep.subr.bf16.mxu0 0
        %1435 = vmatpush1.bf16.msra.mxu0 0
        %1436 = vmatprep.subr.bf16.mxu0 0
        %1437 = vmatpush1.bf16.msra.mxu0 0
        %1438 = vmatprep.subr.bf16.mxu0 0
        %1439 = vmatpush1.bf16.msra.mxu0 0
        %1440 = vmatprep.subr.bf16.mxu0 0
        %1441 = vmatpush1.bf16.msra.mxu0 0
        %1442 = vmatprep.subr.bf16.mxu0 0
        %1443 = vmatpush1.bf16.msra.mxu0 0
        %1444 = vmatprep.mubr.bf16.mxu0 0
        %1445 = vmatmul.mubr.bf16.gmra.mrb[0].mxu0 %v1099
        %v1446 = vpop.f32.mrb[0].mxu0
        %v1447 = vadd.f32 0.0, %v1446
        %v1448 = vpop.f32.mrb[0].mxu0
        %v1449 = vpop.f32.mrb[0].mxu0
        %v1450 = vadd.f32 0.0, %v1449
        %v1451 = vpop.f32.mrb[0].mxu0
        %1452 = vmatprep.mubr.bf16.mxu0 0
        %1453 = vmatmul.mubr.bf16.gmra.mrb[0].mxu0 %v1102
        %v1454 = vpop.f32.mrb[0].mxu0
        %v1455 = vadd.f32 0.0, %v1454
        %v1456 = vpop.f32.mrb[0].mxu0
        %v1457 = vpop.f32.mrb[0].mxu0
        %v1458 = vadd.f32 0.0, %v1457
        %v1459 = vpop.f32.mrb[0].mxu0
        %1460 = vmatprep.mubr.bf16.mxu0 0
        %1461 = vmatmul.mubr.bf16.gmra.mrb[0].mxu0 %v972
        %v1462 = vpop.f32.mrb[0].mxu0
        %v1463 = vadd.f32 0.0, %v1462
        %v1464 = vpop.f32.mrb[0].mxu0
        %v1465 = vpop.f32.mrb[0].mxu0
        %v1466 = vadd.f32 0.0, %v1465
        %v1467 = vpop.f32.mrb[0].mxu0
        %1468 = vmatprep.mubr.bf16.mxu0 0
        %1469 = vmatmul.mubr.bf16.gmra.mrb[0].mxu0 %v975
        %v1470 = vpop.f32.mrb[0].mxu0
        %v1471 = vadd.f32 0.0, %v1470
        %v1472 = vpop.f32.mrb[0].mxu0
        %v1473 = vpop.f32.mrb[0].mxu0
        %v1474 = vadd.f32 0.0, %v1473
        %v1475 = vpop.f32.mrb[0].mxu0
        %1476 = vmatprep.mubr.bf16.mxu0 0
        %1477 = vmatmul.mubr.bf16.gmra.mrb[0].mxu0 %v1401
        %v1478 = vpop.f32.mrb[0].mxu0
        %v1479 = vadd.f32 0.0, %v1478
        %v1480 = vpop.f32.mrb[0].mxu0
        %v1481 = vpop.f32.mrb[0].mxu0
        %v1482 = vadd.f32 0.0, %v1481
        %v1483 = vpop.f32.mrb[0].mxu0
        %1484 = vmatprep.mubr.bf16.mxu0 0
        %1485 = vmatmul.mubr.bf16.gmra.mrb[0].mxu0 %v1404
        %v1486 = vpop.f32.mrb[0].mxu0
        %v1487 = vadd.f32 0.0, %v1486
        %v1488 = vpop.f32.mrb[0].mxu0
        %v1489 = vpop.f32.mrb[0].mxu0
        %v1490 = vadd.f32 0.0, %v1489
        %v1491 = vpop.f32.mrb[0].mxu0
        %1492 = vmatprep.mubr.bf16.mxu0 0
        %1493 = vmatmul.mubr.bf16.gmra.mrb[0].mxu0 %v1407
        %v1494 = vpop.f32.mrb[0].mxu0
        %v1495 = vadd.f32 0.0, %v1494
        %v1496 = vpop.f32.mrb[0].mxu0
        %v1497 = vpop.f32.mrb[0].mxu0
        %v1498 = vadd.f32 0.0, %v1497
        %v1499 = vpop.f32.mrb[0].mxu0
        %1500 = vmatprep.mubr.bf16.mxu0 0
        %1501 = vmatmul.mubr.bf16.gmra.mrb[0].mxu0 %v1410
        %v1502 = vpop.f32.mrb[0].mxu0
        %v1503 = vadd.f32 0.0, %v1502
        %v1504 = vpop.f32.mrb[0].mxu0
        %v1505 = vpop.f32.mrb[0].mxu0
        %v1506 = vadd.f32 0.0, %v1505
        %v1507 = vpop.f32.mrb[0].mxu0
        %1508 = vdwg.mxu0
        %v1509 = vadd.f32 %v1347, %v1447
        %v1510 = vadd.f32 %v1348, %v1450
        %v1511 = vadd.f32 %v1349, %v1455
        %v1512 = vadd.f32 %v1350, %v1458
        %v1513 = vadd.f32 %v1351, %v1463
        %v1514 = vadd.f32 %v1352, %v1466
        %v1515 = vadd.f32 %v1353, %v1471
        %v1516 = vadd.f32 %v1354, %v1474
        %v1517 = vadd.f32 %v1355, %v1479
        %v1518 = vadd.f32 %v1356, %v1482
        %v1519 = vadd.f32 %v1357, %v1487
        %v1520 = vadd.f32 %v1358, %v1490
        %v1521 = vadd.f32 %v1359, %v1495
        %v1522 = vadd.f32 %v1360, %v1498
        %v1523 = vadd.f32 %v1361, %v1503
        %v1524 = vadd.f32 %v1362, %v1506
        %s1525 = scalar_lea.vmem %s1363, 2 [#allocation2]
        %v1526 = vld [vmem:[%s1525] ss:$2 sm:$0xff]
        %s1527 = scalar_lea.vmem %s1363, 50 [#allocation2]
        %v1528 = vld [vmem:[%s1527] ss:$2 sm:$0xff]
        %s1529 = scalar_lea.vmem %s1363, 98 [#allocation2]
        %v1530 = vld [vmem:[%s1529] ss:$2 sm:$0xff]
        %s1531 = scalar_lea.vmem %s1363, 146 [#allocation2]
        %v1532 = vld [vmem:[%s1531] ss:$2 sm:$0xff]
        %v1533 = vpack.c.bf16 %v1528, %v1526
        %v1534 = vpack.c.bf16 %v1532, %v1530
        %s1535 = scalar_lea.vmem %s3, 64
        %v1536 = vld [vmem:[%s1535] sm:$0xf]
        %v1537 = vld [vmem:[%s1535 + $0x4] sm:$0xf]
        %v1538 = vld [vmem:[%s1535 + $0x8] sm:$0xf]
        %v1539 = vld [vmem:[%s1535 + $0xc] sm:$0xf]
        %v1544 = vunpack.c.l.b16 %v1536
        %v1545 = vunpack.c.l.b16 %v1537
        %v1546 = vunpack.c.l.b16 %v1538
        %v1547 = vunpack.c.l.b16 %v1539
        %v1548 = vpack.c.b16 %v1545, %v1544
        %v1549 = vpack.c.b16 %v1547, %v1546
        %v1553 = vsel %vm574, %v1533, 0
        %v1556 = vsel %vm574, %v1534, 0
        %1558 = vmatprep.subr.bf16.mxu0 0
        %1559 = vmatpush1.bf16.msra.mxu0 %v1548
        %1560 = vmatprep.subr.bf16.mxu0 0
        %1561 = vmatpush1.bf16.msra.mxu0 %v1549
        %1562 = vmatprep.subr.bf16.mxu0 0
        %1563 = vmatpush1.bf16.msra.mxu0 0
        %1564 = vmatprep.subr.bf16.mxu0 0
        %1565 = vmatpush1.bf16.msra.mxu0 0
        %1566 = vmatprep.subr.bf16.mxu0 0
        %1567 = vmatpush1.bf16.msra.mxu0 0
        %1568 = vmatprep.subr.bf16.mxu0 0
        %1569 = vmatpush1.bf16.msra.mxu0 0
        %1570 = vmatprep.subr.bf16.mxu0 0
        %1571 = vmatpush1.bf16.msra.mxu0 0
        %1572 = vmatprep.subr.bf16.mxu0 0
        %1573 = vmatpush1.bf16.msra.mxu0 0
        %1574 = vmatprep.subr.bf16.mxu0 0
        %1575 = vmatpush1.bf16.msra.mxu0 0
        %1576 = vmatprep.subr.bf16.mxu0 0
        %1577 = vmatpush1.bf16.msra.mxu0 0
        %1578 = vmatprep.subr.bf16.mxu0 0
        %1579 = vmatpush1.bf16.msra.mxu0 0
        %1580 = vmatprep.subr.bf16.mxu0 0
        %1581 = vmatpush1.bf16.msra.mxu0 0
        %1582 = vmatprep.subr.bf16.mxu0 0
        %1583 = vmatpush1.bf16.msra.mxu0 0
        %1584 = vmatprep.subr.bf16.mxu0 0
        %1585 = vmatpush1.bf16.msra.mxu0 0
        %1586 = vmatprep.subr.bf16.mxu0 0
        %1587 = vmatpush1.bf16.msra.mxu0 0
        %1588 = vmatprep.subr.bf16.mxu0 0
        %1589 = vmatpush1.bf16.msra.mxu0 0
        %1590 = vmatprep.mubr.bf16.mxu0 0
        %1591 = vmatmul.mubr.bf16.gmra.mrb[0].mxu0 %v972
        %v1592 = vpop.f32.mrb[0].mxu0
        %v1593 = vadd.f32 0.0, %v1592
        %v1594 = vpop.f32.mrb[0].mxu0
        %v1595 = vpop.f32.mrb[0].mxu0
        %v1596 = vadd.f32 0.0, %v1595
        %v1597 = vpop.f32.mrb[0].mxu0
        %1598 = vmatprep.mubr.bf16.mxu0 0
        %1599 = vmatmul.mubr.bf16.gmra.mrb[0].mxu0 %v975
        %v1600 = vpop.f32.mrb[0].mxu0
        %v1601 = vadd.f32 0.0, %v1600
        %v1602 = vpop.f32.mrb[0].mxu0
        %v1603 = vpop.f32.mrb[0].mxu0
        %v1604 = vadd.f32 0.0, %v1603
        %v1605 = vpop.f32.mrb[0].mxu0
        %1606 = vmatprep.mubr.bf16.mxu0 0
        %1607 = vmatmul.mubr.bf16.gmra.mrb[0].mxu0 %v978
        %v1608 = vpop.f32.mrb[0].mxu0
        %v1609 = vadd.f32 0.0, %v1608
        %v1610 = vpop.f32.mrb[0].mxu0
        %v1611 = vpop.f32.mrb[0].mxu0
        %v1612 = vadd.f32 0.0, %v1611
        %v1613 = vpop.f32.mrb[0].mxu0
        %1614 = vmatprep.mubr.bf16.mxu0 0
        %1615 = vmatmul.mubr.bf16.gmra.mrb[0].mxu0 %v981
        %v1616 = vpop.f32.mrb[0].mxu0
        %v1617 = vadd.f32 0.0, %v1616
        %v1618 = vpop.f32.mrb[0].mxu0
        %v1619 = vpop.f32.mrb[0].mxu0
        %v1620 = vadd.f32 0.0, %v1619
        %v1621 = vpop.f32.mrb[0].mxu0
        %1622 = vmatprep.mubr.bf16.mxu0 0
        %1623 = vmatmul.mubr.bf16.gmra.mrb[0].mxu0 %v1407
        %v1624 = vpop.f32.mrb[0].mxu0
        %v1625 = vadd.f32 0.0, %v1624
        %v1626 = vpop.f32.mrb[0].mxu0
        %v1627 = vpop.f32.mrb[0].mxu0
        %v1628 = vadd.f32 0.0, %v1627
        %v1629 = vpop.f32.mrb[0].mxu0
        %1630 = vmatprep.mubr.bf16.mxu0 0
        %1631 = vmatmul.mubr.bf16.gmra.mrb[0].mxu0 %v1410
        %v1632 = vpop.f32.mrb[0].mxu0
        %v1633 = vadd.f32 0.0, %v1632
        %v1634 = vpop.f32.mrb[0].mxu0
        %v1635 = vpop.f32.mrb[0].mxu0
        %v1636 = vadd.f32 0.0, %v1635
        %v1637 = vpop.f32.mrb[0].mxu0
        %1638 = vmatprep.mubr.bf16.mxu0 0
        %1639 = vmatmul.mubr.bf16.gmra.mrb[0].mxu0 %v1553
        %v1640 = vpop.f32.mrb[0].mxu0
        %v1641 = vadd.f32 0.0, %v1640
        %v1642 = vpop.f32.mrb[0].mxu0
        %v1643 = vpop.f32.mrb[0].mxu0
        %v1644 = vadd.f32 0.0, %v1643
        %v1645 = vpop.f32.mrb[0].mxu0
        %1646 = vmatprep.mubr.bf16.mxu0 0
        %1647 = vmatmul.mubr.bf16.gmra.mrb[0].mxu0 %v1556
        %v1648 = vpop.f32.mrb[0].mxu0
        %v1649 = vadd.f32 0.0, %v1648
        %v1650 = vpop.f32.mrb[0].mxu0
        %v1651 = vpop.f32.mrb[0].mxu0
        %v1652 = vadd.f32 0.0, %v1651
        %v1653 = vpop.f32.mrb[0].mxu0
        %1654 = vdwg.mxu0
        %v1655 = vadd.f32 %v1509, %v1593
        %v1656 = vadd.f32 %v1510, %v1596
        %v1657 = vadd.f32 %v1511, %v1601
        %v1658 = vadd.f32 %v1512, %v1604
        %v1659 = vadd.f32 %v1513, %v1609
        %v1660 = vadd.f32 %v1514, %v1612
        %v1661 = vadd.f32 %v1515, %v1617
        %v1662 = vadd.f32 %v1516, %v1620
        %v1663 = vadd.f32 %v1517, %v1625
        %v1664 = vadd.f32 %v1518, %v1628
        %v1665 = vadd.f32 %v1519, %v1633
        %v1666 = vadd.f32 %v1520, %v1636
        %v1667 = vadd.f32 %v1521, %v1641
        %v1668 = vadd.f32 %v1522, %v1644
        %v1669 = vadd.f32 %v1523, %v1649
        %v1670 = vadd.f32 %v1524, %v1652
        %s1671 = scalar_lea.vmem %s1363, 3 [#allocation2]
        %v1672 = vld [vmem:[%s1671] ss:$2 sm:$0xff]
        %s1673 = scalar_lea.vmem %s1363, 51 [#allocation2]
        %v1674 = vld [vmem:[%s1673] ss:$2 sm:$0xff]
        %s1675 = scalar_lea.vmem %s1363, 99 [#allocation2]
        %v1676 = vld [vmem:[%s1675] ss:$2 sm:$0xff]
        %s1677 = scalar_lea.vmem %s1363, 147 [#allocation2]
        %v1678 = vld [vmem:[%s1677] ss:$2 sm:$0xff]
        %v1679 = vpack.c.bf16 %v1674, %v1672
        %v1680 = vpack.c.bf16 %v1678, %v1676
        %s1681 = scalar_lea.vmem %s3, 80
        %v1682 = vld [vmem:[%s1681] sm:$0xf]
        %v1683 = vld [vmem:[%s1681 + $0x4] sm:$0xf]
        %v1684 = vld [vmem:[%s1681 + $0x8] sm:$0xf]
        %v1685 = vld [vmem:[%s1681 + $0xc] sm:$0xf]
        %v1690 = vunpack.c.l.b16 %v1682
        %v1691 = vunpack.c.l.b16 %v1683
        %v1692 = vunpack.c.l.b16 %v1684
        %v1693 = vunpack.c.l.b16 %v1685
        %v1694 = vpack.c.b16 %v1691, %v1690
        %v1695 = vpack.c.b16 %v1693, %v1692
        %v1699 = vsel %vm574, %v1679, 0
        %v1702 = vsel %vm574, %v1680, 0
        %1704 = vmatprep.subr.bf16.mxu0 0
        %1705 = vmatpush1.bf16.msra.mxu0 %v1694
        %1706 = vmatprep.subr.bf16.mxu0 0
        %1707 = vmatpush1.bf16.msra.mxu0 %v1695
        %1708 = vmatprep.subr.bf16.mxu0 0
        %1709 = vmatpush1.bf16.msra.mxu0 0
        %1710 = vmatprep.subr.bf16.mxu0 0
        %1711 = vmatpush1.bf16.msra.mxu0 0
        %1712 = vmatprep.subr.bf16.mxu0 0
        %1713 = vmatpush1.bf16.msra.mxu0 0
        %1714 = vmatprep.subr.bf16.mxu0 0
        %1715 = vmatpush1.bf16.msra.mxu0 0
        %1716 = vmatprep.subr.bf16.mxu0 0
        %1717 = vmatpush1.bf16.msra.mxu0 0
        %1718 = vmatprep.subr.bf16.mxu0 0
        %1719 = vmatpush1.bf16.msra.mxu0 0
        %1720 = vmatprep.subr.bf16.mxu0 0
        %1721 = vmatpush1.bf16.msra.mxu0 0
        %1722 = vmatprep.subr.bf16.mxu0 0
        %1723 = vmatpush1.bf16.msra.mxu0 0
        %1724 = vmatprep.subr.bf16.mxu0 0
        %1725 = vmatpush1.bf16.msra.mxu0 0
        %1726 = vmatprep.subr.bf16.mxu0 0
        %1727 = vmatpush1.bf16.msra.mxu0 0
        %1728 = vmatprep.subr.bf16.mxu0 0
        %1729 = vmatpush1.bf16.msra.mxu0 0
        %1730 = vmatprep.subr.bf16.mxu0 0
        %1731 = vmatpush1.bf16.msra.mxu0 0
        %1732 = vmatprep.subr.bf16.mxu0 0
        %1733 = vmatpush1.bf16.msra.mxu0 0
        %1734 = vmatprep.subr.bf16.mxu0 0
        %1735 = vmatpush1.bf16.msra.mxu0 0
        %1736 = vmatprep.mubr.bf16.mxu0 0
        %1737 = vmatmul.mubr.bf16.gmra.mrb[0].mxu0 %v978
        %v1738 = vpop.f32.mrb[0].mxu0
        %v1739 = vadd.f32 0.0, %v1738
        %v1740 = vpop.f32.mrb[0].mxu0
        %v1741 = vpop.f32.mrb[0].mxu0
        %v1742 = vadd.f32 0.0, %v1741
        %v1743 = vpop.f32.mrb[0].mxu0
        %1744 = vmatprep.mubr.bf16.mxu0 0
        %1745 = vmatmul.mubr.bf16.gmra.mrb[0].mxu0 %v981
        %v1746 = vpop.f32.mrb[0].mxu0
        %v1747 = vadd.f32 0.0, %v1746
        %v1748 = vpop.f32.mrb[0].mxu0
        %v1749 = vpop.f32.mrb[0].mxu0
        %v1750 = vadd.f32 0.0, %v1749
        %v1751 = vpop.f32.mrb[0].mxu0
        %1752 = vmatprep.mubr.bf16.mxu0 0
        %1753 = vmatmul.mubr.bf16.gmra.mrb[0].mxu0 %v1245
        %v1754 = vpop.f32.mrb[0].mxu0
        %v1755 = vadd.f32 0.0, %v1754
        %v1756 = vpop.f32.mrb[0].mxu0
        %v1757 = vpop.f32.mrb[0].mxu0
        %v1758 = vadd.f32 0.0, %v1757
        %v1759 = vpop.f32.mrb[0].mxu0
        %1760 = vmatprep.mubr.bf16.mxu0 0
        %1761 = vmatmul.mubr.bf16.gmra.mrb[0].mxu0 %v1248
        %v1762 = vpop.f32.mrb[0].mxu0
        %v1763 = vadd.f32 0.0, %v1762
        %v1764 = vpop.f32.mrb[0].mxu0
        %v1765 = vpop.f32.mrb[0].mxu0
        %v1766 = vadd.f32 0.0, %v1765
        %v1767 = vpop.f32.mrb[0].mxu0
        %1768 = vmatprep.mubr.bf16.mxu0 0
        %1769 = vmatmul.mubr.bf16.gmra.mrb[0].mxu0 %v1553
        %v1770 = vpop.f32.mrb[0].mxu0
        %v1771 = vadd.f32 0.0, %v1770
        %v1772 = vpop.f32.mrb[0].mxu0
        %v1773 = vpop.f32.mrb[0].mxu0
        %v1774 = vadd.f32 0.0, %v1773
        %v1775 = vpop.f32.mrb[0].mxu0
        %1776 = vmatprep.mubr.bf16.mxu0 0
        %1777 = vmatmul.mubr.bf16.gmra.mrb[0].mxu0 %v1556
        %v1778 = vpop.f32.mrb[0].mxu0
        %v1779 = vadd.f32 0.0, %v1778
        %v1780 = vpop.f32.mrb[0].mxu0
        %v1781 = vpop.f32.mrb[0].mxu0
        %v1782 = vadd.f32 0.0, %v1781
        %v1783 = vpop.f32.mrb[0].mxu0
        %1784 = vmatprep.mubr.bf16.mxu0 0
        %1785 = vmatmul.mubr.bf16.gmra.mrb[0].mxu0 %v1699
        %v1786 = vpop.f32.mrb[0].mxu0
        %v1787 = vadd.f32 0.0, %v1786
        %v1788 = vpop.f32.mrb[0].mxu0
        %v1789 = vpop.f32.mrb[0].mxu0
        %v1790 = vadd.f32 0.0, %v1789
        %v1791 = vpop.f32.mrb[0].mxu0
        %1792 = vmatprep.mubr.bf16.mxu0 0
        %1793 = vmatmul.mubr.bf16.gmra.mrb[0].mxu0 %v1702
        %v1794 = vpop.f32.mrb[0].mxu0
        %v1795 = vadd.f32 0.0, %v1794
        %v1796 = vpop.f32.mrb[0].mxu0
        %v1797 = vpop.f32.mrb[0].mxu0
        %v1798 = vadd.f32 0.0, %v1797
        %v1799 = vpop.f32.mrb[0].mxu0
        %1800 = vdwg.mxu0
        %v1801 = vadd.f32 %v1655, %v1739
        %v1802 = vadd.f32 %v1656, %v1742
        %v1803 = vadd.f32 %v1657, %v1747
        %v1804 = vadd.f32 %v1658, %v1750
        %v1805 = vadd.f32 %v1659, %v1755
        %v1806 = vadd.f32 %v1660, %v1758
        %v1807 = vadd.f32 %v1661, %v1763
        %v1808 = vadd.f32 %v1662, %v1766
        %v1809 = vadd.f32 %v1663, %v1771
        %v1810 = vadd.f32 %v1664, %v1774
        %v1811 = vadd.f32 %v1665, %v1779
        %v1812 = vadd.f32 %v1666, %v1782
        %v1813 = vadd.f32 %v1667, %v1787
        %v1814 = vadd.f32 %v1668, %v1790
        %v1815 = vadd.f32 %v1669, %v1795
        %v1816 = vadd.f32 %v1670, %v1798
        %s1817 = scalar_lea.vmem [#allocation2], 72
        %v1818 = vld [vmem:[%s1817] ss:$2 sm:$0xff]
        %s1819 = scalar_lea.vmem %s1817, 48 [#allocation2]
        %v1820 = vld [vmem:[%s1819] ss:$2 sm:$0xff]
        %s1821 = scalar_lea.vmem %s1817, 96 [#allocation2]
        %v1822 = vld [vmem:[%s1821] ss:$2 sm:$0xff]
        %s1823 = scalar_lea.vmem %s1817, 144 [#allocation2]
        %v1824 = vld [vmem:[%s1823] ss:$2 sm:$0xff]
        %s1825 = scalar_lea.vmem %s1817, 1 [#allocation2]
        %v1826 = vld [vmem:[%s1825] ss:$2 sm:$0xff]
        %s1827 = scalar_lea.vmem %s1817, 49 [#allocation2]
        %v1828 = vld [vmem:[%s1827] ss:$2 sm:$0xff]
        %s1829 = scalar_lea.vmem %s1817, 97 [#allocation2]
        %v1830 = vld [vmem:[%s1829] ss:$2 sm:$0xff]
        %s1831 = scalar_lea.vmem %s1817, 145 [#allocation2]
        %v1832 = vld [vmem:[%s1831] ss:$2 sm:$0xff]
        %v1833 = vpack.c.bf16 %v1820, %v1818
        %v1834 = vpack.c.bf16 %v1824, %v1822
        %v1835 = vpack.c.bf16 %v1828, %v1826
        %v1836 = vpack.c.bf16 %v1832, %v1830
        %s1837 = scalar_lea.vmem %s3, 96
        %v1838 = vld [vmem:[%s1837] sm:$0xf]
        %v1839 = vld [vmem:[%s1837 + $0x4] sm:$0xf]
        %v1840 = vld [vmem:[%s1837 + $0x8] sm:$0xf]
        %v1841 = vld [vmem:[%s1837 + $0xc] sm:$0xf]
        %v1846 = vunpack.c.l.b16 %v1838
        %v1847 = vunpack.c.l.b16 %v1839
        %v1848 = vunpack.c.l.b16 %v1840
        %v1849 = vunpack.c.l.b16 %v1841
        %v1850 = vpack.c.b16 %v1847, %v1846
        %v1851 = vpack.c.b16 %v1849, %v1848
        %v1855 = vsel %vm574, %v1833, 0
        %v1858 = vsel %vm574, %v1834, 0
        %v1861 = vsel %vm574, %v1835, 0
        %v1864 = vsel %vm574, %v1836, 0
        %1866 = vmatprep.subr.bf16.mxu0 0
        %1867 = vmatpush1.bf16.msra.mxu0 %v1850
        %1868 = vmatprep.subr.bf16.mxu0 0
        %1869 = vmatpush1.bf16.msra.mxu0 %v1851
        %1870 = vmatprep.subr.bf16.mxu0 0
        %1871 = vmatpush1.bf16.msra.mxu0 0
        %1872 = vmatprep.subr.bf16.mxu0 0
        %1873 = vmatpush1.bf16.msra.mxu0 0
        %1874 = vmatprep.subr.bf16.mxu0 0
        %1875 = vmatpush1.bf16.msra.mxu0 0
        %1876 = vmatprep.subr.bf16.mxu0 0
        %1877 = vmatpush1.bf16.msra.mxu0 0
        %1878 = vmatprep.subr.bf16.mxu0 0
        %1879 = vmatpush1.bf16.msra.mxu0 0
        %1880 = vmatprep.subr.bf16.mxu0 0
        %1881 = vmatpush1.bf16.msra.mxu0 0
        %1882 = vmatprep.subr.bf16.mxu0 0
        %1883 = vmatpush1.bf16.msra.mxu0 0
        %1884 = vmatprep.subr.bf16.mxu0 0
        %1885 = vmatpush1.bf16.msra.mxu0 0
        %1886 = vmatprep.subr.bf16.mxu0 0
        %1887 = vmatpush1.bf16.msra.mxu0 0
        %1888 = vmatprep.subr.bf16.mxu0 0
        %1889 = vmatpush1.bf16.msra.mxu0 0
        %1890 = vmatprep.subr.bf16.mxu0 0
        %1891 = vmatpush1.bf16.msra.mxu0 0
        %1892 = vmatprep.subr.bf16.mxu0 0
        %1893 = vmatpush1.bf16.msra.mxu0 0
        %1894 = vmatprep.subr.bf16.mxu0 0
        %1895 = vmatpush1.bf16.msra.mxu0 0
        %1896 = vmatprep.subr.bf16.mxu0 0
        %1897 = vmatpush1.bf16.msra.mxu0 0
        %1898 = vmatprep.mubr.bf16.mxu0 0
        %1899 = vmatmul.mubr.bf16.gmra.mrb[0].mxu0 %v1401
        %v1900 = vpop.f32.mrb[0].mxu0
        %v1901 = vadd.f32 0.0, %v1900
        %v1902 = vpop.f32.mrb[0].mxu0
        %v1903 = vpop.f32.mrb[0].mxu0
        %v1904 = vadd.f32 0.0, %v1903
        %v1905 = vpop.f32.mrb[0].mxu0
        %1906 = vmatprep.mubr.bf16.mxu0 0
        %1907 = vmatmul.mubr.bf16.gmra.mrb[0].mxu0 %v1404
        %v1908 = vpop.f32.mrb[0].mxu0
        %v1909 = vadd.f32 0.0, %v1908
        %v1910 = vpop.f32.mrb[0].mxu0
        %v1911 = vpop.f32.mrb[0].mxu0
        %v1912 = vadd.f32 0.0, %v1911
        %v1913 = vpop.f32.mrb[0].mxu0
        %1914 = vmatprep.mubr.bf16.mxu0 0
        %1915 = vmatmul.mubr.bf16.gmra.mrb[0].mxu0 %v1407
        %v1916 = vpop.f32.mrb[0].mxu0
        %v1917 = vadd.f32 0.0, %v1916
        %v1918 = vpop.f32.mrb[0].mxu0
        %v1919 = vpop.f32.mrb[0].mxu0
        %v1920 = vadd.f32 0.0, %v1919
        %v1921 = vpop.f32.mrb[0].mxu0
        %1922 = vmatprep.mubr.bf16.mxu0 0
        %1923 = vmatmul.mubr.bf16.gmra.mrb[0].mxu0 %v1410
        %v1924 = vpop.f32.mrb[0].mxu0
        %v1925 = vadd.f32 0.0, %v1924
        %v1926 = vpop.f32.mrb[0].mxu0
        %v1927 = vpop.f32.mrb[0].mxu0
        %v1928 = vadd.f32 0.0, %v1927
        %v1929 = vpop.f32.mrb[0].mxu0
        %1930 = vmatprep.mubr.bf16.mxu0 0
        %1931 = vmatmul.mubr.bf16.gmra.mrb[0].mxu0 %v1855
        %v1932 = vpop.f32.mrb[0].mxu0
        %v1933 = vadd.f32 0.0, %v1932
        %v1934 = vpop.f32.mrb[0].mxu0
        %v1935 = vpop.f32.mrb[0].mxu0
        %v1936 = vadd.f32 0.0, %v1935
        %v1937 = vpop.f32.mrb[0].mxu0
        %1938 = vmatprep.mubr.bf16.mxu0 0
        %1939 = vmatmul.mubr.bf16.gmra.mrb[0].mxu0 %v1858
        %v1940 = vpop.f32.mrb[0].mxu0
        %v1941 = vadd.f32 0.0, %v1940
        %v1942 = vpop.f32.mrb[0].mxu0
        %v1943 = vpop.f32.mrb[0].mxu0
        %v1944 = vadd.f32 0.0, %v1943
        %v1945 = vpop.f32.mrb[0].mxu0
        %1946 = vmatprep.mubr.bf16.mxu0 0
        %1947 = vmatmul.mubr.bf16.gmra.mrb[0].mxu0 %v1861
        %v1948 = vpop.f32.mrb[0].mxu0
        %v1949 = vadd.f32 0.0, %v1948
        %v1950 = vpop.f32.mrb[0].mxu0
        %v1951 = vpop.f32.mrb[0].mxu0
        %v1952 = vadd.f32 0.0, %v1951
        %v1953 = vpop.f32.mrb[0].mxu0
        %1954 = vmatprep.mubr.bf16.mxu0 0
        %1955 = vmatmul.mubr.bf16.gmra.mrb[0].mxu0 %v1864
        %v1956 = vpop.f32.mrb[0].mxu0
        %v1957 = vadd.f32 0.0, %v1956
        %v1958 = vpop.f32.mrb[0].mxu0
        %v1959 = vpop.f32.mrb[0].mxu0
        %v1960 = vadd.f32 0.0, %v1959
        %v1961 = vpop.f32.mrb[0].mxu0
        %1962 = vdwg.mxu0
        %v1963 = vadd.f32 %v1801, %v1901
        %v1964 = vadd.f32 %v1802, %v1904
        %v1965 = vadd.f32 %v1803, %v1909
        %v1966 = vadd.f32 %v1804, %v1912
        %v1967 = vadd.f32 %v1805, %v1917
        %v1968 = vadd.f32 %v1806, %v1920
        %v1969 = vadd.f32 %v1807, %v1925
        %v1970 = vadd.f32 %v1808, %v1928
        %v1971 = vadd.f32 %v1809, %v1933
        %v1972 = vadd.f32 %v1810, %v1936
        %v1973 = vadd.f32 %v1811, %v1941
        %v1974 = vadd.f32 %v1812, %v1944
        %v1975 = vadd.f32 %v1813, %v1949
        %v1976 = vadd.f32 %v1814, %v1952
        %v1977 = vadd.f32 %v1815, %v1957
        %v1978 = vadd.f32 %v1816, %v1960
        %s1979 = scalar_lea.vmem %s1817, 2 [#allocation2]
        %v1980 = vld [vmem:[%s1979] ss:$2 sm:$0xff]
        %s1981 = scalar_lea.vmem %s1817, 50 [#allocation2]
        %v1982 = vld [vmem:[%s1981] ss:$2 sm:$0xff]
        %s1983 = scalar_lea.vmem %s1817, 98 [#allocation2]
        %v1984 = vld [vmem:[%s1983] ss:$2 sm:$0xff]
        %s1985 = scalar_lea.vmem %s1817, 146 [#allocation2]
        %v1986 = vld [vmem:[%s1985] ss:$2 sm:$0xff]
        %v1987 = vpack.c.bf16 %v1982, %v1980
        %v1988 = vpack.c.bf16 %v1986, %v1984
        %s1989 = scalar_lea.vmem %s3, 112
        %v1990 = vld [vmem:[%s1989] sm:$0xf]
        %v1991 = vld [vmem:[%s1989 + $0x4] sm:$0xf]
        %v1992 = vld [vmem:[%s1989 + $0x8] sm:$0xf]
        %v1993 = vld [vmem:[%s1989 + $0xc] sm:$0xf]
        %v1998 = vunpack.c.l.b16 %v1990
        %v1999 = vunpack.c.l.b16 %v1991
        %v2000 = vunpack.c.l.b16 %v1992
        %v2001 = vunpack.c.l.b16 %v1993
        %v2002 = vpack.c.b16 %v1999, %v1998
        %v2003 = vpack.c.b16 %v2001, %v2000
        %v2007 = vsel %vm574, %v1987, 0
        %v2010 = vsel %vm574, %v1988, 0
        %2012 = vmatprep.subr.bf16.mxu0 0
        %2013 = vmatpush1.bf16.msra.mxu0 %v2002
        %2014 = vmatprep.subr.bf16.mxu0 0
        %2015 = vmatpush1.bf16.msra.mxu0 %v2003
        %2016 = vmatprep.subr.bf16.mxu0 0
        %2017 = vmatpush1.bf16.msra.mxu0 0
        %2018 = vmatprep.subr.bf16.mxu0 0
        %2019 = vmatpush1.bf16.msra.mxu0 0
        %2020 = vmatprep.subr.bf16.mxu0 0
        %2021 = vmatpush1.bf16.msra.mxu0 0
        %2022 = vmatprep.subr.bf16.mxu0 0
        %2023 = vmatpush1.bf16.msra.mxu0 0
        %2024 = vmatprep.subr.bf16.mxu0 0
        %2025 = vmatpush1.bf16.msra.mxu0 0
        %2026 = vmatprep.subr.bf16.mxu0 0
        %2027 = vmatpush1.bf16.msra.mxu0 0
        %2028 = vmatprep.subr.bf16.mxu0 0
        %2029 = vmatpush1.bf16.msra.mxu0 0
        %2030 = vmatprep.subr.bf16.mxu0 0
        %2031 = vmatpush1.bf16.msra.mxu0 0
        %2032 = vmatprep.subr.bf16.mxu0 0
        %2033 = vmatpush1.bf16.msra.mxu0 0
        %2034 = vmatprep.subr.bf16.mxu0 0
        %2035 = vmatpush1.bf16.msra.mxu0 0
        %2036 = vmatprep.subr.bf16.mxu0 0
        %2037 = vmatpush1.bf16.msra.mxu0 0
        %2038 = vmatprep.subr.bf16.mxu0 0
        %2039 = vmatpush1.bf16.msra.mxu0 0
        %2040 = vmatprep.subr.bf16.mxu0 0
        %2041 = vmatpush1.bf16.msra.mxu0 0
        %2042 = vmatprep.subr.bf16.mxu0 0
        %2043 = vmatpush1.bf16.msra.mxu0 0
        %2044 = vmatprep.mubr.bf16.mxu0 0
        %2045 = vmatmul.mubr.bf16.gmra.mrb[0].mxu0 %v1407
        %v2046 = vpop.f32.mrb[0].mxu0
        %v2047 = vadd.f32 0.0, %v2046
        %v2048 = vpop.f32.mrb[0].mxu0
        %v2049 = vpop.f32.mrb[0].mxu0
        %v2050 = vadd.f32 0.0, %v2049
        %v2051 = vpop.f32.mrb[0].mxu0
        %2052 = vmatprep.mubr.bf16.mxu0 0
        %2053 = vmatmul.mubr.bf16.gmra.mrb[0].mxu0 %v1410
        %v2054 = vpop.f32.mrb[0].mxu0
        %v2055 = vadd.f32 0.0, %v2054
        %v2056 = vpop.f32.mrb[0].mxu0
        %v2057 = vpop.f32.mrb[0].mxu0
        %v2058 = vadd.f32 0.0, %v2057
        %v2059 = vpop.f32.mrb[0].mxu0
        %2060 = vmatprep.mubr.bf16.mxu0 0
        %2061 = vmatmul.mubr.bf16.gmra.mrb[0].mxu0 %v1553
        %v2062 = vpop.f32.mrb[0].mxu0
        %v2063 = vadd.f32 0.0, %v2062
        %v2064 = vpop.f32.mrb[0].mxu0
        %v2065 = vpop.f32.mrb[0].mxu0
        %v2066 = vadd.f32 0.0, %v2065
        %v2067 = vpop.f32.mrb[0].mxu0
        %2068 = vmatprep.mubr.bf16.mxu0 0
        %2069 = vmatmul.mubr.bf16.gmra.mrb[0].mxu0 %v1556
        %v2070 = vpop.f32.mrb[0].mxu0
        %v2071 = vadd.f32 0.0, %v2070
        %v2072 = vpop.f32.mrb[0].mxu0
        %v2073 = vpop.f32.mrb[0].mxu0
        %v2074 = vadd.f32 0.0, %v2073
        %v2075 = vpop.f32.mrb[0].mxu0
        %2076 = vmatprep.mubr.bf16.mxu0 0
        %2077 = vmatmul.mubr.bf16.gmra.mrb[0].mxu0 %v1861
        %v2078 = vpop.f32.mrb[0].mxu0
        %v2079 = vadd.f32 0.0, %v2078
        %v2080 = vpop.f32.mrb[0].mxu0
        %v2081 = vpop.f32.mrb[0].mxu0
        %v2082 = vadd.f32 0.0, %v2081
        %v2083 = vpop.f32.mrb[0].mxu0
        %2084 = vmatprep.mubr.bf16.mxu0 0
        %2085 = vmatmul.mubr.bf16.gmra.mrb[0].mxu0 %v1864
        %v2086 = vpop.f32.mrb[0].mxu0
        %v2087 = vadd.f32 0.0, %v2086
        %v2088 = vpop.f32.mrb[0].mxu0
        %v2089 = vpop.f32.mrb[0].mxu0
        %v2090 = vadd.f32 0.0, %v2089
        %v2091 = vpop.f32.mrb[0].mxu0
        %2092 = vmatprep.mubr.bf16.mxu0 0
        %2093 = vmatmul.mubr.bf16.gmra.mrb[0].mxu0 %v2007
        %v2094 = vpop.f32.mrb[0].mxu0
        %v2095 = vadd.f32 0.0, %v2094
        %v2096 = vpop.f32.mrb[0].mxu0
        %v2097 = vpop.f32.mrb[0].mxu0
        %v2098 = vadd.f32 0.0, %v2097
        %v2099 = vpop.f32.mrb[0].mxu0
        %2100 = vmatprep.mubr.bf16.mxu0 0
        %2101 = vmatmul.mubr.bf16.gmra.mrb[0].mxu0 %v2010
        %v2102 = vpop.f32.mrb[0].mxu0
        %v2103 = vadd.f32 0.0, %v2102
        %v2104 = vpop.f32.mrb[0].mxu0
        %v2105 = vpop.f32.mrb[0].mxu0
        %v2106 = vadd.f32 0.0, %v2105
        %v2107 = vpop.f32.mrb[0].mxu0
        %2108 = vdwg.mxu0
        %v2109 = vadd.f32 %v1963, %v2047
        %v2110 = vadd.f32 %v1964, %v2050
        %v2111 = vadd.f32 %v1965, %v2055
        %v2112 = vadd.f32 %v1966, %v2058
        %v2113 = vadd.f32 %v1967, %v2063
        %v2114 = vadd.f32 %v1968, %v2066
        %v2115 = vadd.f32 %v1969, %v2071
        %v2116 = vadd.f32 %v1970, %v2074
        %v2117 = vadd.f32 %v1971, %v2079
        %v2118 = vadd.f32 %v1972, %v2082
        %v2119 = vadd.f32 %v1973, %v2087
        %v2120 = vadd.f32 %v1974, %v2090
        %v2121 = vadd.f32 %v1975, %v2095
        %v2122 = vadd.f32 %v1976, %v2098
        %v2123 = vadd.f32 %v1977, %v2103
        %v2124 = vadd.f32 %v1978, %v2106
        %s2125 = scalar_lea.vmem %s1817, 3 [#allocation2]
        %v2126 = vld [vmem:[%s2125] ss:$2 sm:$0xff]
        %s2127 = scalar_lea.vmem %s1817, 51 [#allocation2]
        %v2128 = vld [vmem:[%s2127] ss:$2 sm:$0xff]
        %s2129 = scalar_lea.vmem %s1817, 99 [#allocation2]
        %v2130 = vld [vmem:[%s2129] ss:$2 sm:$0xff]
        %s2131 = scalar_lea.vmem %s1817, 147 [#allocation2]
        %v2132 = vld [vmem:[%s2131] ss:$2 sm:$0xff]
        %v2133 = vpack.c.bf16 %v2128, %v2126
        %v2134 = vpack.c.bf16 %v2132, %v2130
        %s2135 = scalar_lea.vmem %s3, 128
        %v2136 = vld [vmem:[%s2135] sm:$0xf]
        %v2137 = vld [vmem:[%s2135 + $0x4] sm:$0xf]
        %v2138 = vld [vmem:[%s2135 + $0x8] sm:$0xf]
        %v2139 = vld [vmem:[%s2135 + $0xc] sm:$0xf]
        %v2144 = vunpack.c.l.b16 %v2136
        %v2145 = vunpack.c.l.b16 %v2137
        %v2146 = vunpack.c.l.b16 %v2138
        %v2147 = vunpack.c.l.b16 %v2139
        %v2148 = vpack.c.b16 %v2145, %v2144
        %v2149 = vpack.c.b16 %v2147, %v2146
        %v2153 = vsel %vm574, %v2133, 0
        %v2156 = vsel %vm574, %v2134, 0
        %2158 = vmatprep.subr.bf16.mxu0 0
        %2159 = vmatpush1.bf16.msra.mxu0 %v2148
        %2160 = vmatprep.subr.bf16.mxu0 0
        %2161 = vmatpush1.bf16.msra.mxu0 %v2149
        %2162 = vmatprep.subr.bf16.mxu0 0
        %2163 = vmatpush1.bf16.msra.mxu0 0
        %2164 = vmatprep.subr.bf16.mxu0 0
        %2165 = vmatpush1.bf16.msra.mxu0 0
        %2166 = vmatprep.subr.bf16.mxu0 0
        %2167 = vmatpush1.bf16.msra.mxu0 0
        %2168 = vmatprep.subr.bf16.mxu0 0
        %2169 = vmatpush1.bf16.msra.mxu0 0
        %2170 = vmatprep.subr.bf16.mxu0 0
        %2171 = vmatpush1.bf16.msra.mxu0 0
        %2172 = vmatprep.subr.bf16.mxu0 0
        %2173 = vmatpush1.bf16.msra.mxu0 0
        %2174 = vmatprep.subr.bf16.mxu0 0
        %2175 = vmatpush1.bf16.msra.mxu0 0
        %2176 = vmatprep.subr.bf16.mxu0 0
        %2177 = vmatpush1.bf16.msra.mxu0 0
        %2178 = vmatprep.subr.bf16.mxu0 0
        %2179 = vmatpush1.bf16.msra.mxu0 0
        %2180 = vmatprep.subr.bf16.mxu0 0
        %2181 = vmatpush1.bf16.msra.mxu0 0
        %2182 = vmatprep.subr.bf16.mxu0 0
        %2183 = vmatpush1.bf16.msra.mxu0 0
        %2184 = vmatprep.subr.bf16.mxu0 0
        %2185 = vmatpush1.bf16.msra.mxu0 0
        %2186 = vmatprep.subr.bf16.mxu0 0
        %2187 = vmatpush1.bf16.msra.mxu0 0
        %2188 = vmatprep.subr.bf16.mxu0 0
        %2189 = vmatpush1.bf16.msra.mxu0 0
        %2190 = vmatprep.mubr.bf16.mxu0 0
        %2191 = vmatmul.mubr.bf16.gmra.mrb[0].mxu0 %v1553
        %v2192 = vpop.f32.mrb[0].mxu0
        %v2193 = vadd.f32 0.0, %v2192
        %v2194 = vpop.f32.mrb[0].mxu0
        %v2195 = vpop.f32.mrb[0].mxu0
        %v2196 = vadd.f32 0.0, %v2195
        %v2197 = vpop.f32.mrb[0].mxu0
        %2198 = vmatprep.mubr.bf16.mxu0 0
        %2199 = vmatmul.mubr.bf16.gmra.mrb[0].mxu0 %v1556
        %v2200 = vpop.f32.mrb[0].mxu0
        %v2201 = vadd.f32 0.0, %v2200
        %v2202 = vpop.f32.mrb[0].mxu0
        %v2203 = vpop.f32.mrb[0].mxu0
        %v2204 = vadd.f32 0.0, %v2203
        %v2205 = vpop.f32.mrb[0].mxu0
        %2206 = vmatprep.mubr.bf16.mxu0 0
        %2207 = vmatmul.mubr.bf16.gmra.mrb[0].mxu0 %v1699
        %v2208 = vpop.f32.mrb[0].mxu0
        %v2209 = vadd.f32 0.0, %v2208
        %v2210 = vpop.f32.mrb[0].mxu0
        %v2211 = vpop.f32.mrb[0].mxu0
        %v2212 = vadd.f32 0.0, %v2211
        %v2213 = vpop.f32.mrb[0].mxu0
        %2214 = vmatprep.mubr.bf16.mxu0 0
        %2215 = vmatmul.mubr.bf16.gmra.mrb[0].mxu0 %v1702
        %v2216 = vpop.f32.mrb[0].mxu0
        %v2217 = vadd.f32 0.0, %v2216
        %v2218 = vpop.f32.mrb[0].mxu0
        %v2219 = vpop.f32.mrb[0].mxu0
        %v2220 = vadd.f32 0.0, %v2219
        %v2221 = vpop.f32.mrb[0].mxu0
        %2222 = vmatprep.mubr.bf16.mxu0 0
        %2223 = vmatmul.mubr.bf16.gmra.mrb[0].mxu0 %v2007
        %v2224 = vpop.f32.mrb[0].mxu0
        %v2225 = vadd.f32 0.0, %v2224
        %v2226 = vpop.f32.mrb[0].mxu0
        %v2227 = vpop.f32.mrb[0].mxu0
        %v2228 = vadd.f32 0.0, %v2227
        %v2229 = vpop.f32.mrb[0].mxu0
        %2230 = vmatprep.mubr.bf16.mxu0 0
        %2231 = vmatmul.mubr.bf16.gmra.mrb[0].mxu0 %v2010
        %v2232 = vpop.f32.mrb[0].mxu0
        %v2233 = vadd.f32 0.0, %v2232
        %v2234 = vpop.f32.mrb[0].mxu0
        %v2235 = vpop.f32.mrb[0].mxu0
        %v2236 = vadd.f32 0.0, %v2235
        %v2237 = vpop.f32.mrb[0].mxu0
        %2238 = vmatprep.mubr.bf16.mxu0 0
        %2239 = vmatmul.mubr.bf16.gmra.mrb[0].mxu0 %v2153
        %v2240 = vpop.f32.mrb[0].mxu0
        %v2241 = vadd.f32 0.0, %v2240
        %v2242 = vpop.f32.mrb[0].mxu0
        %v2243 = vpop.f32.mrb[0].mxu0
        %v2244 = vadd.f32 0.0, %v2243
        %v2245 = vpop.f32.mrb[0].mxu0
        %2246 = vmatprep.mubr.bf16.mxu0 0
        %2247 = vmatmul.mubr.bf16.gmra.mrb[0].mxu0 %v2156
        %v2248 = vpop.f32.mrb[0].mxu0
        %v2249 = vadd.f32 0.0, %v2248
        %v2250 = vpop.f32.mrb[0].mxu0
        %v2251 = vpop.f32.mrb[0].mxu0
        %v2252 = vadd.f32 0.0, %v2251
        %v2253 = vpop.f32.mrb[0].mxu0
        %2254 = vdwg.mxu0
        %v2255 = vadd.f32 %v2109, %v2193
        %v2256 = vadd.f32 %v2110, %v2196
        %v2257 = vadd.f32 %v2111, %v2201
        %v2258 = vadd.f32 %v2112, %v2204
        %v2259 = vadd.f32 %v2113, %v2209
        %v2260 = vadd.f32 %v2114, %v2212
        %v2261 = vadd.f32 %v2115, %v2217
        %v2262 = vadd.f32 %v2116, %v2220
        %v2263 = vadd.f32 %v2117, %v2225
        %v2264 = vadd.f32 %v2118, %v2228
        %v2265 = vadd.f32 %v2119, %v2233
        %v2266 = vadd.f32 %v2120, %v2236
        %v2267 = vadd.f32 %v2121, %v2241
        %v2268 = vadd.f32 %v2122, %v2244
        %v2269 = vadd.f32 %v2123, %v2249
        %v2270 = vadd.f32 %v2124, %v2252
        %v2271 = vld [vmem:[%s4] sm:$0x1]
        %v2273 = vlaneseq
        %v2274 = vshrl.u32 %v2273, 7
        %v2275 = vsub.s32 0, %v2274
        %v2276 = vrot.slane %v2271, %v2275
        %v2278 = vadd.f32 %v2255, %v2276
        %v2279 = vadd.f32 %v2256, %v2276
        %v2280 = vadd.f32 %v2257, %v2276
        %v2281 = vadd.f32 %v2258, %v2276
        %v2282 = vadd.f32 %v2259, %v2276
        %v2283 = vadd.f32 %v2260, %v2276
        %v2284 = vadd.f32 %v2261, %v2276
        %v2285 = vadd.f32 %v2262, %v2276
        %v2286 = vadd.f32 %v2263, %v2276
        %v2287 = vadd.f32 %v2264, %v2276
        %v2288 = vadd.f32 %v2265, %v2276
        %v2289 = vadd.f32 %v2266, %v2276
        %v2290 = vadd.f32 %v2267, %v2276
        %v2291 = vadd.f32 %v2268, %v2276
        %v2292 = vadd.f32 %v2269, %v2276
        %v2293 = vadd.f32 %v2270, %v2276
        %v2294 = vmax.f32 %v2278, 0.0
        %v2295 = vmax.f32 %v2279, 0.0
        %v2296 = vmax.f32 %v2280, 0.0
        %v2297 = vmax.f32 %v2281, 0.0
        %v2298 = vmax.f32 %v2282, 0.0
        %v2299 = vmax.f32 %v2283, 0.0
        %v2300 = vmax.f32 %v2284, 0.0
        %v2301 = vmax.f32 %v2285, 0.0
        %v2302 = vmax.f32 %v2286, 0.0
        %v2303 = vmax.f32 %v2287, 0.0
        %v2304 = vmax.f32 %v2288, 0.0
        %v2305 = vmax.f32 %v2289, 0.0
        %v2306 = vmax.f32 %v2290, 0.0
        %v2307 = vmax.f32 %v2291, 0.0
        %v2308 = vmax.f32 %v2292, 0.0
        %v2309 = vmax.f32 %v2293, 0.0
        %v2310 = vmax.f32 %v2294, %v2298
        %v2311 = vmax.f32 %v2295, %v2299
        %v2312 = vmax.f32 %v2296, %v2300
        %v2313 = vmax.f32 %v2297, %v2301
        %v2314 = vmax.f32 %v2302, %v2306
        %v2315 = vmax.f32 %v2303, %v2307
        %v2316 = vmax.f32 %v2304, %v2308
        %v2317 = vmax.f32 %v2305, %v2309
        %v2318 = vmax.f32 %v2310, %v2314
        %v2319 = vmax.f32 %v2311, %v2315
        %v2320 = vmax.f32 %v2312, %v2316
        %v2321 = vmax.f32 %v2313, %v2317
        %vm2322 = vcmask 523264
        %2323 = vst.msk [vmem:[#allocation3] sm:$0xff] %vm2322, 0.0
        %2324 = vst.msk [vmem:[#allocation3 + $0x8] sm:$0xff] %vm2322, 0.0
        %vm2325 = vcmask 517120
        %2326 = vst.msk [vmem:[#allocation3 + $0x10] sm:$0x3] %vm2325, 0.0
        %2327 = vst.msk [vmem:[#allocation3 + $0x18] sm:$0xff] %vm2322, 0.0
        %2328 = vst.msk [vmem:[#allocation3 + $0x20] sm:$0xff] %vm2322, 0.0
        %2329 = vst.msk [vmem:[#allocation3 + $0x28] sm:$0x3] %vm2325, 0.0
        %2330 = vst.msk [vmem:[#allocation3 + $0x30] sm:$0xff] %vm2322, 0.0
        %2331 = vst.msk [vmem:[#allocation3 + $0x38] sm:$0xff] %vm2322, 0.0
        %2332 = vst.msk [vmem:[#allocation3 + $0x40] sm:$0x3] %vm2325, 0.0
        %2333 = vst.msk [vmem:[#allocation3 + $0x48] sm:$0xff] %vm2322, 0.0
        %2334 = vst.msk [vmem:[#allocation3 + $0x50] sm:$0xff] %vm2322, 0.0
        %2335 = vst.msk [vmem:[#allocation3 + $0x58] sm:$0x3] %vm2325, 0.0
        %2336 = vst.msk [vmem:[#allocation3 + $0x60] sm:$0xff] %vm2322, 0.0
        %2337 = vst.msk [vmem:[#allocation3 + $0x68] sm:$0xff] %vm2322, 0.0
        %2338 = vst.msk [vmem:[#allocation3 + $0x70] sm:$0x3] %vm2325, 0.0
        %2339 = vst.msk [vmem:[#allocation3 + $0x78] sm:$0xff] %vm2322, 0.0
        %2340 = vst.msk [vmem:[#allocation3 + $0x80] sm:$0xff] %vm2322, 0.0
        %2341 = vst.msk [vmem:[#allocation3 + $0x88] sm:$0x3] %vm2325, 0.0
        %s2342 = scalar_lea.vmem [#allocation3], 24
        %vm2343 = vcmask 519168
        %2344 = vst.msk [vmem:[%s2342 + $0x1] sm:$0xf] %vm2343, %v2318
        %2345 = vst.msk [vmem:[%s2342 + $0x19] sm:$0xf] %vm2343, %v2319
        %2346 = vst.msk [vmem:[%s2342 + $0x31] sm:$0xf] %vm2343, %v2320
        %2347 = vst.msk [vmem:[%s2342 + $0x49] sm:$0xf] %vm2343, %v2321
        %v2348 = vld [vmem:[#allocation3] ss:$2 sm:$0xff]
        %s2349 = scalar_lea.vmem [#allocation3], 48
        %v2350 = vld [vmem:[%s2349] ss:$2 sm:$0xff]
        %s2351 = scalar_lea.vmem [#allocation3], 1
        %v2352 = vld [vmem:[%s2351] ss:$2 sm:$0xff]
        %s2353 = scalar_lea.vmem [#allocation3], 49
        %v2354 = vld [vmem:[%s2353] ss:$2 sm:$0xff]
        %v2355 = vld [vmem:[%s2342] ss:$2 sm:$0xff]
        %s2356 = scalar_lea.vmem %s2342, 48 [#allocation3]
        %v2357 = vld [vmem:[%s2356] ss:$2 sm:$0xff]
        %s2358 = scalar_lea.vmem %s2342, 1 [#allocation3]
        %v2359 = vld [vmem:[%s2358] ss:$2 sm:$0xff]
        %s2360 = scalar_lea.vmem %s2342, 49 [#allocation3]
        %v2361 = vld [vmem:[%s2360] ss:$2 sm:$0xff]
        %v2362 = vpack.c.bf16 %v2350, %v2348
        %v2363 = vpack.c.bf16 %v2354, %v2352
        %v2364 = vpack.c.bf16 %v2357, %v2355
        %v2365 = vpack.c.bf16 %v2361, %v2359
        %v2366 = vld [vmem:[%s5] sm:$0xf]
        %v2367 = vld [vmem:[%s5 + $0x4] sm:$0xf]
        %v2368 = vld [vmem:[%s5 + $0x8] sm:$0xf]
        %v2369 = vld [vmem:[%s5 + $0xc] sm:$0xf]
        %v2370 = vld [vmem:[%s5 + $0x10] sm:$0xf]
        %v2371 = vld [vmem:[%s5 + $0x14] sm:$0xf]
        %v2372 = vld [vmem:[%s5 + $0x18] sm:$0xf]
        %v2373 = vld [vmem:[%s5 + $0x1c] sm:$0xf]
        %s2374 = scalar_lea.vmem [#allocation3], 2
        %v2375 = vld [vmem:[%s2374] ss:$2 sm:$0xff]
        %s2376 = scalar_lea.vmem [#allocation3], 50
        %v2377 = vld [vmem:[%s2376] ss:$2 sm:$0xff]
        %s2378 = scalar_lea.vmem %s2342, 2 [#allocation3]
        %v2379 = vld [vmem:[%s2378] ss:$2 sm:$0xff]
        %s2380 = scalar_lea.vmem %s2342, 50 [#allocation3]
        %v2381 = vld [vmem:[%s2380] ss:$2 sm:$0xff]
        %v2382 = vpack.c.bf16 %v2377, %v2375
        %v2383 = vpack.c.bf16 %v2381, %v2379
        %s2384 = scalar_lea.vmem %s5, 32
        %v2385 = vld [vmem:[%s2384] sm:$0xf]
        %v2386 = vld [vmem:[%s2384 + $0x4] sm:$0xf]
        %v2387 = vld [vmem:[%s2384 + $0x8] sm:$0xf]
        %v2388 = vld [vmem:[%s2384 + $0xc] sm:$0xf]
        %v2389 = vld [vmem:[%s2384 + $0x10] sm:$0xf]
        %v2390 = vld [vmem:[%s2384 + $0x14] sm:$0xf]
        %v2391 = vld [vmem:[%s2384 + $0x18] sm:$0xf]
        %v2392 = vld [vmem:[%s2384 + $0x1c] sm:$0xf]
        %v2401 = vunpack.c.l.b16 %v2385
        %v2402 = vunpack.c.l.b16 %v2386
        %v2403 = vunpack.c.l.b16 %v2387
        %v2404 = vunpack.c.l.b16 %v2388
        %v2405 = vunpack.c.l.b16 %v2389
        %v2406 = vunpack.c.l.b16 %v2390
        %v2407 = vunpack.c.l.b16 %v2391
        %v2408 = vunpack.c.l.b16 %v2392
        %v2409 = vpack.c.b16 %v2402, %v2401
        %v2410 = vpack.c.b16 %v2404, %v2403
        %v2411 = vpack.c.b16 %v2406, %v2405
        %v2412 = vpack.c.b16 %v2408, %v2407
        %v2418 = vsel %vm2322, %v2363, 0
        %v2421 = vsel %vm2322, %v2382, 0
        %v2424 = vsel %vm2322, %v2365, 0
        %v2427 = vsel %vm2322, %v2383, 0
        %2429 = vmatprep.subr.bf16.mxu0 0
        %2430 = vmatpush1.bf16.msra.mxu0 %v2409
        %2431 = vmatprep.subr.bf16.mxu0 0
        %2432 = vmatpush1.bf16.msra.mxu0 %v2410
        %2433 = vmatprep.subr.bf16.mxu0 0
        %2434 = vmatpush1.bf16.msra.mxu0 %v2411
        %2435 = vmatprep.subr.bf16.mxu0 0
        %2436 = vmatpush1.bf16.msra.mxu0 %v2412
        %2437 = vmatprep.subr.bf16.mxu0 0
        %2438 = vmatpush1.bf16.msra.mxu0 0
        %2439 = vmatprep.subr.bf16.mxu0 0
        %2440 = vmatpush1.bf16.msra.mxu0 0
        %2441 = vmatprep.subr.bf16.mxu0 0
        %2442 = vmatpush1.bf16.msra.mxu0 0
        %2443 = vmatprep.subr.bf16.mxu0 0
        %2444 = vmatpush1.bf16.msra.mxu0 0
        %2445 = vmatprep.subr.bf16.mxu0 0
        %2446 = vmatpush1.bf16.msra.mxu0 0
        %2447 = vmatprep.subr.bf16.mxu0 0
        %2448 = vmatpush1.bf16.msra.mxu0 0
        %2449 = vmatprep.subr.bf16.mxu0 0
        %2450 = vmatpush1.bf16.msra.mxu0 0
        %2451 = vmatprep.subr.bf16.mxu0 0
        %2452 = vmatpush1.bf16.msra.mxu0 0
        %2453 = vmatprep.subr.bf16.mxu0 0
        %2454 = vmatpush1.bf16.msra.mxu0 0
        %2455 = vmatprep.subr.bf16.mxu0 0
        %2456 = vmatpush1.bf16.msra.mxu0 0
        %2457 = vmatprep.subr.bf16.mxu0 0
        %2458 = vmatpush1.bf16.msra.mxu0 0
        %2459 = vmatprep.subr.bf16.mxu0 0
        %2460 = vmatpush1.bf16.msra.mxu0 0
        %2461 = vmatprep.mubr.bf16.mxu0 0
        %2462 = vmatmul.mubr.bf16.gmra.mrb[0].mxu0 %v2418
        %v2463 = vpop.f32.mrb[0].mxu0
        %v2464 = vadd.f32 0.0, %v2463
        %v2465 = vpop.f32.mrb[0].mxu0
        %v2466 = vpop.f32.mrb[0].mxu0
        %v2467 = vadd.f32 0.0, %v2466
        %v2468 = vpop.f32.mrb[0].mxu0
        %2469 = vmatprep.mubr.bf16.mxu0 0
        %2470 = vmatmul.mubr.bf16.gmra.mrb[0].mxu0 %v2421
        %v2471 = vpop.f32.mrb[0].mxu0
        %v2472 = vadd.f32 0.0, %v2471
        %v2473 = vpop.f32.mrb[0].mxu0
        %v2474 = vpop.f32.mrb[0].mxu0
        %v2475 = vadd.f32 0.0, %v2474
        %v2476 = vpop.f32.mrb[0].mxu0
        %2477 = vmatprep.mubr.bf16.mxu0 0
        %2478 = vmatmul.mubr.bf16.gmra.mrb[0].mxu0 %v2424
        %v2479 = vpop.f32.mrb[0].mxu0
        %v2480 = vadd.f32 0.0, %v2479
        %v2481 = vpop.f32.mrb[0].mxu0
        %v2482 = vpop.f32.mrb[0].mxu0
        %v2483 = vadd.f32 0.0, %v2482
        %v2484 = vpop.f32.mrb[0].mxu0
        %2485 = vmatprep.mubr.bf16.mxu0 0
        %2486 = vmatmul.mubr.bf16.gmra.mrb[0].mxu0 %v2427
        %v2487 = vpop.f32.mrb[0].mxu0
        %v2488 = vadd.f32 0.0, %v2487
        %v2489 = vpop.f32.mrb[0].mxu0
        %v2490 = vpop.f32.mrb[0].mxu0
        %v2491 = vadd.f32 0.0, %v2490
        %v2492 = vpop.f32.mrb[0].mxu0
        %2493 = vdwg.mxu0
        %v2502 = vunpack.c.l.b16 %v2366
        %v2503 = vunpack.c.l.b16 %v2367
        %v2504 = vunpack.c.l.b16 %v2368
        %v2505 = vunpack.c.l.b16 %v2369
        %v2506 = vunpack.c.l.b16 %v2370
        %v2507 = vunpack.c.l.b16 %v2371
        %v2508 = vunpack.c.l.b16 %v2372
        %v2509 = vunpack.c.l.b16 %v2373
        %v2510 = vpack.c.b16 %v2503, %v2502
        %v2511 = vpack.c.b16 %v2505, %v2504
        %v2512 = vpack.c.b16 %v2507, %v2506
        %v2513 = vpack.c.b16 %v2509, %v2508
        %v2519 = vsel %vm2322, %v2362, 0
        %v2522 = vsel %vm2322, %v2364, 0
        %2524 = vmatprep.subr.bf16.mxu0 0
        %2525 = vmatpush1.bf16.msra.mxu0 %v2510
        %2526 = vmatprep.subr.bf16.mxu0 0
        %2527 = vmatpush1.bf16.msra.mxu0 %v2511
        %2528 = vmatprep.subr.bf16.mxu0 0
        %2529 = vmatpush1.bf16.msra.mxu0 %v2512
        %2530 = vmatprep.subr.bf16.mxu0 0
        %2531 = vmatpush1.bf16.msra.mxu0 %v2513
        %2532 = vmatprep.subr.bf16.mxu0 0
        %2533 = vmatpush1.bf16.msra.mxu0 0
        %2534 = vmatprep.subr.bf16.mxu0 0
        %2535 = vmatpush1.bf16.msra.mxu0 0
        %2536 = vmatprep.subr.bf16.mxu0 0
        %2537 = vmatpush1.bf16.msra.mxu0 0
        %2538 = vmatprep.subr.bf16.mxu0 0
        %2539 = vmatpush1.bf16.msra.mxu0 0
        %2540 = vmatprep.subr.bf16.mxu0 0
        %2541 = vmatpush1.bf16.msra.mxu0 0
        %2542 = vmatprep.subr.bf16.mxu0 0
        %2543 = vmatpush1.bf16.msra.mxu0 0
        %2544 = vmatprep.subr.bf16.mxu0 0
        %2545 = vmatpush1.bf16.msra.mxu0 0
        %2546 = vmatprep.subr.bf16.mxu0 0
        %2547 = vmatpush1.bf16.msra.mxu0 0
        %2548 = vmatprep.subr.bf16.mxu0 0
        %2549 = vmatpush1.bf16.msra.mxu0 0
        %2550 = vmatprep.subr.bf16.mxu0 0
        %2551 = vmatpush1.bf16.msra.mxu0 0
        %2552 = vmatprep.subr.bf16.mxu0 0
        %2553 = vmatpush1.bf16.msra.mxu0 0
        %2554 = vmatprep.subr.bf16.mxu0 0
        %2555 = vmatpush1.bf16.msra.mxu0 0
        %2556 = vmatprep.mubr.bf16.mxu0 0
        %2557 = vmatmul.mubr.bf16.gmra.mrb[0].mxu0 %v2519
        %v2558 = vpop.f32.mrb[0].mxu0
        %v2559 = vadd.f32 %v2464, %v2558
        %v2560 = vpop.f32.mrb[0].mxu0
        %v2561 = vpop.f32.mrb[0].mxu0
        %v2562 = vadd.f32 %v2467, %v2561
        %v2563 = vpop.f32.mrb[0].mxu0
        %2564 = vmatprep.mubr.bf16.mxu0 0
        %2565 = vmatmul.mubr.bf16.gmra.mrb[0].mxu0 %v2418
        %v2566 = vpop.f32.mrb[0].mxu0
        %v2567 = vadd.f32 %v2472, %v2566
        %v2568 = vpop.f32.mrb[0].mxu0
        %v2569 = vpop.f32.mrb[0].mxu0
        %v2570 = vadd.f32 %v2475, %v2569
        %v2571 = vpop.f32.mrb[0].mxu0
        %2572 = vmatprep.mubr.bf16.mxu0 0
        %2573 = vmatmul.mubr.bf16.gmra.mrb[0].mxu0 %v2522
        %v2574 = vpop.f32.mrb[0].mxu0
        %v2575 = vadd.f32 %v2480, %v2574
        %v2576 = vpop.f32.mrb[0].mxu0
        %v2577 = vpop.f32.mrb[0].mxu0
        %v2578 = vadd.f32 %v2483, %v2577
        %v2579 = vpop.f32.mrb[0].mxu0
        %2580 = vmatprep.mubr.bf16.mxu0 0
        %2581 = vmatmul.mubr.bf16.gmra.mrb[0].mxu0 %v2424
        %v2582 = vpop.f32.mrb[0].mxu0
        %v2583 = vadd.f32 %v2488, %v2582
        %v2584 = vpop.f32.mrb[0].mxu0
        %v2585 = vpop.f32.mrb[0].mxu0
        %v2586 = vadd.f32 %v2491, %v2585
        %v2587 = vpop.f32.mrb[0].mxu0
        %2588 = vdwg.mxu0
        %s2589 = scalar_lea.vmem [#allocation3], 3
        %v2590 = vld [vmem:[%s2589] ss:$2 sm:$0xff]
        %s2591 = scalar_lea.vmem [#allocation3], 51
        %v2592 = vld [vmem:[%s2591] ss:$2 sm:$0xff]
        %s2593 = scalar_lea.vmem %s2342, 3 [#allocation3]
        %v2594 = vld [vmem:[%s2593] ss:$2 sm:$0xff]
        %s2595 = scalar_lea.vmem %s2342, 51 [#allocation3]
        %v2596 = vld [vmem:[%s2595] ss:$2 sm:$0xff]
        %v2597 = vpack.c.bf16 %v2592, %v2590
        %v2598 = vpack.c.bf16 %v2596, %v2594
        %s2599 = scalar_lea.vmem %s5, 64
        %v2600 = vld [vmem:[%s2599] sm:$0xf]
        %v2601 = vld [vmem:[%s2599 + $0x4] sm:$0xf]
        %v2602 = vld [vmem:[%s2599 + $0x8] sm:$0xf]
        %v2603 = vld [vmem:[%s2599 + $0xc] sm:$0xf]
        %v2604 = vld [vmem:[%s2599 + $0x10] sm:$0xf]
        %v2605 = vld [vmem:[%s2599 + $0x14] sm:$0xf]
        %v2606 = vld [vmem:[%s2599 + $0x18] sm:$0xf]
        %v2607 = vld [vmem:[%s2599 + $0x1c] sm:$0xf]
        %v2616 = vunpack.c.l.b16 %v2600
        %v2617 = vunpack.c.l.b16 %v2601
        %v2618 = vunpack.c.l.b16 %v2602
        %v2619 = vunpack.c.l.b16 %v2603
        %v2620 = vunpack.c.l.b16 %v2604
        %v2621 = vunpack.c.l.b16 %v2605
        %v2622 = vunpack.c.l.b16 %v2606
        %v2623 = vunpack.c.l.b16 %v2607
        %v2624 = vpack.c.b16 %v2617, %v2616
        %v2625 = vpack.c.b16 %v2619, %v2618
        %v2626 = vpack.c.b16 %v2621, %v2620
        %v2627 = vpack.c.b16 %v2623, %v2622
        %v2633 = vsel %vm2322, %v2597, 0
        %v2636 = vsel %vm2322, %v2598, 0
        %2638 = vmatprep.subr.bf16.mxu0 0
        %2639 = vmatpush1.bf16.msra.mxu0 %v2624
        %2640 = vmatprep.subr.bf16.mxu0 0
        %2641 = vmatpush1.bf16.msra.mxu0 %v2625
        %2642 = vmatprep.subr.bf16.mxu0 0
        %2643 = vmatpush1.bf16.msra.mxu0 %v2626
        %2644 = vmatprep.subr.bf16.mxu0 0
        %2645 = vmatpush1.bf16.msra.mxu0 %v2627
        %2646 = vmatprep.subr.bf16.mxu0 0
        %2647 = vmatpush1.bf16.msra.mxu0 0
        %2648 = vmatprep.subr.bf16.mxu0 0
        %2649 = vmatpush1.bf16.msra.mxu0 0
        %2650 = vmatprep.subr.bf16.mxu0 0
        %2651 = vmatpush1.bf16.msra.mxu0 0
        %2652 = vmatprep.subr.bf16.mxu0 0
        %2653 = vmatpush1.bf16.msra.mxu0 0
        %2654 = vmatprep.subr.bf16.mxu0 0
        %2655 = vmatpush1.bf16.msra.mxu0 0
        %2656 = vmatprep.subr.bf16.mxu0 0
        %2657 = vmatpush1.bf16.msra.mxu0 0
        %2658 = vmatprep.subr.bf16.mxu0 0
        %2659 = vmatpush1.bf16.msra.mxu0 0
        %2660 = vmatprep.subr.bf16.mxu0 0
        %2661 = vmatpush1.bf16.msra.mxu0 0
        %2662 = vmatprep.subr.bf16.mxu0 0
        %2663 = vmatpush1.bf16.msra.mxu0 0
        %2664 = vmatprep.subr.bf16.mxu0 0
        %2665 = vmatpush1.bf16.msra.mxu0 0
        %2666 = vmatprep.subr.bf16.mxu0 0
        %2667 = vmatpush1.bf16.msra.mxu0 0
        %2668 = vmatprep.subr.bf16.mxu0 0
        %2669 = vmatpush1.bf16.msra.mxu0 0
        %2670 = vmatprep.mubr.bf16.mxu0 0
        %2671 = vmatmul.mubr.bf16.gmra.mrb[0].mxu0 %v2421
        %v2672 = vpop.f32.mrb[0].mxu0
        %v2673 = vadd.f32 0.0, %v2672
        %v2674 = vpop.f32.mrb[0].mxu0
        %v2675 = vpop.f32.mrb[0].mxu0
        %v2676 = vadd.f32 0.0, %v2675
        %v2677 = vpop.f32.mrb[0].mxu0
        %2678 = vmatprep.mubr.bf16.mxu0 0
        %2679 = vmatmul.mubr.bf16.gmra.mrb[0].mxu0 %v2633
        %v2680 = vpop.f32.mrb[0].mxu0
        %v2681 = vadd.f32 0.0, %v2680
        %v2682 = vpop.f32.mrb[0].mxu0
        %v2683 = vpop.f32.mrb[0].mxu0
        %v2684 = vadd.f32 0.0, %v2683
        %v2685 = vpop.f32.mrb[0].mxu0
        %2686 = vmatprep.mubr.bf16.mxu0 0
        %2687 = vmatmul.mubr.bf16.gmra.mrb[0].mxu0 %v2427
        %v2688 = vpop.f32.mrb[0].mxu0
        %v2689 = vadd.f32 0.0, %v2688
        %v2690 = vpop.f32.mrb[0].mxu0
        %v2691 = vpop.f32.mrb[0].mxu0
        %v2692 = vadd.f32 0.0, %v2691
        %v2693 = vpop.f32.mrb[0].mxu0
        %2694 = vmatprep.mubr.bf16.mxu0 0
        %2695 = vmatmul.mubr.bf16.gmra.mrb[0].mxu0 %v2636
        %v2696 = vpop.f32.mrb[0].mxu0
        %v2697 = vadd.f32 0.0, %v2696
        %v2698 = vpop.f32.mrb[0].mxu0
        %v2699 = vpop.f32.mrb[0].mxu0
        %v2700 = vadd.f32 0.0, %v2699
        %v2701 = vpop.f32.mrb[0].mxu0
        %2702 = vdwg.mxu0
        %v2703 = vadd.f32 %v2559, %v2673
        %v2704 = vadd.f32 %v2562, %v2676
        %v2705 = vadd.f32 %v2567, %v2681
        %v2706 = vadd.f32 %v2570, %v2684
        %v2707 = vadd.f32 %v2575, %v2689
        %v2708 = vadd.f32 %v2578, %v2692
        %v2709 = vadd.f32 %v2583, %v2697
        %v2710 = vadd.f32 %v2586, %v2700
        %s2711 = scalar_lea.vmem [#allocation3], 48
        %v2712 = vld [vmem:[%s2711] ss:$2 sm:$0xff]
        %s2713 = scalar_lea.vmem %s2711, 48 [#allocation3]
        %v2714 = vld [vmem:[%s2713] ss:$2 sm:$0xff]
        %s2715 = scalar_lea.vmem %s2711, 1 [#allocation3]
        %v2716 = vld [vmem:[%s2715] ss:$2 sm:$0xff]
        %s2717 = scalar_lea.vmem %s2711, 49 [#allocation3]
        %v2718 = vld [vmem:[%s2717] ss:$2 sm:$0xff]
        %v2719 = vpack.c.bf16 %v2714, %v2712
        %v2720 = vpack.c.bf16 %v2718, %v2716
        %s2721 = scalar_lea.vmem %s5, 96
        %v2722 = vld [vmem:[%s2721] sm:$0xf]
        %v2723 = vld [vmem:[%s2721 + $0x4] sm:$0xf]
        %v2724 = vld [vmem:[%s2721 + $0x8] sm:$0xf]
        %v2725 = vld [vmem:[%s2721 + $0xc] sm:$0xf]
        %v2726 = vld [vmem:[%s2721 + $0x10] sm:$0xf]
        %v2727 = vld [vmem:[%s2721 + $0x14] sm:$0xf]
        %v2728 = vld [vmem:[%s2721 + $0x18] sm:$0xf]
        %v2729 = vld [vmem:[%s2721 + $0x1c] sm:$0xf]
        %v2738 = vunpack.c.l.b16 %v2722
        %v2739 = vunpack.c.l.b16 %v2723
        %v2740 = vunpack.c.l.b16 %v2724
        %v2741 = vunpack.c.l.b16 %v2725
        %v2742 = vunpack.c.l.b16 %v2726
        %v2743 = vunpack.c.l.b16 %v2727
        %v2744 = vunpack.c.l.b16 %v2728
        %v2745 = vunpack.c.l.b16 %v2729
        %v2746 = vpack.c.b16 %v2739, %v2738
        %v2747 = vpack.c.b16 %v2741, %v2740
        %v2748 = vpack.c.b16 %v2743, %v2742
        %v2749 = vpack.c.b16 %v2745, %v2744
        %v2755 = vsel %vm2322, %v2719, 0
        %v2758 = vsel %vm2322, %v2720, 0
        %2760 = vmatprep.subr.bf16.mxu0 0
        %2761 = vmatpush1.bf16.msra.mxu0 %v2746
        %2762 = vmatprep.subr.bf16.mxu0 0
        %2763 = vmatpush1.bf16.msra.mxu0 %v2747
        %2764 = vmatprep.subr.bf16.mxu0 0
        %2765 = vmatpush1.bf16.msra.mxu0 %v2748
        %2766 = vmatprep.subr.bf16.mxu0 0
        %2767 = vmatpush1.bf16.msra.mxu0 %v2749
        %2768 = vmatprep.subr.bf16.mxu0 0
        %2769 = vmatpush1.bf16.msra.mxu0 0
        %2770 = vmatprep.subr.bf16.mxu0 0
        %2771 = vmatpush1.bf16.msra.mxu0 0
        %2772 = vmatprep.subr.bf16.mxu0 0
        %2773 = vmatpush1.bf16.msra.mxu0 0
        %2774 = vmatprep.subr.bf16.mxu0 0
        %2775 = vmatpush1.bf16.msra.mxu0 0
        %2776 = vmatprep.subr.bf16.mxu0 0
        %2777 = vmatpush1.bf16.msra.mxu0 0
        %2778 = vmatprep.subr.bf16.mxu0 0
        %2779 = vmatpush1.bf16.msra.mxu0 0
        %2780 = vmatprep.subr.bf16.mxu0 0
        %2781 = vmatpush1.bf16.msra.mxu0 0
        %2782 = vmatprep.subr.bf16.mxu0 0
        %2783 = vmatpush1.bf16.msra.mxu0 0
        %2784 = vmatprep.subr.bf16.mxu0 0
        %2785 = vmatpush1.bf16.msra.mxu0 0
        %2786 = vmatprep.subr.bf16.mxu0 0
        %2787 = vmatpush1.bf16.msra.mxu0 0
        %2788 = vmatprep.subr.bf16.mxu0 0
        %2789 = vmatpush1.bf16.msra.mxu0 0
        %2790 = vmatprep.subr.bf16.mxu0 0
        %2791 = vmatpush1.bf16.msra.mxu0 0
        %2792 = vmatprep.mubr.bf16.mxu0 0
        %2793 = vmatmul.mubr.bf16.gmra.mrb[0].mxu0 %v2522
        %v2794 = vpop.f32.mrb[0].mxu0
        %v2795 = vadd.f32 0.0, %v2794
        %v2796 = vpop.f32.mrb[0].mxu0
        %v2797 = vpop.f32.mrb[0].mxu0
        %v2798 = vadd.f32 0.0, %v2797
        %v2799 = vpop.f32.mrb[0].mxu0
        %2800 = vmatprep.mubr.bf16.mxu0 0
        %2801 = vmatmul.mubr.bf16.gmra.mrb[0].mxu0 %v2424
        %v2802 = vpop.f32.mrb[0].mxu0
        %v2803 = vadd.f32 0.0, %v2802
        %v2804 = vpop.f32.mrb[0].mxu0
        %v2805 = vpop.f32.mrb[0].mxu0
        %v2806 = vadd.f32 0.0, %v2805
        %v2807 = vpop.f32.mrb[0].mxu0
        %2808 = vmatprep.mubr.bf16.mxu0 0
        %2809 = vmatmul.mubr.bf16.gmra.mrb[0].mxu0 %v2755
        %v2810 = vpop.f32.mrb[0].mxu0
        %v2811 = vadd.f32 0.0, %v2810
        %v2812 = vpop.f32.mrb[0].mxu0
        %v2813 = vpop.f32.mrb[0].mxu0
        %v2814 = vadd.f32 0.0, %v2813
        %v2815 = vpop.f32.mrb[0].mxu0
        %2816 = vmatprep.mubr.bf16.mxu0 0
        %2817 = vmatmul.mubr.bf16.gmra.mrb[0].mxu0 %v2758
        %v2818 = vpop.f32.mrb[0].mxu0
        %v2819 = vadd.f32 0.0, %v2818
        %v2820 = vpop.f32.mrb[0].mxu0
        %v2821 = vpop.f32.mrb[0].mxu0
        %v2822 = vadd.f32 0.0, %v2821
        %v2823 = vpop.f32.mrb[0].mxu0
        %2824 = vdwg.mxu0
        %v2825 = vadd.f32 %v2703, %v2795
        %v2826 = vadd.f32 %v2704, %v2798
        %v2827 = vadd.f32 %v2705, %v2803
        %v2828 = vadd.f32 %v2706, %v2806
        %v2829 = vadd.f32 %v2707, %v2811
        %v2830 = vadd.f32 %v2708, %v2814
        %v2831 = vadd.f32 %v2709, %v2819
        %v2832 = vadd.f32 %v2710, %v2822
        %s2833 = scalar_lea.vmem %s2711, 2 [#allocation3]
        %v2834 = vld [vmem:[%s2833] ss:$2 sm:$0xff]
        %s2835 = scalar_lea.vmem %s2711, 50 [#allocation3]
        %v2836 = vld [vmem:[%s2835] ss:$2 sm:$0xff]
        %v2837 = vpack.c.bf16 %v2836, %v2834
        %s2838 = scalar_lea.vmem %s5, 128
        %v2839 = vld [vmem:[%s2838] sm:$0xf]
        %v2840 = vld [vmem:[%s2838 + $0x4] sm:$0xf]
        %v2841 = vld [vmem:[%s2838 + $0x8] sm:$0xf]
        %v2842 = vld [vmem:[%s2838 + $0xc] sm:$0xf]
        %v2843 = vld [vmem:[%s2838 + $0x10] sm:$0xf]
        %v2844 = vld [vmem:[%s2838 + $0x14] sm:$0xf]
        %v2845 = vld [vmem:[%s2838 + $0x18] sm:$0xf]
        %v2846 = vld [vmem:[%s2838 + $0x1c] sm:$0xf]
        %v2855 = vunpack.c.l.b16 %v2839
        %v2856 = vunpack.c.l.b16 %v2840
        %v2857 = vunpack.c.l.b16 %v2841
        %v2858 = vunpack.c.l.b16 %v2842
        %v2859 = vunpack.c.l.b16 %v2843
        %v2860 = vunpack.c.l.b16 %v2844
        %v2861 = vunpack.c.l.b16 %v2845
        %v2862 = vunpack.c.l.b16 %v2846
        %v2863 = vpack.c.b16 %v2856, %v2855
        %v2864 = vpack.c.b16 %v2858, %v2857
        %v2865 = vpack.c.b16 %v2860, %v2859
        %v2866 = vpack.c.b16 %v2862, %v2861
        %v2872 = vsel %vm2322, %v2837, 0
        %2874 = vmatprep.subr.bf16.mxu0 0
        %2875 = vmatpush1.bf16.msra.mxu0 %v2863
        %2876 = vmatprep.subr.bf16.mxu0 0
        %2877 = vmatpush1.bf16.msra.mxu0 %v2864
        %2878 = vmatprep.subr.bf16.mxu0 0
        %2879 = vmatpush1.bf16.msra.mxu0 %v2865
        %2880 = vmatprep.subr.bf16.mxu0 0
        %2881 = vmatpush1.bf16.msra.mxu0 %v2866
        %2882 = vmatprep.subr.bf16.mxu0 0
        %2883 = vmatpush1.bf16.msra.mxu0 0
        %2884 = vmatprep.subr.bf16.mxu0 0
        %2885 = vmatpush1.bf16.msra.mxu0 0
        %2886 = vmatprep.subr.bf16.mxu0 0
        %2887 = vmatpush1.bf16.msra.mxu0 0
        %2888 = vmatprep.subr.bf16.mxu0 0
        %2889 = vmatpush1.bf16.msra.mxu0 0
        %2890 = vmatprep.subr.bf16.mxu0 0
        %2891 = vmatpush1.bf16.msra.mxu0 0
        %2892 = vmatprep.subr.bf16.mxu0 0
        %2893 = vmatpush1.bf16.msra.mxu0 0
        %2894 = vmatprep.subr.bf16.mxu0 0
        %2895 = vmatpush1.bf16.msra.mxu0 0
        %2896 = vmatprep.subr.bf16.mxu0 0
        %2897 = vmatpush1.bf16.msra.mxu0 0
        %2898 = vmatprep.subr.bf16.mxu0 0
        %2899 = vmatpush1.bf16.msra.mxu0 0
        %2900 = vmatprep.subr.bf16.mxu0 0
        %2901 = vmatpush1.bf16.msra.mxu0 0
        %2902 = vmatprep.subr.bf16.mxu0 0
        %2903 = vmatpush1.bf16.msra.mxu0 0
        %2904 = vmatprep.subr.bf16.mxu0 0
        %2905 = vmatpush1.bf16.msra.mxu0 0
        %2906 = vmatprep.mubr.bf16.mxu0 0
        %2907 = vmatmul.mubr.bf16.gmra.mrb[0].mxu0 %v2424
        %v2908 = vpop.f32.mrb[0].mxu0
        %v2909 = vadd.f32 0.0, %v2908
        %v2910 = vpop.f32.mrb[0].mxu0
        %v2911 = vpop.f32.mrb[0].mxu0
        %v2912 = vadd.f32 0.0, %v2911
        %v2913 = vpop.f32.mrb[0].mxu0
        %2914 = vmatprep.mubr.bf16.mxu0 0
        %2915 = vmatmul.mubr.bf16.gmra.mrb[0].mxu0 %v2427
        %v2916 = vpop.f32.mrb[0].mxu0
        %v2917 = vadd.f32 0.0, %v2916
        %v2918 = vpop.f32.mrb[0].mxu0
        %v2919 = vpop.f32.mrb[0].mxu0
        %v2920 = vadd.f32 0.0, %v2919
        %v2921 = vpop.f32.mrb[0].mxu0
        %2922 = vmatprep.mubr.bf16.mxu0 0
        %2923 = vmatmul.mubr.bf16.gmra.mrb[0].mxu0 %v2758
        %v2924 = vpop.f32.mrb[0].mxu0
        %v2925 = vadd.f32 0.0, %v2924
        %v2926 = vpop.f32.mrb[0].mxu0
        %v2927 = vpop.f32.mrb[0].mxu0
        %v2928 = vadd.f32 0.0, %v2927
        %v2929 = vpop.f32.mrb[0].mxu0
        %2930 = vmatprep.mubr.bf16.mxu0 0
        %2931 = vmatmul.mubr.bf16.gmra.mrb[0].mxu0 %v2872
        %v2932 = vpop.f32.mrb[0].mxu0
        %v2933 = vadd.f32 0.0, %v2932
        %v2934 = vpop.f32.mrb[0].mxu0
        %v2935 = vpop.f32.mrb[0].mxu0
        %v2936 = vadd.f32 0.0, %v2935
        %v2937 = vpop.f32.mrb[0].mxu0
        %2938 = vdwg.mxu0
        %v2939 = vadd.f32 %v2825, %v2909
        %v2940 = vadd.f32 %v2826, %v2912
        %v2941 = vadd.f32 %v2827, %v2917
        %v2942 = vadd.f32 %v2828, %v2920
        %v2943 = vadd.f32 %v2829, %v2925
        %v2944 = vadd.f32 %v2830, %v2928
        %v2945 = vadd.f32 %v2831, %v2933
        %v2946 = vadd.f32 %v2832, %v2936
        %s2947 = scalar_lea.vmem %s2711, 3 [#allocation3]
        %v2948 = vld [vmem:[%s2947] ss:$2 sm:$0xff]
        %s2949 = scalar_lea.vmem %s2711, 51 [#allocation3]
        %v2950 = vld [vmem:[%s2949] ss:$2 sm:$0xff]
        %v2951 = vpack.c.bf16 %v2950, %v2948
        %s2952 = scalar_lea.vmem %s5, 160
        %v2953 = vld [vmem:[%s2952] sm:$0xf]
        %v2954 = vld [vmem:[%s2952 + $0x4] sm:$0xf]
        %v2955 = vld [vmem:[%s2952 + $0x8] sm:$0xf]
        %v2956 = vld [vmem:[%s2952 + $0xc] sm:$0xf]
        %v2957 = vld [vmem:[%s2952 + $0x10] sm:$0xf]
        %v2958 = vld [vmem:[%s2952 + $0x14] sm:$0xf]
        %v2959 = vld [vmem:[%s2952 + $0x18] sm:$0xf]
        %v2960 = vld [vmem:[%s2952 + $0x1c] sm:$0xf]
        %v2969 = vunpack.c.l.b16 %v2953
        %v2970 = vunpack.c.l.b16 %v2954
        %v2971 = vunpack.c.l.b16 %v2955
        %v2972 = vunpack.c.l.b16 %v2956
        %v2973 = vunpack.c.l.b16 %v2957
        %v2974 = vunpack.c.l.b16 %v2958
        %v2975 = vunpack.c.l.b16 %v2959
        %v2976 = vunpack.c.l.b16 %v2960
        %v2977 = vpack.c.b16 %v2970, %v2969
        %v2978 = vpack.c.b16 %v2972, %v2971
        %v2979 = vpack.c.b16 %v2974, %v2973
        %v2980 = vpack.c.b16 %v2976, %v2975
        %v2986 = vsel %vm2322, %v2951, 0
        %2988 = vmatprep.subr.bf16.mxu0 0
        %2989 = vmatpush1.bf16.msra.mxu0 %v2977
        %2990 = vmatprep.subr.bf16.mxu0 0
        %2991 = vmatpush1.bf16.msra.mxu0 %v2978
        %2992 = vmatprep.subr.bf16.mxu0 0
        %2993 = vmatpush1.bf16.msra.mxu0 %v2979
        %2994 = vmatprep.subr.bf16.mxu0 0
        %2995 = vmatpush1.bf16.msra.mxu0 %v2980
        %2996 = vmatprep.subr.bf16.mxu0 0
        %2997 = vmatpush1.bf16.msra.mxu0 0
        %2998 = vmatprep.subr.bf16.mxu0 0
        %2999 = vmatpush1.bf16.msra.mxu0 0
        %3000 = vmatprep.subr.bf16.mxu0 0
        %3001 = vmatpush1.bf16.msra.mxu0 0
        %3002 = vmatprep.subr.bf16.mxu0 0
        %3003 = vmatpush1.bf16.msra.mxu0 0
        %3004 = vmatprep.subr.bf16.mxu0 0
        %3005 = vmatpush1.bf16.msra.mxu0 0
        %3006 = vmatprep.subr.bf16.mxu0 0
        %3007 = vmatpush1.bf16.msra.mxu0 0
        %3008 = vmatprep.subr.bf16.mxu0 0
        %3009 = vmatpush1.bf16.msra.mxu0 0
        %3010 = vmatprep.subr.bf16.mxu0 0
        %3011 = vmatpush1.bf16.msra.mxu0 0
        %3012 = vmatprep.subr.bf16.mxu0 0
        %3013 = vmatpush1.bf16.msra.mxu0 0
        %3014 = vmatprep.subr.bf16.mxu0 0
        %3015 = vmatpush1.bf16.msra.mxu0 0
        %3016 = vmatprep.subr.bf16.mxu0 0
        %3017 = vmatpush1.bf16.msra.mxu0 0
        %3018 = vmatprep.subr.bf16.mxu0 0
        %3019 = vmatpush1.bf16.msra.mxu0 0
        %3020 = vmatprep.mubr.bf16.mxu0 0
        %3021 = vmatmul.mubr.bf16.gmra.mrb[0].mxu0 %v2427
        %v3022 = vpop.f32.mrb[0].mxu0
        %v3023 = vadd.f32 0.0, %v3022
        %v3024 = vpop.f32.mrb[0].mxu0
        %v3025 = vpop.f32.mrb[0].mxu0
        %v3026 = vadd.f32 0.0, %v3025
        %v3027 = vpop.f32.mrb[0].mxu0
        %3028 = vmatprep.mubr.bf16.mxu0 0
        %3029 = vmatmul.mubr.bf16.gmra.mrb[0].mxu0 %v2636
        %v3030 = vpop.f32.mrb[0].mxu0
        %v3031 = vadd.f32 0.0, %v3030
        %v3032 = vpop.f32.mrb[0].mxu0
        %v3033 = vpop.f32.mrb[0].mxu0
        %v3034 = vadd.f32 0.0, %v3033
        %v3035 = vpop.f32.mrb[0].mxu0
        %3036 = vmatprep.mubr.bf16.mxu0 0
        %3037 = vmatmul.mubr.bf16.gmra.mrb[0].mxu0 %v2872
        %v3038 = vpop.f32.mrb[0].mxu0
        %v3039 = vadd.f32 0.0, %v3038
        %v3040 = vpop.f32.mrb[0].mxu0
        %v3041 = vpop.f32.mrb[0].mxu0
        %v3042 = vadd.f32 0.0, %v3041
        %v3043 = vpop.f32.mrb[0].mxu0
        %3044 = vmatprep.mubr.bf16.mxu0 0
        %3045 = vmatmul.mubr.bf16.gmra.mrb[0].mxu0 %v2986
        %v3046 = vpop.f32.mrb[0].mxu0
        %v3047 = vadd.f32 0.0, %v3046
        %v3048 = vpop.f32.mrb[0].mxu0
        %v3049 = vpop.f32.mrb[0].mxu0
        %v3050 = vadd.f32 0.0, %v3049
        %v3051 = vpop.f32.mrb[0].mxu0
        %3052 = vdwg.mxu0
        %v3053 = vadd.f32 %v2939, %v3023
        %v3054 = vadd.f32 %v2940, %v3026
        %v3055 = vadd.f32 %v2941, %v3031
        %v3056 = vadd.f32 %v2942, %v3034
        %v3057 = vadd.f32 %v2943, %v3039
        %v3058 = vadd.f32 %v2944, %v3042
        %v3059 = vadd.f32 %v2945, %v3047
        %v3060 = vadd.f32 %v2946, %v3050
        %s3061 = scalar_lea.vmem [#allocation3], 72
        %v3062 = vld [vmem:[%s3061] ss:$2 sm:$0xff]
        %s3063 = scalar_lea.vmem %s3061, 48 [#allocation3]
        %v3064 = vld [vmem:[%s3063] ss:$2 sm:$0xff]
        %s3065 = scalar_lea.vmem %s3061, 1 [#allocation3]
        %v3066 = vld [vmem:[%s3065] ss:$2 sm:$0xff]
        %s3067 = scalar_lea.vmem %s3061, 49 [#allocation3]
        %v3068 = vld [vmem:[%s3067] ss:$2 sm:$0xff]
        %v3069 = vpack.c.bf16 %v3064, %v3062
        %v3070 = vpack.c.bf16 %v3068, %v3066
        %s3071 = scalar_lea.vmem %s5, 192
        %v3072 = vld [vmem:[%s3071] sm:$0xf]
        %v3073 = vld [vmem:[%s3071 + $0x4] sm:$0xf]
        %v3074 = vld [vmem:[%s3071 + $0x8] sm:$0xf]
        %v3075 = vld [vmem:[%s3071 + $0xc] sm:$0xf]
        %v3076 = vld [vmem:[%s3071 + $0x10] sm:$0xf]
        %v3077 = vld [vmem:[%s3071 + $0x14] sm:$0xf]
        %v3078 = vld [vmem:[%s3071 + $0x18] sm:$0xf]
        %v3079 = vld [vmem:[%s3071 + $0x1c] sm:$0xf]
        %v3088 = vunpack.c.l.b16 %v3072
        %v3089 = vunpack.c.l.b16 %v3073
        %v3090 = vunpack.c.l.b16 %v3074
        %v3091 = vunpack.c.l.b16 %v3075
        %v3092 = vunpack.c.l.b16 %v3076
        %v3093 = vunpack.c.l.b16 %v3077
        %v3094 = vunpack.c.l.b16 %v3078
        %v3095 = vunpack.c.l.b16 %v3079
        %v3096 = vpack.c.b16 %v3089, %v3088
        %v3097 = vpack.c.b16 %v3091, %v3090
        %v3098 = vpack.c.b16 %v3093, %v3092
        %v3099 = vpack.c.b16 %v3095, %v3094
        %v3105 = vsel %vm2322, %v3069, 0
        %v3108 = vsel %vm2322, %v3070, 0
        %3110 = vmatprep.subr.bf16.mxu0 0
        %3111 = vmatpush1.bf16.msra.mxu0 %v3096
        %3112 = vmatprep.subr.bf16.mxu0 0
        %3113 = vmatpush1.bf16.msra.mxu0 %v3097
        %3114 = vmatprep.subr.bf16.mxu0 0
        %3115 = vmatpush1.bf16.msra.mxu0 %v3098
        %3116 = vmatprep.subr.bf16.mxu0 0
        %3117 = vmatpush1.bf16.msra.mxu0 %v3099
        %3118 = vmatprep.subr.bf16.mxu0 0
        %3119 = vmatpush1.bf16.msra.mxu0 0
        %3120 = vmatprep.subr.bf16.mxu0 0
        %3121 = vmatpush1.bf16.msra.mxu0 0
        %3122 = vmatprep.subr.bf16.mxu0 0
        %3123 = vmatpush1.bf16.msra.mxu0 0
        %3124 = vmatprep.subr.bf16.mxu0 0
        %3125 = vmatpush1.bf16.msra.mxu0 0
        %3126 = vmatprep.subr.bf16.mxu0 0
        %3127 = vmatpush1.bf16.msra.mxu0 0
        %3128 = vmatprep.subr.bf16.mxu0 0
        %3129 = vmatpush1.bf16.msra.mxu0 0
        %3130 = vmatprep.subr.bf16.mxu0 0
        %3131 = vmatpush1.bf16.msra.mxu0 0
        %3132 = vmatprep.subr.bf16.mxu0 0
        %3133 = vmatpush1.bf16.msra.mxu0 0
        %3134 = vmatprep.subr.bf16.mxu0 0
        %3135 = vmatpush1.bf16.msra.mxu0 0
        %3136 = vmatprep.subr.bf16.mxu0 0
        %3137 = vmatpush1.bf16.msra.mxu0 0
        %3138 = vmatprep.subr.bf16.mxu0 0
        %3139 = vmatpush1.bf16.msra.mxu0 0
        %3140 = vmatprep.subr.bf16.mxu0 0
        %3141 = vmatpush1.bf16.msra.mxu0 0
        %3142 = vmatprep.mubr.bf16.mxu0 0
        %3143 = vmatmul.mubr.bf16.gmra.mrb[0].mxu0 %v2755
        %v3144 = vpop.f32.mrb[0].mxu0
        %v3145 = vadd.f32 0.0, %v3144
        %v3146 = vpop.f32.mrb[0].mxu0
        %v3147 = vpop.f32.mrb[0].mxu0
        %v3148 = vadd.f32 0.0, %v3147
        %v3149 = vpop.f32.mrb[0].mxu0
        %3150 = vmatprep.mubr.bf16.mxu0 0
        %3151 = vmatmul.mubr.bf16.gmra.mrb[0].mxu0 %v2758
        %v3152 = vpop.f32.mrb[0].mxu0
        %v3153 = vadd.f32 0.0, %v3152
        %v3154 = vpop.f32.mrb[0].mxu0
        %v3155 = vpop.f32.mrb[0].mxu0
        %v3156 = vadd.f32 0.0, %v3155
        %v3157 = vpop.f32.mrb[0].mxu0
        %3158 = vmatprep.mubr.bf16.mxu0 0
        %3159 = vmatmul.mubr.bf16.gmra.mrb[0].mxu0 %v3105
        %v3160 = vpop.f32.mrb[0].mxu0
        %v3161 = vadd.f32 0.0, %v3160
        %v3162 = vpop.f32.mrb[0].mxu0
        %v3163 = vpop.f32.mrb[0].mxu0
        %v3164 = vadd.f32 0.0, %v3163
        %v3165 = vpop.f32.mrb[0].mxu0
        %3166 = vmatprep.mubr.bf16.mxu0 0
        %3167 = vmatmul.mubr.bf16.gmra.mrb[0].mxu0 %v3108
        %v3168 = vpop.f32.mrb[0].mxu0
        %v3169 = vadd.f32 0.0, %v3168
        %v3170 = vpop.f32.mrb[0].mxu0
        %v3171 = vpop.f32.mrb[0].mxu0
        %v3172 = vadd.f32 0.0, %v3171
        %v3173 = vpop.f32.mrb[0].mxu0
        %3174 = vdwg.mxu0
        %v3175 = vadd.f32 %v3053, %v3145
        %v3176 = vadd.f32 %v3054, %v3148
        %v3177 = vadd.f32 %v3055, %v3153
        %v3178 = vadd.f32 %v3056, %v3156
        %v3179 = vadd.f32 %v3057, %v3161
        %v3180 = vadd.f32 %v3058, %v3164
        %v3181 = vadd.f32 %v3059, %v3169
        %v3182 = vadd.f32 %v3060, %v3172
        %s3183 = scalar_lea.vmem %s3061, 2 [#allocation3]
        %v3184 = vld [vmem:[%s3183] ss:$2 sm:$0xff]
        %s3185 = scalar_lea.vmem %s3061, 50 [#allocation3]
        %v3186 = vld [vmem:[%s3185] ss:$2 sm:$0xff]
        %v3187 = vpack.c.bf16 %v3186, %v3184
        %s3188 = scalar_lea.vmem %s5, 224
        %v3189 = vld [vmem:[%s3188] sm:$0xf]
        %v3190 = vld [vmem:[%s3188 + $0x4] sm:$0xf]
        %v3191 = vld [vmem:[%s3188 + $0x8] sm:$0xf]
        %v3192 = vld [vmem:[%s3188 + $0xc] sm:$0xf]
        %v3193 = vld [vmem:[%s3188 + $0x10] sm:$0xf]
        %v3194 = vld [vmem:[%s3188 + $0x14] sm:$0xf]
        %v3195 = vld [vmem:[%s3188 + $0x18] sm:$0xf]
        %v3196 = vld [vmem:[%s3188 + $0x1c] sm:$0xf]
        %v3205 = vunpack.c.l.b16 %v3189
        %v3206 = vunpack.c.l.b16 %v3190
        %v3207 = vunpack.c.l.b16 %v3191
        %v3208 = vunpack.c.l.b16 %v3192
        %v3209 = vunpack.c.l.b16 %v3193
        %v3210 = vunpack.c.l.b16 %v3194
        %v3211 = vunpack.c.l.b16 %v3195
        %v3212 = vunpack.c.l.b16 %v3196
        %v3213 = vpack.c.b16 %v3206, %v3205
        %v3214 = vpack.c.b16 %v3208, %v3207
        %v3215 = vpack.c.b16 %v3210, %v3209
        %v3216 = vpack.c.b16 %v3212, %v3211
        %v3222 = vsel %vm2322, %v3187, 0
        %3224 = vmatprep.subr.bf16.mxu0 0
        %3225 = vmatpush1.bf16.msra.mxu0 %v3213
        %3226 = vmatprep.subr.bf16.mxu0 0
        %3227 = vmatpush1.bf16.msra.mxu0 %v3214
        %3228 = vmatprep.subr.bf16.mxu0 0
        %3229 = vmatpush1.bf16.msra.mxu0 %v3215
        %3230 = vmatprep.subr.bf16.mxu0 0
        %3231 = vmatpush1.bf16.msra.mxu0 %v3216
        %3232 = vmatprep.subr.bf16.mxu0 0
        %3233 = vmatpush1.bf16.msra.mxu0 0
        %3234 = vmatprep.subr.bf16.mxu0 0
        %3235 = vmatpush1.bf16.msra.mxu0 0
        %3236 = vmatprep.subr.bf16.mxu0 0
        %3237 = vmatpush1.bf16.msra.mxu0 0
        %3238 = vmatprep.subr.bf16.mxu0 0
        %3239 = vmatpush1.bf16.msra.mxu0 0
        %3240 = vmatprep.subr.bf16.mxu0 0
        %3241 = vmatpush1.bf16.msra.mxu0 0
        %3242 = vmatprep.subr.bf16.mxu0 0
        %3243 = vmatpush1.bf16.msra.mxu0 0
        %3244 = vmatprep.subr.bf16.mxu0 0
        %3245 = vmatpush1.bf16.msra.mxu0 0
        %3246 = vmatprep.subr.bf16.mxu0 0
        %3247 = vmatpush1.bf16.msra.mxu0 0
        %3248 = vmatprep.subr.bf16.mxu0 0
        %3249 = vmatpush1.bf16.msra.mxu0 0
        %3250 = vmatprep.subr.bf16.mxu0 0
        %3251 = vmatpush1.bf16.msra.mxu0 0
        %3252 = vmatprep.subr.bf16.mxu0 0
        %3253 = vmatpush1.bf16.msra.mxu0 0
        %3254 = vmatprep.subr.bf16.mxu0 0
        %3255 = vmatpush1.bf16.msra.mxu0 0
        %3256 = vmatprep.mubr.bf16.mxu0 0
        %3257 = vmatmul.mubr.bf16.gmra.mrb[0].mxu0 %v2758
        %v3258 = vpop.f32.mrb[0].mxu0
        %v3259 = vadd.f32 0.0, %v3258
        %v3260 = vpop.f32.mrb[0].mxu0
        %v3261 = vpop.f32.mrb[0].mxu0
        %v3262 = vadd.f32 0.0, %v3261
        %v3263 = vpop.f32.mrb[0].mxu0
        %3264 = vmatprep.mubr.bf16.mxu0 0
        %3265 = vmatmul.mubr.bf16.gmra.mrb[0].mxu0 %v2872
        %v3266 = vpop.f32.mrb[0].mxu0
        %v3267 = vadd.f32 0.0, %v3266
        %v3268 = vpop.f32.mrb[0].mxu0
        %v3269 = vpop.f32.mrb[0].mxu0
        %v3270 = vadd.f32 0.0, %v3269
        %v3271 = vpop.f32.mrb[0].mxu0
        %3272 = vmatprep.mubr.bf16.mxu0 0
        %3273 = vmatmul.mubr.bf16.gmra.mrb[0].mxu0 %v3108
        %v3274 = vpop.f32.mrb[0].mxu0
        %v3275 = vadd.f32 0.0, %v3274
        %v3276 = vpop.f32.mrb[0].mxu0
        %v3277 = vpop.f32.mrb[0].mxu0
        %v3278 = vadd.f32 0.0, %v3277
        %v3279 = vpop.f32.mrb[0].mxu0
        %3280 = vmatprep.mubr.bf16.mxu0 0
        %3281 = vmatmul.mubr.bf16.gmra.mrb[0].mxu0 %v3222
        %v3282 = vpop.f32.mrb[0].mxu0
        %v3283 = vadd.f32 0.0, %v3282
        %v3284 = vpop.f32.mrb[0].mxu0
        %v3285 = vpop.f32.mrb[0].mxu0
        %v3286 = vadd.f32 0.0, %v3285
        %v3287 = vpop.f32.mrb[0].mxu0
        %3288 = vdwg.mxu0
        %v3289 = vadd.f32 %v3175, %v3259
        %v3290 = vadd.f32 %v3176, %v3262
        %v3291 = vadd.f32 %v3177, %v3267
        %v3292 = vadd.f32 %v3178, %v3270
        %v3293 = vadd.f32 %v3179, %v3275
        %v3294 = vadd.f32 %v3180, %v3278
        %v3295 = vadd.f32 %v3181, %v3283
        %v3296 = vadd.f32 %v3182, %v3286
        %s3297 = scalar_lea.vmem %s3061, 3 [#allocation3]
        %v3298 = vld [vmem:[%s3297] ss:$2 sm:$0xff]
        %s3299 = scalar_lea.vmem %s3061, 51 [#allocation3]
        %v3300 = vld [vmem:[%s3299] ss:$2 sm:$0xff]
        %v3301 = vpack.c.bf16 %v3300, %v3298
        %s3302 = scalar_lea.vmem %s5, 256
        %v3303 = vld [vmem:[%s3302] sm:$0xf]
        %v3304 = vld [vmem:[%s3302 + $0x4] sm:$0xf]
        %v3305 = vld [vmem:[%s3302 + $0x8] sm:$0xf]
        %v3306 = vld [vmem:[%s3302 + $0xc] sm:$0xf]
        %v3307 = vld [vmem:[%s3302 + $0x10] sm:$0xf]
        %v3308 = vld [vmem:[%s3302 + $0x14] sm:$0xf]
        %v3309 = vld [vmem:[%s3302 + $0x18] sm:$0xf]
        %v3310 = vld [vmem:[%s3302 + $0x1c] sm:$0xf]
        %v3319 = vunpack.c.l.b16 %v3303
        %v3320 = vunpack.c.l.b16 %v3304
        %v3321 = vunpack.c.l.b16 %v3305
        %v3322 = vunpack.c.l.b16 %v3306
        %v3323 = vunpack.c.l.b16 %v3307
        %v3324 = vunpack.c.l.b16 %v3308
        %v3325 = vunpack.c.l.b16 %v3309
        %v3326 = vunpack.c.l.b16 %v3310
        %v3327 = vpack.c.b16 %v3320, %v3319
        %v3328 = vpack.c.b16 %v3322, %v3321
        %v3329 = vpack.c.b16 %v3324, %v3323
        %v3330 = vpack.c.b16 %v3326, %v3325
        %v3336 = vsel %vm2322, %v3301, 0
        %3338 = vmatprep.subr.bf16.mxu0 0
        %3339 = vmatpush1.bf16.msra.mxu0 %v3327
        %3340 = vmatprep.subr.bf16.mxu0 0
        %3341 = vmatpush1.bf16.msra.mxu0 %v3328
        %3342 = vmatprep.subr.bf16.mxu0 0
        %3343 = vmatpush1.bf16.msra.mxu0 %v3329
        %3344 = vmatprep.subr.bf16.mxu0 0
        %3345 = vmatpush1.bf16.msra.mxu0 %v3330
        %3346 = vmatprep.subr.bf16.mxu0 0
        %3347 = vmatpush1.bf16.msra.mxu0 0
        %3348 = vmatprep.subr.bf16.mxu0 0
        %3349 = vmatpush1.bf16.msra.mxu0 0
        %3350 = vmatprep.subr.bf16.mxu0 0
        %3351 = vmatpush1.bf16.msra.mxu0 0
        %3352 = vmatprep.subr.bf16.mxu0 0
        %3353 = vmatpush1.bf16.msra.mxu0 0
        %3354 = vmatprep.subr.bf16.mxu0 0
        %3355 = vmatpush1.bf16.msra.mxu0 0
        %3356 = vmatprep.subr.bf16.mxu0 0
        %3357 = vmatpush1.bf16.msra.mxu0 0
        %3358 = vmatprep.subr.bf16.mxu0 0
        %3359 = vmatpush1.bf16.msra.mxu0 0
        %3360 = vmatprep.subr.bf16.mxu0 0
        %3361 = vmatpush1.bf16.msra.mxu0 0
        %3362 = vmatprep.subr.bf16.mxu0 0
        %3363 = vmatpush1.bf16.msra.mxu0 0
        %3364 = vmatprep.subr.bf16.mxu0 0
        %3365 = vmatpush1.bf16.msra.mxu0 0
        %3366 = vmatprep.subr.bf16.mxu0 0
        %3367 = vmatpush1.bf16.msra.mxu0 0
        %3368 = vmatprep.subr.bf16.mxu0 0
        %3369 = vmatpush1.bf16.msra.mxu0 0
        %3370 = vmatprep.mubr.bf16.mxu0 0
        %3371 = vmatmul.mubr.bf16.gmra.mrb[0].mxu0 %v2872
        %v3372 = vpop.f32.mrb[0].mxu0
        %v3373 = vadd.f32 0.0, %v3372
        %v3374 = vpop.f32.mrb[0].mxu0
        %v3375 = vpop.f32.mrb[0].mxu0
        %v3376 = vadd.f32 0.0, %v3375
        %v3377 = vpop.f32.mrb[0].mxu0
        %3378 = vmatprep.mubr.bf16.mxu0 0
        %3379 = vmatmul.mubr.bf16.gmra.mrb[0].mxu0 %v2986
        %v3380 = vpop.f32.mrb[0].mxu0
        %v3381 = vadd.f32 0.0, %v3380
        %v3382 = vpop.f32.mrb[0].mxu0
        %v3383 = vpop.f32.mrb[0].mxu0
        %v3384 = vadd.f32 0.0, %v3383
        %v3385 = vpop.f32.mrb[0].mxu0
        %3386 = vmatprep.mubr.bf16.mxu0 0
        %3387 = vmatmul.mubr.bf16.gmra.mrb[0].mxu0 %v3222
        %v3388 = vpop.f32.mrb[0].mxu0
        %v3389 = vadd.f32 0.0, %v3388
        %v3390 = vpop.f32.mrb[0].mxu0
        %v3391 = vpop.f32.mrb[0].mxu0
        %v3392 = vadd.f32 0.0, %v3391
        %v3393 = vpop.f32.mrb[0].mxu0
        %3394 = vmatprep.mubr.bf16.mxu0 0
        %3395 = vmatmul.mubr.bf16.gmra.mrb[0].mxu0 %v3336
        %v3396 = vpop.f32.mrb[0].mxu0
        %v3397 = vadd.f32 0.0, %v3396
        %v3398 = vpop.f32.mrb[0].mxu0
        %v3399 = vpop.f32.mrb[0].mxu0
        %v3400 = vadd.f32 0.0, %v3399
        %v3401 = vpop.f32.mrb[0].mxu0
        %3402 = vdwg.mxu0
        %v3403 = vadd.f32 %v3289, %v3373
        %v3404 = vadd.f32 %v3290, %v3376
        %v3405 = vadd.f32 %v3291, %v3381
        %v3406 = vadd.f32 %v3292, %v3384
        %v3407 = vadd.f32 %v3293, %v3389
        %v3408 = vadd.f32 %v3294, %v3392
        %v3409 = vadd.f32 %v3295, %v3397
        %v3410 = vadd.f32 %v3296, %v3400
        %v3411 = vld [vmem:[%s6] sm:$0x1]
        %v3413 = vlaneseq
        %v3414 = vshrl.u32 %v3413, 7
        %v3415 = vsub.s32 0, %v3414
        %v3416 = vrot.slane %v3411, %v3415
        %v3418 = vadd.f32 %v3403, %v3416
        %v3419 = vadd.f32 %v3404, %v3416
        %v3420 = vadd.f32 %v3405, %v3416
        %v3421 = vadd.f32 %v3406, %v3416
        %v3422 = vadd.f32 %v3407, %v3416
        %v3423 = vadd.f32 %v3408, %v3416
        %v3424 = vadd.f32 %v3409, %v3416
        %v3425 = vadd.f32 %v3410, %v3416
        %v3426 = vmax.f32 %v3418, 0.0
        %v3427 = vmax.f32 %v3419, 0.0
        %v3428 = vmax.f32 %v3420, 0.0
        %v3429 = vmax.f32 %v3421, 0.0
        %v3430 = vmax.f32 %v3422, 0.0
        %v3431 = vmax.f32 %v3423, 0.0
        %v3432 = vmax.f32 %v3424, 0.0
        %v3433 = vmax.f32 %v3425, 0.0
        %v3434 = vmax.f32 %v3426, %v3428
        %v3435 = vmax.f32 %v3427, %v3429
        %v3436 = vmax.f32 %v3430, %v3432
        %v3437 = vmax.f32 %v3431, %v3433
        %v3438 = vmax.f32 %v3434, %v3436
        %v3439 = vmax.f32 %v3435, %v3437
        %v3440 = vpack.c.bf16 %v3438, %v3438
        %v3441 = vld [vmem:[%s7] sm:$0xff]
        %v3442 = vld [vmem:[%s7 + $0x8] sm:$0xff]
        %v3443 = vld [vmem:[%s7 + $0x10] sm:$0xff]
        %v3444 = vld [vmem:[%s7 + $0x18] sm:$0xff]
        %v3445 = vld [vmem:[%s7 + $0x20] sm:$0xff]
        %v3446 = vld [vmem:[%s7 + $0x28] sm:$0xff]
        %v3447 = vld [vmem:[%s7 + $0x30] sm:$0xff]
        %v3448 = vld [vmem:[%s7 + $0x38] sm:$0xff]
        %v3449 = vld [vmem:[%s7 + $0x40] sm:$0xff]
        %v3450 = vld [vmem:[%s7 + $0x48] sm:$0xff]
        %v3451 = vld [vmem:[%s7 + $0x50] sm:$0xff]
        %v3452 = vld [vmem:[%s7 + $0x58] sm:$0xff]
        %v3453 = vld [vmem:[%s7 + $0x60] sm:$0xff]
        %v3454 = vld [vmem:[%s7 + $0x68] sm:$0xff]
        %v3455 = vld [vmem:[%s7 + $0x70] sm:$0xff]
        %v3456 = vld [vmem:[%s7 + $0x78] sm:$0xff]
        %s3457 = scalar_lea.vmem %s7, 128
        %v3458 = vld [vmem:[%s3457] sm:$0xff]
        %v3459 = vld [vmem:[%s3457 + $0x8] sm:$0xff]
        %v3460 = vld [vmem:[%s3457 + $0x10] sm:$0xff]
        %v3461 = vld [vmem:[%s3457 + $0x18] sm:$0xff]
        %v3462 = vld [vmem:[%s3457 + $0x20] sm:$0xff]
        %v3463 = vld [vmem:[%s3457 + $0x28] sm:$0xff]
        %v3464 = vld [vmem:[%s3457 + $0x30] sm:$0xff]
        %v3465 = vld [vmem:[%s3457 + $0x38] sm:$0xff]
        %v3466 = vld [vmem:[%s3457 + $0x40] sm:$0xff]
        %v3467 = vld [vmem:[%s3457 + $0x48] sm:$0xff]
        %v3468 = vld [vmem:[%s3457 + $0x50] sm:$0xff]
        %v3469 = vld [vmem:[%s3457 + $0x58] sm:$0xff]
        %v3470 = vld [vmem:[%s3457 + $0x60] sm:$0xff]
        %v3471 = vld [vmem:[%s3457 + $0x68] sm:$0xff]
        %v3472 = vld [vmem:[%s3457 + $0x70] sm:$0xff]
        %v3473 = vld [vmem:[%s3457 + $0x78] sm:$0xff]
        %v3475 = vshrl.u32 %v3440, 16
        %v3494 = vunpack.c.l.b16 %v3458
        %v3495 = vunpack.c.h.b16 %v3458
        %v3496 = vunpack.c.l.b16 %v3459
        %v3497 = vunpack.c.h.b16 %v3459
        %v3498 = vunpack.c.l.b16 %v3460
        %v3499 = vunpack.c.h.b16 %v3460
        %v3500 = vunpack.c.l.b16 %v3461
        %v3501 = vunpack.c.h.b16 %v3461
        %v3502 = vunpack.c.l.b16 %v3462
        %v3503 = vunpack.c.h.b16 %v3462
        %v3504 = vunpack.c.l.b16 %v3463
        %v3505 = vunpack.c.h.b16 %v3463
        %v3506 = vunpack.c.l.b16 %v3464
        %v3507 = vunpack.c.h.b16 %v3464
        %v3508 = vunpack.c.l.b16 %v3465
        %v3509 = vunpack.c.h.b16 %v3465
        %v3510 = vunpack.c.l.b16 %v3466
        %v3511 = vunpack.c.h.b16 %v3466
        %v3512 = vunpack.c.l.b16 %v3467
        %v3513 = vunpack.c.h.b16 %v3467
        %v3514 = vunpack.c.l.b16 %v3468
        %v3515 = vunpack.c.h.b16 %v3468
        %v3516 = vunpack.c.l.b16 %v3469
        %v3517 = vunpack.c.h.b16 %v3469
        %v3518 = vunpack.c.l.b16 %v3470
        %v3519 = vunpack.c.h.b16 %v3470
        %v3520 = vunpack.c.l.b16 %v3471
        %v3521 = vunpack.c.h.b16 %v3471
        %v3522 = vunpack.c.l.b16 %v3472
        %v3523 = vunpack.c.h.b16 %v3472
        %v3524 = vunpack.c.l.b16 %v3473
        %v3525 = vunpack.c.h.b16 %v3473
        %v3526 = vpack.c.b16 %v3496, %v3494
        %v3527 = vpack.c.b16 %v3497, %v3495
        %v3528 = vpack.c.b16 %v3500, %v3498
        %v3529 = vpack.c.b16 %v3501, %v3499
        %v3530 = vpack.c.b16 %v3504, %v3502
        %v3531 = vpack.c.b16 %v3505, %v3503
        %v3532 = vpack.c.b16 %v3508, %v3506
        %v3533 = vpack.c.b16 %v3509, %v3507
        %v3534 = vpack.c.b16 %v3512, %v3510
        %v3535 = vpack.c.b16 %v3513, %v3511
        %v3536 = vpack.c.b16 %v3516, %v3514
        %v3537 = vpack.c.b16 %v3517, %v3515
        %v3538 = vpack.c.b16 %v3520, %v3518
        %v3539 = vpack.c.b16 %v3521, %v3519
        %v3540 = vpack.c.b16 %v3524, %v3522
        %v3541 = vpack.c.b16 %v3525, %v3523
        %3558 = vmatprep.subr.bf16.mxu0 %v3527
        %3559 = vmatpush1.bf16.msra.mxu0 %v3526
        %3560 = vmatprep.subr.bf16.mxu0 %v3529
        %3561 = vmatpush1.bf16.msra.mxu0 %v3528
        %3562 = vmatprep.subr.bf16.mxu0 %v3531
        %3563 = vmatpush1.bf16.msra.mxu0 %v3530
        %3564 = vmatprep.subr.bf16.mxu0 %v3533
        %3565 = vmatpush1.bf16.msra.mxu0 %v3532
        %3566 = vmatprep.subr.bf16.mxu0 %v3535
        %3567 = vmatpush1.bf16.msra.mxu0 %v3534
        %3568 = vmatprep.subr.bf16.mxu0 %v3537
        %3569 = vmatpush1.bf16.msra.mxu0 %v3536
        %3570 = vmatprep.subr.bf16.mxu0 %v3539
        %3571 = vmatpush1.bf16.msra.mxu0 %v3538
        %3572 = vmatprep.subr.bf16.mxu0 %v3541
        %3573 = vmatpush1.bf16.msra.mxu0 %v3540
        %3574 = vmatprep.subr.bf16.mxu0 0
        %3575 = vmatpush1.bf16.msra.mxu0 0
        %3576 = vmatprep.subr.bf16.mxu0 0
        %3577 = vmatpush1.bf16.msra.mxu0 0
        %3578 = vmatprep.subr.bf16.mxu0 0
        %3579 = vmatpush1.bf16.msra.mxu0 0
        %3580 = vmatprep.subr.bf16.mxu0 0
        %3581 = vmatpush1.bf16.msra.mxu0 0
        %3582 = vmatprep.subr.bf16.mxu0 0
        %3583 = vmatpush1.bf16.msra.mxu0 0
        %3584 = vmatprep.subr.bf16.mxu0 0
        %3585 = vmatpush1.bf16.msra.mxu0 0
        %3586 = vmatprep.subr.bf16.mxu0 0
        %3587 = vmatpush1.bf16.msra.mxu0 0
        %3588 = vmatprep.subr.bf16.mxu0 0
        %3589 = vmatpush1.bf16.msra.mxu0 0
        %3590 = vmatprep.mubr.bf16.mxu0 0
        %3591 = vmatmul.mubr.bf16.gmra.mrb[0].mxu0 %v3475
        %v3592 = vpop.f32.mrb[0].mxu0
        %v3593 = vadd.f32 0.0, %v3592
        %v3594 = vpop.f32.mrb[0].mxu0
        %v3595 = vadd.f32 0.0, %v3594
        %v3596 = vpop.f32.mrb[0].mxu0
        %v3597 = vpop.f32.mrb[0].mxu0
        %3598 = vdwg.mxu0
        %v3615 = vunpack.c.l.b16 %v3441
        %v3616 = vunpack.c.h.b16 %v3441
        %v3617 = vunpack.c.l.b16 %v3442
        %v3618 = vunpack.c.h.b16 %v3442
        %v3619 = vunpack.c.l.b16 %v3443
        %v3620 = vunpack.c.h.b16 %v3443
        %v3621 = vunpack.c.l.b16 %v3444
        %v3622 = vunpack.c.h.b16 %v3444
        %v3623 = vunpack.c.l.b16 %v3445
        %v3624 = vunpack.c.h.b16 %v3445
        %v3625 = vunpack.c.l.b16 %v3446
        %v3626 = vunpack.c.h.b16 %v3446
        %v3627 = vunpack.c.l.b16 %v3447
        %v3628 = vunpack.c.h.b16 %v3447
        %v3629 = vunpack.c.l.b16 %v3448
        %v3630 = vunpack.c.h.b16 %v3448
        %v3631 = vunpack.c.l.b16 %v3449
        %v3632 = vunpack.c.h.b16 %v3449
        %v3633 = vunpack.c.l.b16 %v3450
        %v3634 = vunpack.c.h.b16 %v3450
        %v3635 = vunpack.c.l.b16 %v3451
        %v3636 = vunpack.c.h.b16 %v3451
        %v3637 = vunpack.c.l.b16 %v3452
        %v3638 = vunpack.c.h.b16 %v3452
        %v3639 = vunpack.c.l.b16 %v3453
        %v3640 = vunpack.c.h.b16 %v3453
        %v3641 = vunpack.c.l.b16 %v3454
        %v3642 = vunpack.c.h.b16 %v3454
        %v3643 = vunpack.c.l.b16 %v3455
        %v3644 = vunpack.c.h.b16 %v3455
        %v3645 = vunpack.c.l.b16 %v3456
        %v3646 = vunpack.c.h.b16 %v3456
        %v3647 = vpack.c.b16 %v3617, %v3615
        %v3648 = vpack.c.b16 %v3618, %v3616
        %v3649 = vpack.c.b16 %v3621, %v3619
        %v3650 = vpack.c.b16 %v3622, %v3620
        %v3651 = vpack.c.b16 %v3625, %v3623
        %v3652 = vpack.c.b16 %v3626, %v3624
        %v3653 = vpack.c.b16 %v3629, %v3627
        %v3654 = vpack.c.b16 %v3630, %v3628
        %v3655 = vpack.c.b16 %v3633, %v3631
        %v3656 = vpack.c.b16 %v3634, %v3632
        %v3657 = vpack.c.b16 %v3637, %v3635
        %v3658 = vpack.c.b16 %v3638, %v3636
        %v3659 = vpack.c.b16 %v3641, %v3639
        %v3660 = vpack.c.b16 %v3642, %v3640
        %v3661 = vpack.c.b16 %v3645, %v3643
        %v3662 = vpack.c.b16 %v3646, %v3644
        %3679 = vmatprep.subr.bf16.mxu0 %v3648
        %3680 = vmatpush1.bf16.msra.mxu0 %v3647
        %3681 = vmatprep.subr.bf16.mxu0 %v3650
        %3682 = vmatpush1.bf16.msra.mxu0 %v3649
        %3683 = vmatprep.subr.bf16.mxu0 %v3652
        %3684 = vmatpush1.bf16.msra.mxu0 %v3651
        %3685 = vmatprep.subr.bf16.mxu0 %v3654
        %3686 = vmatpush1.bf16.msra.mxu0 %v3653
        %3687 = vmatprep.subr.bf16.mxu0 %v3656
        %3688 = vmatpush1.bf16.msra.mxu0 %v3655
        %3689 = vmatprep.subr.bf16.mxu0 %v3658
        %3690 = vmatpush1.bf16.msra.mxu0 %v3657
        %3691 = vmatprep.subr.bf16.mxu0 %v3660
        %3692 = vmatpush1.bf16.msra.mxu0 %v3659
        %3693 = vmatprep.subr.bf16.mxu0 %v3662
        %3694 = vmatpush1.bf16.msra.mxu0 %v3661
        %3695 = vmatprep.subr.bf16.mxu0 0
        %3696 = vmatpush1.bf16.msra.mxu0 0
        %3697 = vmatprep.subr.bf16.mxu0 0
        %3698 = vmatpush1.bf16.msra.mxu0 0
        %3699 = vmatprep.subr.bf16.mxu0 0
        %3700 = vmatpush1.bf16.msra.mxu0 0
        %3701 = vmatprep.subr.bf16.mxu0 0
        %3702 = vmatpush1.bf16.msra.mxu0 0
        %3703 = vmatprep.subr.bf16.mxu0 0
        %3704 = vmatpush1.bf16.msra.mxu0 0
        %3705 = vmatprep.subr.bf16.mxu0 0
        %3706 = vmatpush1.bf16.msra.mxu0 0
        %3707 = vmatprep.subr.bf16.mxu0 0
        %3708 = vmatpush1.bf16.msra.mxu0 0
        %3709 = vmatprep.subr.bf16.mxu0 0
        %3710 = vmatpush1.bf16.msra.mxu0 0
        %3711 = vmatprep.mubr.bf16.mxu0 0
        %3712 = vmatmul.mubr.bf16.gmra.mrb[0].mxu0 %v3440
        %v3713 = vpop.f32.mrb[0].mxu0
        %v3714 = vadd.f32 %v3593, %v3713
        %v3715 = vpop.f32.mrb[0].mxu0
        %v3716 = vadd.f32 %v3595, %v3715
        %v3717 = vpop.f32.mrb[0].mxu0
        %v3718 = vpop.f32.mrb[0].mxu0
        %3719 = vdwg.mxu0
        %v3720 = vpack.c.bf16 %v3439, %v3439
        %s3721 = scalar_lea.vmem %s7, 256
        %v3722 = vld [vmem:[%s3721] sm:$0xff]
        %v3723 = vld [vmem:[%s3721 + $0x8] sm:$0xff]
        %v3724 = vld [vmem:[%s3721 + $0x10] sm:$0xff]
        %v3725 = vld [vmem:[%s3721 + $0x18] sm:$0xff]
        %v3726 = vld [vmem:[%s3721 + $0x20] sm:$0xff]
        %v3727 = vld [vmem:[%s3721 + $0x28] sm:$0xff]
        %v3728 = vld [vmem:[%s3721 + $0x30] sm:$0xff]
        %v3729 = vld [vmem:[%s3721 + $0x38] sm:$0xff]
        %v3730 = vld [vmem:[%s3721 + $0x40] sm:$0xff]
        %v3731 = vld [vmem:[%s3721 + $0x48] sm:$0xff]
        %v3732 = vld [vmem:[%s3721 + $0x50] sm:$0xff]
        %v3733 = vld [vmem:[%s3721 + $0x58] sm:$0xff]
        %v3734 = vld [vmem:[%s3721 + $0x60] sm:$0xff]
        %v3735 = vld [vmem:[%s3721 + $0x68] sm:$0xff]
        %v3736 = vld [vmem:[%s3721 + $0x70] sm:$0xff]
        %v3737 = vld [vmem:[%s3721 + $0x78] sm:$0xff]
        %v3754 = vunpack.c.l.b16 %v3722
        %v3755 = vunpack.c.h.b16 %v3722
        %v3756 = vunpack.c.l.b16 %v3723
        %v3757 = vunpack.c.h.b16 %v3723
        %v3758 = vunpack.c.l.b16 %v3724
        %v3759 = vunpack.c.h.b16 %v3724
        %v3760 = vunpack.c.l.b16 %v3725
        %v3761 = vunpack.c.h.b16 %v3725
        %v3762 = vunpack.c.l.b16 %v3726
        %v3763 = vunpack.c.h.b16 %v3726
        %v3764 = vunpack.c.l.b16 %v3727
        %v3765 = vunpack.c.h.b16 %v3727
        %v3766 = vunpack.c.l.b16 %v3728
        %v3767 = vunpack.c.h.b16 %v3728
        %v3768 = vunpack.c.l.b16 %v3729
        %v3769 = vunpack.c.h.b16 %v3729
        %v3770 = vunpack.c.l.b16 %v3730
        %v3771 = vunpack.c.h.b16 %v3730
        %v3772 = vunpack.c.l.b16 %v3731
        %v3773 = vunpack.c.h.b16 %v3731
        %v3774 = vunpack.c.l.b16 %v3732
        %v3775 = vunpack.c.h.b16 %v3732
        %v3776 = vunpack.c.l.b16 %v3733
        %v3777 = vunpack.c.h.b16 %v3733
        %v3778 = vunpack.c.l.b16 %v3734
        %v3779 = vunpack.c.h.b16 %v3734
        %v3780 = vunpack.c.l.b16 %v3735
        %v3781 = vunpack.c.h.b16 %v3735
        %v3782 = vunpack.c.l.b16 %v3736
        %v3783 = vunpack.c.h.b16 %v3736
        %v3784 = vunpack.c.l.b16 %v3737
        %v3785 = vunpack.c.h.b16 %v3737
        %v3786 = vpack.c.b16 %v3756, %v3754
        %v3787 = vpack.c.b16 %v3757, %v3755
        %v3788 = vpack.c.b16 %v3760, %v3758
        %v3789 = vpack.c.b16 %v3761, %v3759
        %v3790 = vpack.c.b16 %v3764, %v3762
        %v3791 = vpack.c.b16 %v3765, %v3763
        %v3792 = vpack.c.b16 %v3768, %v3766
        %v3793 = vpack.c.b16 %v3769, %v3767
        %v3794 = vpack.c.b16 %v3772, %v3770
        %v3795 = vpack.c.b16 %v3773, %v3771
        %v3796 = vpack.c.b16 %v3776, %v3774
        %v3797 = vpack.c.b16 %v3777, %v3775
        %v3798 = vpack.c.b16 %v3780, %v3778
        %v3799 = vpack.c.b16 %v3781, %v3779
        %v3800 = vpack.c.b16 %v3784, %v3782
        %v3801 = vpack.c.b16 %v3785, %v3783
        %3818 = vmatprep.subr.bf16.mxu0 %v3787
        %3819 = vmatpush1.bf16.msra.mxu0 %v3786
        %3820 = vmatprep.subr.bf16.mxu0 %v3789
        %3821 = vmatpush1.bf16.msra.mxu0 %v3788
        %3822 = vmatprep.subr.bf16.mxu0 %v3791
        %3823 = vmatpush1.bf16.msra.mxu0 %v3790
        %3824 = vmatprep.subr.bf16.mxu0 %v3793
        %3825 = vmatpush1.bf16.msra.mxu0 %v3792
        %3826 = vmatprep.subr.bf16.mxu0 %v3795
        %3827 = vmatpush1.bf16.msra.mxu0 %v3794
        %3828 = vmatprep.subr.bf16.mxu0 %v3797
        %3829 = vmatpush1.bf16.msra.mxu0 %v3796
        %3830 = vmatprep.subr.bf16.mxu0 %v3799
        %3831 = vmatpush1.bf16.msra.mxu0 %v3798
        %3832 = vmatprep.subr.bf16.mxu0 %v3801
        %3833 = vmatpush1.bf16.msra.mxu0 %v3800
        %3834 = vmatprep.subr.bf16.mxu0 0
        %3835 = vmatpush1.bf16.msra.mxu0 0
        %3836 = vmatprep.subr.bf16.mxu0 0
        %3837 = vmatpush1.bf16.msra.mxu0 0
        %3838 = vmatprep.subr.bf16.mxu0 0
        %3839 = vmatpush1.bf16.msra.mxu0 0
        %3840 = vmatprep.subr.bf16.mxu0 0
        %3841 = vmatpush1.bf16.msra.mxu0 0
        %3842 = vmatprep.subr.bf16.mxu0 0
        %3843 = vmatpush1.bf16.msra.mxu0 0
        %3844 = vmatprep.subr.bf16.mxu0 0
        %3845 = vmatpush1.bf16.msra.mxu0 0
        %3846 = vmatprep.subr.bf16.mxu0 0
        %3847 = vmatpush1.bf16.msra.mxu0 0
        %3848 = vmatprep.subr.bf16.mxu0 0
        %3849 = vmatpush1.bf16.msra.mxu0 0
        %3850 = vmatprep.mubr.bf16.mxu0 0
        %3851 = vmatmul.mubr.bf16.gmra.mrb[0].mxu0 %v3720
        %v3852 = vpop.f32.mrb[0].mxu0
        %v3853 = vadd.f32 0.0, %v3852
        %v3854 = vpop.f32.mrb[0].mxu0
        %v3855 = vadd.f32 0.0, %v3854
        %v3856 = vpop.f32.mrb[0].mxu0
        %v3857 = vpop.f32.mrb[0].mxu0
        %3858 = vdwg.mxu0
        %v3859 = vadd.f32 %v3714, %v3853
        %v3860 = vadd.f32 %v3716, %v3855
        %s3861 = scalar_lea.vmem %s7, 384
        %v3862 = vld [vmem:[%s3861] sm:$0xff]
        %v3863 = vld [vmem:[%s3861 + $0x8] sm:$0xff]
        %v3864 = vld [vmem:[%s3861 + $0x10] sm:$0xff]
        %v3865 = vld [vmem:[%s3861 + $0x18] sm:$0xff]
        %v3866 = vld [vmem:[%s3861 + $0x20] sm:$0xff]
        %v3867 = vld [vmem:[%s3861 + $0x28] sm:$0xff]
        %v3868 = vld [vmem:[%s3861 + $0x30] sm:$0xff]
        %v3869 = vld [vmem:[%s3861 + $0x38] sm:$0xff]
        %v3870 = vld [vmem:[%s3861 + $0x40] sm:$0xff]
        %v3871 = vld [vmem:[%s3861 + $0x48] sm:$0xff]
        %v3872 = vld [vmem:[%s3861 + $0x50] sm:$0xff]
        %v3873 = vld [vmem:[%s3861 + $0x58] sm:$0xff]
        %v3874 = vld [vmem:[%s3861 + $0x60] sm:$0xff]
        %v3875 = vld [vmem:[%s3861 + $0x68] sm:$0xff]
        %v3876 = vld [vmem:[%s3861 + $0x70] sm:$0xff]
        %v3877 = vld [vmem:[%s3861 + $0x78] sm:$0xff]
        %v3879 = vshrl.u32 %v3720, 16
        %v3898 = vunpack.c.l.b16 %v3862
        %v3899 = vunpack.c.h.b16 %v3862
        %v3900 = vunpack.c.l.b16 %v3863
        %v3901 = vunpack.c.h.b16 %v3863
        %v3902 = vunpack.c.l.b16 %v3864
        %v3903 = vunpack.c.h.b16 %v3864
        %v3904 = vunpack.c.l.b16 %v3865
        %v3905 = vunpack.c.h.b16 %v3865
        %v3906 = vunpack.c.l.b16 %v3866
        %v3907 = vunpack.c.h.b16 %v3866
        %v3908 = vunpack.c.l.b16 %v3867
        %v3909 = vunpack.c.h.b16 %v3867
        %v3910 = vunpack.c.l.b16 %v3868
        %v3911 = vunpack.c.h.b16 %v3868
        %v3912 = vunpack.c.l.b16 %v3869
        %v3913 = vunpack.c.h.b16 %v3869
        %v3914 = vunpack.c.l.b16 %v3870
        %v3915 = vunpack.c.h.b16 %v3870
        %v3916 = vunpack.c.l.b16 %v3871
        %v3917 = vunpack.c.h.b16 %v3871
        %v3918 = vunpack.c.l.b16 %v3872
        %v3919 = vunpack.c.h.b16 %v3872
        %v3920 = vunpack.c.l.b16 %v3873
        %v3921 = vunpack.c.h.b16 %v3873
        %v3922 = vunpack.c.l.b16 %v3874
        %v3923 = vunpack.c.h.b16 %v3874
        %v3924 = vunpack.c.l.b16 %v3875
        %v3925 = vunpack.c.h.b16 %v3875
        %v3926 = vunpack.c.l.b16 %v3876
        %v3927 = vunpack.c.h.b16 %v3876
        %v3928 = vunpack.c.l.b16 %v3877
        %v3929 = vunpack.c.h.b16 %v3877
        %v3930 = vpack.c.b16 %v3900, %v3898
        %v3931 = vpack.c.b16 %v3901, %v3899
        %v3932 = vpack.c.b16 %v3904, %v3902
        %v3933 = vpack.c.b16 %v3905, %v3903
        %v3934 = vpack.c.b16 %v3908, %v3906
        %v3935 = vpack.c.b16 %v3909, %v3907
        %v3936 = vpack.c.b16 %v3912, %v3910
        %v3937 = vpack.c.b16 %v3913, %v3911
        %v3938 = vpack.c.b16 %v3916, %v3914
        %v3939 = vpack.c.b16 %v3917, %v3915
        %v3940 = vpack.c.b16 %v3920, %v3918
        %v3941 = vpack.c.b16 %v3921, %v3919
        %v3942 = vpack.c.b16 %v3924, %v3922
        %v3943 = vpack.c.b16 %v3925, %v3923
        %v3944 = vpack.c.b16 %v3928, %v3926
        %v3945 = vpack.c.b16 %v3929, %v3927
        %3962 = vmatprep.subr.bf16.mxu0 %v3931
        %3963 = vmatpush1.bf16.msra.mxu0 %v3930
        %3964 = vmatprep.subr.bf16.mxu0 %v3933
        %3965 = vmatpush1.bf16.msra.mxu0 %v3932
        %3966 = vmatprep.subr.bf16.mxu0 %v3935
        %3967 = vmatpush1.bf16.msra.mxu0 %v3934
        %3968 = vmatprep.subr.bf16.mxu0 %v3937
        %3969 = vmatpush1.bf16.msra.mxu0 %v3936
        %3970 = vmatprep.subr.bf16.mxu0 %v3939
        %3971 = vmatpush1.bf16.msra.mxu0 %v3938
        %3972 = vmatprep.subr.bf16.mxu0 %v3941
        %3973 = vmatpush1.bf16.msra.mxu0 %v3940
        %3974 = vmatprep.subr.bf16.mxu0 %v3943
        %3975 = vmatpush1.bf16.msra.mxu0 %v3942
        %3976 = vmatprep.subr.bf16.mxu0 %v3945
        %3977 = vmatpush1.bf16.msra.mxu0 %v3944
        %3978 = vmatprep.subr.bf16.mxu0 0
        %3979 = vmatpush1.bf16.msra.mxu0 0
        %3980 = vmatprep.subr.bf16.mxu0 0
        %3981 = vmatpush1.bf16.msra.mxu0 0
        %3982 = vmatprep.subr.bf16.mxu0 0
        %3983 = vmatpush1.bf16.msra.mxu0 0
        %3984 = vmatprep.subr.bf16.mxu0 0
        %3985 = vmatpush1.bf16.msra.mxu0 0
        %3986 = vmatprep.subr.bf16.mxu0 0
        %3987 = vmatpush1.bf16.msra.mxu0 0
        %3988 = vmatprep.subr.bf16.mxu0 0
        %3989 = vmatpush1.bf16.msra.mxu0 0
        %3990 = vmatprep.subr.bf16.mxu0 0
        %3991 = vmatpush1.bf16.msra.mxu0 0
        %3992 = vmatprep.subr.bf16.mxu0 0
        %3993 = vmatpush1.bf16.msra.mxu0 0
        %3994 = vmatprep.mubr.bf16.mxu0 0
        %3995 = vmatmul.mubr.bf16.gmra.mrb[0].mxu0 %v3879
        %v3996 = vpop.f32.mrb[0].mxu0
        %v3997 = vadd.f32 0.0, %v3996
        %v3998 = vpop.f32.mrb[0].mxu0
        %v3999 = vadd.f32 0.0, %v3998
        %v4000 = vpop.f32.mrb[0].mxu0
        %v4001 = vpop.f32.mrb[0].mxu0
        %4002 = vdwg.mxu0
        %v4003 = vadd.f32 %v3859, %v3997
        %v4004 = vadd.f32 %v3860, %v3999
        %v4005 = vld [vmem:[%s8] sm:$0x3]
        %v4007 = vlaneseq
        %v4008 = vshrl.u32 %v4007, 7
        %v4009 = vsub.s32 0, %v4008
        %v4010 = vrot.slane %v4005, %v4009
        %v4011 = vlaneseq
        %v4012 = vshrl.u32 %v4011, 7
        %v4013 = vsub.s32 1, %v4012
        %v4014 = vrot.slane %v4005, %v4013
        %v4017 = vadd.f32 %v4003, %v4010
        %v4018 = vadd.f32 %v4004, %v4014
        %v4019 = vmax.f32 %v4017, 0.0
        %v4020 = vmax.f32 %v4018, 0.0
        %v4021 = vpack.c.bf16 %v4019, %v4019
        %v4022 = vpack.c.bf16 %v4020, %v4020
        %v4023 = vld [vmem:[%s9] sm:$0xf]
        %v4024 = vld [vmem:[%s9 + $0x4] sm:$0xf]
        %v4025 = vld [vmem:[%s9 + $0x8] sm:$0xf]
        %v4026 = vld [vmem:[%s9 + $0xc] sm:$0xf]
        %v4027 = vld [vmem:[%s9 + $0x10] sm:$0xf]
        %v4028 = vld [vmem:[%s9 + $0x14] sm:$0xf]
        %v4029 = vld [vmem:[%s9 + $0x18] sm:$0xf]
        %v4030 = vld [vmem:[%s9 + $0x1c] sm:$0xf]
        %v4031 = vld [vmem:[%s9 + $0x20] sm:$0xf]
        %v4032 = vld [vmem:[%s9 + $0x24] sm:$0xf]
        %v4033 = vld [vmem:[%s9 + $0x28] sm:$0xf]
        %v4034 = vld [vmem:[%s9 + $0x2c] sm:$0xf]
        %v4035 = vld [vmem:[%s9 + $0x30] sm:$0xf]
        %v4036 = vld [vmem:[%s9 + $0x34] sm:$0xf]
        %v4037 = vld [vmem:[%s9 + $0x38] sm:$0xf]
        %v4038 = vld [vmem:[%s9 + $0x3c] sm:$0xf]
        %v4039 = vld [vmem:[%s9 + $0x40] sm:$0xf]
        %v4040 = vld [vmem:[%s9 + $0x44] sm:$0xf]
        %v4041 = vld [vmem:[%s9 + $0x48] sm:$0xf]
        %v4042 = vld [vmem:[%s9 + $0x4c] sm:$0xf]
        %v4043 = vld [vmem:[%s9 + $0x50] sm:$0xf]
        %v4044 = vld [vmem:[%s9 + $0x54] sm:$0xf]
        %v4045 = vld [vmem:[%s9 + $0x58] sm:$0xf]
        %v4046 = vld [vmem:[%s9 + $0x5c] sm:$0xf]
        %v4047 = vld [vmem:[%s9 + $0x60] sm:$0xf]
        %v4048 = vld [vmem:[%s9 + $0x64] sm:$0xf]
        %v4049 = vld [vmem:[%s9 + $0x68] sm:$0xf]
        %v4050 = vld [vmem:[%s9 + $0x6c] sm:$0xf]
        %v4051 = vld [vmem:[%s9 + $0x70] sm:$0xf]
        %v4052 = vld [vmem:[%s9 + $0x74] sm:$0xf]
        %v4053 = vld [vmem:[%s9 + $0x78] sm:$0xf]
        %v4054 = vld [vmem:[%s9 + $0x7c] sm:$0xf]
        %v4055 = vld [vmem:[%s10] sm:$0x1]
        %v4088 = vunpack.c.l.b16 %v4023
        %v4089 = vunpack.c.l.b16 %v4024
        %v4090 = vunpack.c.l.b16 %v4025
        %v4091 = vunpack.c.l.b16 %v4026
        %v4092 = vunpack.c.l.b16 %v4027
        %v4093 = vunpack.c.l.b16 %v4028
        %v4094 = vunpack.c.l.b16 %v4029
        %v4095 = vunpack.c.l.b16 %v4030
        %v4096 = vunpack.c.l.b16 %v4031
        %v4097 = vunpack.c.l.b16 %v4032
        %v4098 = vunpack.c.l.b16 %v4033
        %v4099 = vunpack.c.l.b16 %v4034
        %v4100 = vunpack.c.l.b16 %v4035
        %v4101 = vunpack.c.l.b16 %v4036
        %v4102 = vunpack.c.l.b16 %v4037
        %v4103 = vunpack.c.l.b16 %v4038
        %v4104 = vunpack.c.l.b16 %v4039
        %v4105 = vunpack.c.l.b16 %v4040
        %v4106 = vunpack.c.l.b16 %v4041
        %v4107 = vunpack.c.l.b16 %v4042
        %v4108 = vunpack.c.l.b16 %v4043
        %v4109 = vunpack.c.l.b16 %v4044
        %v4110 = vunpack.c.l.b16 %v4045
        %v4111 = vunpack.c.l.b16 %v4046
        %v4112 = vunpack.c.l.b16 %v4047
        %v4113 = vunpack.c.l.b16 %v4048
        %v4114 = vunpack.c.l.b16 %v4049
        %v4115 = vunpack.c.l.b16 %v4050
        %v4116 = vunpack.c.l.b16 %v4051
        %v4117 = vunpack.c.l.b16 %v4052
        %v4118 = vunpack.c.l.b16 %v4053
        %v4119 = vunpack.c.l.b16 %v4054
        %v4120 = vpack.c.b16 %v4089, %v4088
        %v4121 = vpack.c.b16 %v4091, %v4090
        %v4122 = vpack.c.b16 %v4093, %v4092
        %v4123 = vpack.c.b16 %v4095, %v4094
        %v4124 = vpack.c.b16 %v4097, %v4096
        %v4125 = vpack.c.b16 %v4099, %v4098
        %v4126 = vpack.c.b16 %v4101, %v4100
        %v4127 = vpack.c.b16 %v4103, %v4102
        %v4128 = vpack.c.b16 %v4105, %v4104
        %v4129 = vpack.c.b16 %v4107, %v4106
        %v4130 = vpack.c.b16 %v4109, %v4108
        %v4131 = vpack.c.b16 %v4111, %v4110
        %v4132 = vpack.c.b16 %v4113, %v4112
        %v4133 = vpack.c.b16 %v4115, %v4114
        %v4134 = vpack.c.b16 %v4117, %v4116
        %v4135 = vpack.c.b16 %v4119, %v4118
        %4152 = vmatprep.subr.bf16.mxu0 0
        %4153 = vmatpush1.bf16.msra.mxu0 %v4120
        %4154 = vmatprep.subr.bf16.mxu0 0
        %4155 = vmatpush1.bf16.msra.mxu0 %v4121
        %4156 = vmatprep.subr.bf16.mxu0 0
        %4157 = vmatpush1.bf16.msra.mxu0 %v4122
        %4158 = vmatprep.subr.bf16.mxu0 0
        %4159 = vmatpush1.bf16.msra.mxu0 %v4123
        %4160 = vmatprep.subr.bf16.mxu0 0
        %4161 = vmatpush1.bf16.msra.mxu0 %v4124
        %4162 = vmatprep.subr.bf16.mxu0 0
        %4163 = vmatpush1.bf16.msra.mxu0 %v4125
        %4164 = vmatprep.subr.bf16.mxu0 0
        %4165 = vmatpush1.bf16.msra.mxu0 %v4126
        %4166 = vmatprep.subr.bf16.mxu0 0
        %4167 = vmatpush1.bf16.msra.mxu0 %v4127
        %4168 = vmatprep.subr.bf16.mxu0 0
        %4169 = vmatpush1.bf16.msra.mxu0 %v4128
        %4170 = vmatprep.subr.bf16.mxu0 0
        %4171 = vmatpush1.bf16.msra.mxu0 %v4129
        %4172 = vmatprep.subr.bf16.mxu0 0
        %4173 = vmatpush1.bf16.msra.mxu0 %v4130
        %4174 = vmatprep.subr.bf16.mxu0 0
        %4175 = vmatpush1.bf16.msra.mxu0 %v4131
        %4176 = vmatprep.subr.bf16.mxu0 0
        %4177 = vmatpush1.bf16.msra.mxu0 %v4132
        %4178 = vmatprep.subr.bf16.mxu0 0
        %4179 = vmatpush1.bf16.msra.mxu0 %v4133
        %4180 = vmatprep.subr.bf16.mxu0 0
        %4181 = vmatpush1.bf16.msra.mxu0 %v4134
        %4182 = vmatprep.subr.bf16.mxu0 0
        %4183 = vmatpush1.bf16.msra.mxu0 %v4135
        %4184 = vmatprep.mubr.bf16.mxu0 %v4022
        %4185 = vmatmul.mubr.bf16.gmra.mrb[0].mxu0 %v4021
        %v4186 = vpop.f32.mrb[0].mxu0
        %v4187 = vadd.f32 %v4055, %v4186
        %v4188 = vpop.f32.mrb[0].mxu0
        %v4189 = vpop.f32.mrb[0].mxu0
        %v4190 = vpop.f32.mrb[0].mxu0
        %4191 = vdwg.mxu0
        %v4192 = vmax.f32 %v4187, 0.0
        %v4193 = vpack.c.bf16 %v4192, %v4192
        %v4194 = vld [vmem:[%s11] sm:$0xf]
        %v4195 = vld [vmem:[%s11 + $0x4] sm:$0xf]
        %v4196 = vld [vmem:[%s11 + $0x8] sm:$0xf]
        %v4197 = vld [vmem:[%s11 + $0xc] sm:$0xf]
        %v4198 = vld [vmem:[%s11 + $0x10] sm:$0xf]
        %v4199 = vld [vmem:[%s11 + $0x14] sm:$0xf]
        %v4200 = vld [vmem:[%s11 + $0x18] sm:$0xf]
        %v4201 = vld [vmem:[%s11 + $0x1c] sm:$0xf]
        %v4202 = vld [vmem:[%s11 + $0x20] sm:$0xf]
        %v4203 = vld [vmem:[%s11 + $0x24] sm:$0xf]
        %v4204 = vld [vmem:[%s11 + $0x28] sm:$0xf]
        %v4205 = vld [vmem:[%s11 + $0x2c] sm:$0xf]
        %v4206 = vld [vmem:[%s11 + $0x30] sm:$0xf]
        %v4207 = vld [vmem:[%s11 + $0x34] sm:$0xf]
        %v4208 = vld [vmem:[%s11 + $0x38] sm:$0xf]
        %v4209 = vld [vmem:[%s11 + $0x3c] sm:$0xf]
        %v4210 = vld [vmem:[%s12] sm:$0x1]
        %v4227 = vunpack.c.l.b16 %v4194
        %v4228 = vunpack.c.l.b16 %v4195
        %v4229 = vunpack.c.l.b16 %v4196
        %v4230 = vunpack.c.l.b16 %v4197
        %v4231 = vunpack.c.l.b16 %v4198
        %v4232 = vunpack.c.l.b16 %v4199
        %v4233 = vunpack.c.l.b16 %v4200
        %v4234 = vunpack.c.l.b16 %v4201
        %v4235 = vunpack.c.l.b16 %v4202
        %v4236 = vunpack.c.l.b16 %v4203
        %v4237 = vunpack.c.l.b16 %v4204
        %v4238 = vunpack.c.l.b16 %v4205
        %v4239 = vunpack.c.l.b16 %v4206
        %v4240 = vunpack.c.l.b16 %v4207
        %v4241 = vunpack.c.l.b16 %v4208
        %v4242 = vunpack.c.l.b16 %v4209
        %v4243 = vpack.c.b16 %v4228, %v4227
        %v4244 = vpack.c.b16 %v4230, %v4229
        %v4245 = vpack.c.b16 %v4232, %v4231
        %v4246 = vpack.c.b16 %v4234, %v4233
        %v4247 = vpack.c.b16 %v4236, %v4235
        %v4248 = vpack.c.b16 %v4238, %v4237
        %v4249 = vpack.c.b16 %v4240, %v4239
        %v4250 = vpack.c.b16 %v4242, %v4241
        %4259 = vmatprep.subr.bf16.mxu0 0
        %4260 = vmatpush1.bf16.msra.mxu0 %v4243
        %4261 = vmatprep.subr.bf16.mxu0 0
        %4262 = vmatpush1.bf16.msra.mxu0 %v4244
        %4263 = vmatprep.subr.bf16.mxu0 0
        %4264 = vmatpush1.bf16.msra.mxu0 %v4245
        %4265 = vmatprep.subr.bf16.mxu0 0
        %4266 = vmatpush1.bf16.msra.mxu0 %v4246
        %4267 = vmatprep.subr.bf16.mxu0 0
        %4268 = vmatpush1.bf16.msra.mxu0 %v4247
        %4269 = vmatprep.subr.bf16.mxu0 0
        %4270 = vmatpush1.bf16.msra.mxu0 %v4248
        %4271 = vmatprep.subr.bf16.mxu0 0
        %4272 = vmatpush1.bf16.msra.mxu0 %v4249
        %4273 = vmatprep.subr.bf16.mxu0 0
        %4274 = vmatpush1.bf16.msra.mxu0 %v4250
        %4275 = vmatprep.subr.bf16.mxu0 0
        %4276 = vmatpush1.bf16.msra.mxu0 0
        %4277 = vmatprep.subr.bf16.mxu0 0
        %4278 = vmatpush1.bf16.msra.mxu0 0
        %4279 = vmatprep.subr.bf16.mxu0 0
        %4280 = vmatpush1.bf16.msra.mxu0 0
        %4281 = vmatprep.subr.bf16.mxu0 0
        %4282 = vmatpush1.bf16.msra.mxu0 0
        %4283 = vmatprep.subr.bf16.mxu0 0
        %4284 = vmatpush1.bf16.msra.mxu0 0
        %4285 = vmatprep.subr.bf16.mxu0 0
        %4286 = vmatpush1.bf16.msra.mxu0 0
        %4287 = vmatprep.subr.bf16.mxu0 0
        %4288 = vmatpush1.bf16.msra.mxu0 0
        %4289 = vmatprep.subr.bf16.mxu0 0
        %4290 = vmatpush1.bf16.msra.mxu0 0
        %4291 = vmatprep.mubr.bf16.mxu0 0
        %4292 = vmatmul.mubr.bf16.gmra.mrb[0].mxu0 %v4193
        %v4293 = vpop.f32.mrb[0].mxu0
        %v4294 = vadd.f32 %v4210, %v4293
        %v4295 = vpop.f32.mrb[0].mxu0
        %v4296 = vpop.f32.mrb[0].mxu0
        %v4297 = vpop.f32.mrb[0].mxu0
        %4298 = vdwg.mxu0
        %4299 = vst [vmem:[%s432] sm:$0x1] %v4294
        %s4300 = sand.u32 %s313, 1
        %s4301 = scalar_lea.sflag [#allocation5], %s4300
        %s4302 = sand.u32 %s313, 1
        %s4303 = scalar_lea.vmem [#allocation4], %s4302
        // Predicated region
        $region73: #{forward.1} parent=71 // pred_check
          %p4304 = pneg %p323
        $region74: #{forward.1} parent=71 // pred_check_branch
          %4306 = sbr.rel (%p4304) target = $region76
        $region75: #{forward.1} parent=71 // pred_region
          %s4308 = ssub.s32 16, 16
          %4309 = vsyncadd %s4301, %s4308
          %s4310 = smul.addr %s27, 16
          %s4311 = scalar_lea.hbm %s13, %s4310
          %s4313 = sshll.u32 %s4303, 4
          %s4314 = int_to_ptr.vmem [resolvable:$true] %s4313
          %4316 = dma.vmem_to_hbm [thread:$0]  %s4314, 16, %s4311, %s4301
        $region76: #{forward.1} parent=71 // pred_fallthru
          _
      $region72: #{forward.1} parent=5 // pred_fallthru
        _
      %p4317 = scmp.le.s32.totalorder 2, %s22
      // Predicated region
      $region77: #{forward.1} parent=5 // pred_check
        %p4318 = pneg %p4317
      $region78: #{forward.1} parent=5 // pred_check_branch
        %4320 = sbr.rel (%p4318) target = $region80
      $region79: #{forward.1} parent=5 // pred_region
        %s4321 = ssub.s32 %s22, 2
        // Predicated region
        $region81: #{forward.1} parent=79 // pred_check
          %p4322 = pneg %p329
        $region82: #{forward.1} parent=79 // pred_check_branch
          %4324 = sbr.rel (%p4322) target = $region84
        $region83: #{forward.1} parent=79 // pred_region
          %s4325 = sand.u32 %s314, 1
          %s4326 = scalar_lea.sflag [#allocation5], %s4325
          %s4327 = sand.u32 %s314, 1
          %s4328 = scalar_lea.vmem [#allocation4], %s4327
          %4329 = dma.done %s4326, 16
        $region84: #{forward.1} parent=79 // pred_fallthru
          _
      $region80: #{forward.1} parent=5 // pred_fallthru
        _
    $region6: #{forward.1} parent=1 // loop_footer
      %s26 = sadd.s32 1, %s22
    $region7: #{forward.1} parent=1 // loop_footer_branch
      %21 = sbr.rel target = $region3
    $region8: #{forward.1} parent=1 // loop_exit
      _
    %4330 = vsyncpa [#allocation5], 1
    %s4331 = scalar_lea.sflag [#allocation5], 1
    %4332 = vsyncpa %s4331, 1

</llo_original>
